<compile_context>
chip_gen: v7x
topology: tpu7x:2x2x1
jax: 0.10.0
libtpu: 0.0.40
codegen_flags: <defaults>
</compile_context>

<pallas_src>
import jax
import jax.numpy as jnp
from jax.experimental import pallas as pl
from jax.experimental.pallas import tpu as pltpu


# ---------------------------------------------------------------------------
# Fused Pallas kernel (x-token path + decoder)
# ---------------------------------------------------------------------------
def _adapter_x_kernel(patches_ref, posb_ref, pw_ref, g_ref, b_ref,
                      cw0_ref, cb0_ref, w1_ref, b1_ref, qcat_ref, ccat_ref,
                      out_ref):
  f32 = jnp.float32
  bf16 = jnp.bfloat16

  # Patch Conv2d(3, D, 16, 16) as unfold + GEMM (bf16 MXU operands, f32 acc).
  t = jnp.dot(patches_ref[...], pw_ref[...], preferred_element_type=f32)
  t = t + posb_ref[...]                       # conv bias + interpolated pos

  # LayerNorm (two-pass variance, f32 throughout).
  mean = jnp.mean(t, axis=-1, keepdims=True)
  cen = t - mean
  var = jnp.mean(cen * cen, axis=-1, keepdims=True)
  t = cen * jax.lax.rsqrt(var + 1e-5) * g_ref[...] + b_ref[...]

  # xray_mlp / attn_mlp fused: concatenated layer-0, block-diagonal layer-1.
  h0 = jnp.maximum(
      jnp.dot(t.astype(bf16), cw0_ref[...], preferred_element_type=f32)
      + cb0_ref[...], 0.0)                    # (R, 2*mlp)
  h1 = jnp.maximum(
      jnp.dot(h0.astype(bf16), w1_ref[...], preferred_element_type=f32)
      + b1_ref[...], 0.0)                     # (R, 2*mlp) = [xh | ah]

  # Decoder einsums; query MLP, layer-2 weights and bias_scaling are all folded
  # into qcat/ccat:  out[row, :] = qcat[row] . h1^T + ccat[row]
  out = jax.lax.dot_general(qcat_ref[...], h1.astype(bf16),
                            (((1,), (1,)), ((), ())),
                            preferred_element_type=f32)   # (rows_out, R)
  out_ref[...] = out + ccat_ref[...]


# ---------------------------------------------------------------------------
# Forward pass (wrapper glue in plain JAX, single Pallas call)
# ---------------------------------------------------------------------------
def adapter_forward(params, image, head_num):
  N, C, Himg, Wimg = image.shape
  D = params["patch_w"].shape[1]
  P = 16
  gh, gw = Himg // P, Wimg // P
  L = gh * gw
  Q = params["query_embed"].shape[1]
  mlp_dim = params["xray_mlp"]["w1"].shape[0]
  out_dim = params["query_mlp"]["w2"].shape[1]
  KP = C * P * P

  f32, bf16 = jnp.float32, jnp.bfloat16
  qmlp, xmlp, amlp = params["query_mlp"], params["xray_mlp"], params["attn_mlp"]
  gamma, beta = params["ln_gamma"], params["ln_beta"]

  # ---- patch unfold (Conv2d == unfold + GEMM); cast to bf16 BEFORE the
  # transpose copy so the extra HBM pass writes half the bytes. ---------------
  patches = image.astype(bf16).reshape(N, C, gh, P, gw, P)
  patches = patches.transpose(0, 2, 4, 1, 3, 5).reshape(N * L, KP)

  # ---- pos embed bilinear resize (half-pixel sampling == align_corners=False)
  # folded together with the conv bias into one per-row additive constant. ----
  n_pos = params["vit_pos_embed"].shape[1]
  src = int(round(n_pos ** 0.5))
  assert src * src == n_pos, "vit_pos_embed must be a square token grid"
  pe = params["vit_pos_embed"].transpose(0, 2, 1).reshape(1, D, src, src)
  pe = jax.image.resize(pe, (1, D, gh, gw), method="bilinear")
  posb = (pe.reshape(D, L).T + params["patch_b"]).astype(f32)       # (L, D)
  posb = jnp.tile(posb, (N, 1))                                     # (N*L, D)

  # ---- batch-invariant query path hoisted out of the kernel (f32). ----------
  def ln(v):
    m = jnp.mean(v, -1, keepdims=True)
    c = v - m
    return c * jax.lax.rsqrt(jnp.mean(c * c, -1, keepdims=True) + 1e-5) * gamma + beta

  qt = ln(params["query_embed"][0] + params["query_pos_embed"][0])  # (Q, D)
  qh = jnp.maximum(qt @ qmlp["w0"] + qmlp["b0"], 0.0)
  qh = jnp.maximum(qh @ qmlp["w1"] + qmlp["b1"], 0.0)
  q = qh @ qmlp["w2"] + qmlp["b2"]                                  # (Q, out_dim)

  # ---- fold xray/attn layer-2 weights and the bias_scaling affine into the
  # decoder LHS:
  #   xray    = (q @ xw2^T) . xh^T + (q @ xb2)
  #   attn_h  = sw*(q @ aw2_h^T) . ah^T + sw*(q @ ab2_h) + sb
  sw = params["bias_scale_w"][0, 0]
  sb = params["bias_scale_b"][0, 0]
  qx = q @ xmlp["w2"].T                                             # (Q, mlp)
  cx = q @ xmlp["b2"]                                               # (Q,)
  aw2 = amlp["w2"].reshape(mlp_dim, head_num, out_dim)
  ab2 = amlp["b2"].reshape(head_num, out_dim)
  qa = sw * jnp.einsum("qo,mho->hqm", q, aw2)                       # (H, Q, mlp)
  ca = sw * jnp.einsum("qo,ho->hq", q, ab2) + sb                    # (H, Q)

  rows_used = (1 + head_num) * Q
  rows_out = ((rows_used + 7) // 8) * 8                             # sublane-dense
  qcat = jnp.concatenate([
      jnp.concatenate([qx, jnp.zeros((Q, mlp_dim), f32)], 1),
      jnp.concatenate([jnp.zeros((head_num * Q, mlp_dim), f32),
                       qa.reshape(head_num * Q, mlp_dim)], 1),
      jnp.zeros((rows_out - rows_used, 2 * mlp_dim), f32)], 0).astype(bf16)
  ccat = jnp.concatenate([
      cx, ca.reshape(head_num * Q),
      jnp.zeros((rows_out - rows_used,), f32)], 0).reshape(rows_out, 1)

  # ---- fused x-token weights: concatenated layer-0, block-diagonal layer-1. -
  cw0 = jnp.concatenate([xmlp["w0"], amlp["w0"]], 1).astype(bf16)   # (D, 2*mlp)
  cb0 = jnp.concatenate([xmlp["b0"], amlp["b0"]]).reshape(1, -1)
  zmm = jnp.zeros((mlp_dim, mlp_dim), f32)
  w1bd = jnp.concatenate([
      jnp.concatenate([xmlp["w1"], zmm], 1),
      jnp.concatenate([zmm, amlp["w1"]], 1)], 0).astype(bf16)       # (2mlp, 2mlp)
  b1cat = jnp.concatenate([xmlp["b1"], amlp["b1"]]).reshape(1, -1)

  # ---- grid: batch folded into GEMM rows; a 2-way row split keeps both v7x
  # TensorCores busy and is near-single-step on v6e/v5e. ----------------------
  total = N * L
  num_blocks = 2 if (total % 256 == 0 and total >= 512) else 1
  R = total // num_blocks

  inputs = [
      patches,                                   # (N*L, KP) bf16
      posb,                                      # (N*L, D)  f32
      params["patch_w"].astype(bf16),            # (KP, D)
      gamma.reshape(1, D).astype(f32),
      beta.reshape(1, D).astype(f32),
      cw0, cb0.astype(f32),
      w1bd, b1cat.astype(f32),
      qcat, ccat.astype(f32),
  ]

  def w_spec(a):                                 # whole (untiled) weight/bias
    nd = a.ndim
    return pl.BlockSpec(a.shape, lambda g, _nd=nd: (0,) * _nd)

  in_specs = [
      pl.BlockSpec((R, KP), lambda g: (g, 0)),   # patch rows: per-step tile
      pl.BlockSpec((R, D), lambda g: (g, 0)),    # pos+bias rows
  ] + [w_spec(a) for a in inputs[2:]]

  out = pl.pallas_call(
      _adapter_x_kernel,
      out_shape=jax.ShapeDtypeStruct((rows_out, total), f32),
      grid=(num_blocks,),
      in_specs=in_specs,
      out_specs=pl.BlockSpec((rows_out, R), lambda g: (0, g)),
      compiler_params=pltpu.CompilerParams(
          dimension_semantics=("parallel",)),
  )(*inputs)

  # ---- unpack the lane-dense (rows_out, N*L) slab into module layouts. ------
  out = out.reshape(rows_out, N, L)
  xray_pred = jnp.transpose(out[:Q], (1, 0, 2)).reshape(N, Q, gh, gw)
  attn = out[Q:Q + head_num * Q].reshape(head_num, Q, N, L)
  attn_bias = jnp.transpose(attn, (2, 0, 1, 3)).reshape(N, head_num, Q, gh, gw)

  # TODO(synk): timm ViT blocks (create_model), Adapter_MoElayer, Fusion and the
  # training-only intra_contra loss are external / undefined modules; the
  # ln_pre output is used directly as the block-8 feature and both losses are 0.
  loss_intra = jnp.float32(0.0)
  loss_moe = jnp.float32(0.0)
  return [attn_bias], [xray_pred], loss_intra, loss_moe


# ---------------------------------------------------------------------------
# Pure-JAX f32 reference (numerical sanity check)
# ---------------------------------------------------------------------------
def adapter_forward_ref(params, image, head_num):
  N, C, Himg, Wimg = image.shape
  D = params["patch_w"].shape[1]
  P = 16
  gh, gw = Himg // P, Wimg // P
  L = gh * gw
  Q = params["query_embed"].shape[1]
  out_dim = params["query_mlp"]["w2"].shape[1]

  patches = image.reshape(N, C, gh, P, gw, P).transpose(0, 2, 4, 1, 3, 5)
  patches = patches.reshape(N, L, C * P * P)
  x = patches @ params["patch_w"] + params["patch_b"]

  pe = params["vit_pos_embed"].transpose(0, 2, 1).reshape(1, D, 14, 14)
  pe = jax.image.resize(pe, (1, D, gh, gw), method="bilinear")
  pos_patch = pe.reshape(1, D, L).transpose(0, 2, 1)

  def ln(v):
    m = jnp.mean(v, -1, keepdims=True)
    c = v - m
    s = jnp.mean(c * c, -1, keepdims=True)
    return c * jax.lax.rsqrt(s + 1e-5) * params["ln_gamma"] + params["ln_beta"]

  x = ln(x + pos_patch)
  qt = jnp.broadcast_to(ln(params["query_embed"] + params["query_pos_embed"]),
                        (N, Q, D))

  def mlp(v, p):
    v = jnp.maximum(v @ p["w0"] + p["b0"], 0.0)
    v = jnp.maximum(v @ p["w1"] + p["b1"], 0.0)
    return v @ p["w2"] + p["b2"]

  q = mlp(qt, params["query_mlp"])                      # (N, Q, out)
  xr = mlp(x, params["xray_mlp"])                       # (N, L, out)
  at = mlp(x, params["attn_mlp"])                       # (N, L, H*out)
  xray = jnp.einsum("nqd,nld->nql", q, xr)
  at = at.reshape(N, L, head_num, out_dim)
  ab = jnp.einsum("nqd,nlhd->nhql", q, at)
  ab = params["bias_scale_w"][0, 0] * ab + params["bias_scale_b"][0, 0]
  return xray.reshape(N, Q, gh, gw), ab.reshape(N, head_num, Q, gh, gw)


# ---------------------------------------------------------------------------
# Deterministic parameter init + driver
# ---------------------------------------------------------------------------
def init_params(key, D, Q, mlp_dim, out_dim, head_num):
  ks = iter(jax.random.split(key, 32))

  def nrm(shape, std=0.02):
    return std * jax.random.normal(next(ks), shape, jnp.float32)

  def mlp_params(in_dim, hidden, out):
    return {
        "w0": nrm((in_dim, hidden)), "b0": nrm((hidden,)),
        "w1": nrm((hidden, hidden)), "b1": nrm((hidden,)),
        "w2": nrm((hidden, out)),    "b2": nrm((out,)),
    }

  patch_w = nrm((D, 3, 16, 16)).reshape(D, -1).T                     # (768, D)
  return {
      "patch_w": patch_w,
      "patch_b": nrm((D,)),
      "vit_pos_embed": nrm((1, 196, D)),                             # cls removed
      "query_embed": nrm((1, Q, D)),
      "query_pos_embed": nrm((1, Q, D)),
      "ln_gamma": jnp.ones((D,), jnp.float32),
      "ln_beta": jnp.zeros((D,), jnp.float32),
      "query_mlp": mlp_params(D, mlp_dim, out_dim),
      "xray_mlp": mlp_params(D, mlp_dim, out_dim),
      "attn_mlp": mlp_params(D, mlp_dim, out_dim * head_num),
      "bias_scale_w": jnp.full((1, 1), 0.5, jnp.float32),            # nn.Linear(1,1)
      "bias_scale_b": jnp.full((1, 1), 0.1, jnp.float32),
  }


if __name__ == "__main__":
  # forward hardcodes a 16x16 patch grid -> image must be 256x256.
  N = 2
  D = 64            # num_features
  Q = 4             # num_quires
  MLP_DIM = 128
  OUT_DIM = 64      # mlp_out_dim
  HEADS = 2

  key = jax.random.PRNGKey(0)
  k_img, k_par = jax.random.split(key)
  image = jax.random.normal(k_img, (N, 3, 256, 256), jnp.float32)    # NCHW
  params = init_params(k_par, D, Q, MLP_DIM, OUT_DIM, HEADS)

  fwd = jax.jit(adapter_forward, static_argnums=2)
  attn_biases, xray_preds, loss_intra, loss_moe = fwd(params, image, HEADS)
  jax.block_until_ready((attn_biases, xray_preds, loss_intra, loss_moe))

  assert xray_preds[0].shape == (N, Q, 16, 16)
  assert attn_biases[0].shape == (N, HEADS, Q, 16, 16)
  assert bool(jnp.isfinite(xray_preds[0]).all())
  assert bool(jnp.isfinite(attn_biases[0]).all())

  # Loose check vs pure-JAX f32 reference (kernel uses bf16 MXU operands).
  xr_ref, ab_ref = adapter_forward_ref(params, image, HEADS)
  assert float(jnp.max(jnp.abs(xray_preds[0] - xr_ref))) < 5e-3
  assert float(jnp.max(jnp.abs(attn_biases[0] - ab_ref))) < 5e-3

  print("KERNEL_OK")
</pallas_src>

<mosaic_0001>
module attributes {stable_mosaic.version = 11 : i64} {
  func.func @_adapter_x_kernel(%arg0: i32, %arg1: memref<256x768xbf16, #tpu.memory_space<vmem>>, %arg2: memref<256x64xf32, #tpu.memory_space<vmem>>, %arg3: memref<768x64xbf16, #tpu.memory_space<vmem>>, %arg4: memref<1x64xf32, #tpu.memory_space<vmem>>, %arg5: memref<1x64xf32, #tpu.memory_space<vmem>>, %arg6: memref<64x256xbf16, #tpu.memory_space<vmem>>, %arg7: memref<1x256xf32, #tpu.memory_space<vmem>>, %arg8: memref<256x256xbf16, #tpu.memory_space<vmem>>, %arg9: memref<1x256xf32, #tpu.memory_space<vmem>>, %arg10: memref<16x256xbf16, #tpu.memory_space<vmem>>, %arg11: memref<16x1xf32, #tpu.memory_space<vmem>>, %arg12: memref<16x256xf32, #tpu.memory_space<vmem>>) attributes {dimension_semantics = [#tpu.dimension_semantics<parallel>], iteration_bounds = array<i64: 2>, scalar_prefetch = 0 : i64, scratch_operands = 0 : i64, tpu.core_type = #tpu.core_type<tc>, window_params = [{transform_indices = @transform_0, window_bounds = array<i64: 256, 768>}, {transform_indices = @transform_1, window_bounds = array<i64: 256, 64>}, {pipeline_mode = #tpu.pipeline_mode<synchronous>, transform_indices = @transform_2, window_bounds = array<i64: 768, 64>}, {pipeline_mode = #tpu.pipeline_mode<synchronous>, transform_indices = @transform_3, window_bounds = array<i64: 1, 64>}, {pipeline_mode = #tpu.pipeline_mode<synchronous>, transform_indices = @transform_4, window_bounds = array<i64: 1, 64>}, {pipeline_mode = #tpu.pipeline_mode<synchronous>, transform_indices = @transform_5, window_bounds = array<i64: 64, 256>}, {pipeline_mode = #tpu.pipeline_mode<synchronous>, transform_indices = @transform_6, window_bounds = array<i64: 1, 256>}, {pipeline_mode = #tpu.pipeline_mode<synchronous>, transform_indices = @transform_7, window_bounds = array<i64: 256, 256>}, {pipeline_mode = #tpu.pipeline_mode<synchronous>, transform_indices = @transform_8, window_bounds = array<i64: 1, 256>}, {pipeline_mode = #tpu.pipeline_mode<synchronous>, transform_indices = @transform_9, window_bounds = array<i64: 16, 256>}, {pipeline_mode = #tpu.pipeline_mode<synchronous>, transform_indices = @transform_10, window_bounds = array<i64: 16, 1>}, {transform_indices = @transform_11, window_bounds = array<i64: 16, 256>}]} {
    %c0 = arith.constant 0 : index
    %c0_0 = arith.constant 0 : index
    %0 = vector.load %arg1[%c0, %c0_0] : memref<256x768xbf16, #tpu.memory_space<vmem>>, vector<256x768xbf16>
    %c0_1 = arith.constant 0 : index
    %c0_2 = arith.constant 0 : index
    %1 = vector.load %arg3[%c0_1, %c0_2] : memref<768x64xbf16, #tpu.memory_space<vmem>>, vector<768x64xbf16>
    %cst = arith.constant dense<0.000000e+00> : vector<256x64xf32>
    %2 = tpu.matmul %0, %1, %cst {dimension_numbers = #tpu.dot_dimension_numbers<[1], [0], [0], [1], [0, 0, 1, 1], [], []>} : vector<256x768xbf16>, vector<768x64xbf16>, vector<256x64xf32> -> vector<256x64xf32>
    %c0_3 = arith.constant 0 : index
    %c0_4 = arith.constant 0 : index
    %3 = vector.load %arg2[%c0_3, %c0_4] : memref<256x64xf32, #tpu.memory_space<vmem>>, vector<256x64xf32>
    %4 = arith.addf %2, %3 : vector<256x64xf32>
    %cst_5 = arith.constant dense<0.000000e+00> : vector<256xf32>
    %5 = vector.multi_reduction <add>, %4, %cst_5 [1] : vector<256x64xf32> to vector<256xf32>
    %6 = vector.shape_cast %5 : vector<256xf32> to vector<256x1xf32>
    %cst_6 = arith.constant 6.400000e+01 : f32
    %7 = vector.broadcast %cst_6 : f32 to vector<256x1xf32>
    %8 = arith.divf %6, %7 : vector<256x1xf32>
    %9 = vector.broadcast %8 : vector<256x1xf32> to vector<256x64xf32>
    %10 = arith.subf %4, %9 : vector<256x64xf32>
    %11 = arith.mulf %10, %10 : vector<256x64xf32>
    %cst_7 = arith.constant dense<0.000000e+00> : vector<256xf32>
    %12 = vector.multi_reduction <add>, %11, %cst_7 [1] : vector<256x64xf32> to vector<256xf32>
    %13 = vector.shape_cast %12 : vector<256xf32> to vector<256x1xf32>
    %cst_8 = arith.constant 6.400000e+01 : f32
    %14 = vector.broadcast %cst_8 : f32 to vector<256x1xf32>
    %15 = arith.divf %13, %14 : vector<256x1xf32>
    %cst_9 = arith.constant 9.99999974E-6 : f32
    %16 = vector.broadcast %cst_9 : f32 to vector<256x1xf32>
    %17 = arith.addf %15, %16 : vector<256x1xf32>
    %18 = math.rsqrt %17 : vector<256x1xf32>
    %19 = vector.broadcast %18 : vector<256x1xf32> to vector<256x64xf32>
    %20 = arith.mulf %10, %19 : vector<256x64xf32>
    %c0_10 = arith.constant 0 : index
    %c0_11 = arith.constant 0 : index
    %21 = vector.load %arg4[%c0_10, %c0_11] : memref<1x64xf32, #tpu.memory_space<vmem>>, vector<1x64xf32>
    %22 = vector.broadcast %21 : vector<1x64xf32> to vector<256x64xf32>
    %23 = arith.mulf %20, %22 : vector<256x64xf32>
    %c0_12 = arith.constant 0 : index
    %c0_13 = arith.constant 0 : index
    %24 = vector.load %arg5[%c0_12, %c0_13] : memref<1x64xf32, #tpu.memory_space<vmem>>, vector<1x64xf32>
    %25 = vector.broadcast %24 : vector<1x64xf32> to vector<256x64xf32>
    %26 = arith.addf %23, %25 : vector<256x64xf32>
    %27 = arith.truncf %26 : vector<256x64xf32> to vector<256x64xbf16>
    %c0_14 = arith.constant 0 : index
    %c0_15 = arith.constant 0 : index
    %28 = vector.load %arg6[%c0_14, %c0_15] : memref<64x256xbf16, #tpu.memory_space<vmem>>, vector<64x256xbf16>
    %cst_16 = arith.constant dense<0.000000e+00> : vector<256x256xf32>
    %29 = tpu.matmul %27, %28, %cst_16 {dimension_numbers = #tpu.dot_dimension_numbers<[1], [0], [0], [1], [0, 0, 1, 1], [], []>} : vector<256x64xbf16>, vector<64x256xbf16>, vector<256x256xf32> -> vector<256x256xf32>
    %c0_17 = arith.constant 0 : index
    %c0_18 = arith.constant 0 : index
    %30 = vector.load %arg7[%c0_17, %c0_18] : memref<1x256xf32, #tpu.memory_space<vmem>>, vector<1x256xf32>
    %31 = vector.broadcast %30 : vector<1x256xf32> to vector<256x256xf32>
    %32 = arith.addf %29, %31 : vector<256x256xf32>
    %cst_19 = arith.constant 0.000000e+00 : f32
    %33 = vector.broadcast %cst_19 : f32 to vector<256x256xf32>
    %34 = arith.maximumf %32, %33 : vector<256x256xf32>
    %35 = arith.truncf %34 : vector<256x256xf32> to vector<256x256xbf16>
    %c0_20 = arith.constant 0 : index
    %c0_21 = arith.constant 0 : index
    %36 = vector.load %arg8[%c0_20, %c0_21] : memref<256x256xbf16, #tpu.memory_space<vmem>>, vector<256x256xbf16>
    %cst_22 = arith.constant dense<0.000000e+00> : vector<256x256xf32>
    %37 = tpu.matmul %35, %36, %cst_22 {dimension_numbers = #tpu.dot_dimension_numbers<[1], [0], [0], [1], [0, 0, 1, 1], [], []>} : vector<256x256xbf16>, vector<256x256xbf16>, vector<256x256xf32> -> vector<256x256xf32>
    %c0_23 = arith.constant 0 : index
    %c0_24 = arith.constant 0 : index
    %38 = vector.load %arg9[%c0_23, %c0_24] : memref<1x256xf32, #tpu.memory_space<vmem>>, vector<1x256xf32>
    %39 = vector.broadcast %38 : vector<1x256xf32> to vector<256x256xf32>
    %40 = arith.addf %37, %39 : vector<256x256xf32>
    %cst_25 = arith.constant 0.000000e+00 : f32
    %41 = vector.broadcast %cst_25 : f32 to vector<256x256xf32>
    %42 = arith.maximumf %40, %41 : vector<256x256xf32>
    %c0_26 = arith.constant 0 : index
    %c0_27 = arith.constant 0 : index
    %43 = vector.load %arg10[%c0_26, %c0_27] : memref<16x256xbf16, #tpu.memory_space<vmem>>, vector<16x256xbf16>
    %44 = arith.truncf %42 : vector<256x256xf32> to vector<256x256xbf16>
    %cst_28 = arith.constant dense<0.000000e+00> : vector<16x256xf32>
    %45 = tpu.matmul %43, %44, %cst_28 {dimension_numbers = #tpu.dot_dimension_numbers<[1], [1], [0], [0], [0, 0, 1, 0], [], []>} : vector<16x256xbf16>, vector<256x256xbf16>, vector<16x256xf32> -> vector<16x256xf32>
    %c0_29 = arith.constant 0 : index
    %c0_30 = arith.constant 0 : index
    %46 = vector.load %arg11[%c0_29, %c0_30] : memref<16x1xf32, #tpu.memory_space<vmem>>, vector<16x1xf32>
    %47 = vector.broadcast %46 : vector<16x1xf32> to vector<16x256xf32>
    %48 = arith.addf %45, %47 : vector<16x256xf32>
    %c0_31 = arith.constant 0 : index
    %c0_32 = arith.constant 0 : index
    %49 = vector.load %arg12[%c0_31, %c0_32] : memref<16x256xf32, #tpu.memory_space<vmem>>, vector<16x256xf32>
    tpu.vector_store %arg12[%c0_31, %c0_32], %48 {strides = array<i32>} : memref<16x256xf32, #tpu.memory_space<vmem>>, vector<16x256xf32>,
    return
  }
  func.func @transform_0(%arg0: i32) -> (i32, i32) {
    %c0_i32 = arith.constant 0 : i32
    %c0_i32_0 = arith.constant 0 : i32
    return %arg0, %c0_i32 : i32, i32
  }
  func.func @transform_1(%arg0: i32) -> (i32, i32) {
    %c0_i32 = arith.constant 0 : i32
    %c0_i32_0 = arith.constant 0 : i32
    return %arg0, %c0_i32 : i32, i32
  }
  func.func @transform_2(%arg0: i32) -> (i32, i32) {
    %c0_i32 = arith.constant 0 : i32
    %c0_i32_0 = arith.constant 0 : i32
    %c0_i32_1 = arith.constant 0 : i32
    return %c0_i32, %c0_i32_0 : i32, i32
  }
  func.func @transform_3(%arg0: i32) -> (i32, i32) {
    %c0_i32 = arith.constant 0 : i32
    %c0_i32_0 = arith.constant 0 : i32
    %c0_i32_1 = arith.constant 0 : i32
    return %c0_i32, %c0_i32_0 : i32, i32
  }
  func.func @transform_4(%arg0: i32) -> (i32, i32) {
    %c0_i32 = arith.constant 0 : i32
    %c0_i32_0 = arith.constant 0 : i32
    %c0_i32_1 = arith.constant 0 : i32
    return %c0_i32, %c0_i32_0 : i32, i32
  }
  func.func @transform_5(%arg0: i32) -> (i32, i32) {
    %c0_i32 = arith.constant 0 : i32
    %c0_i32_0 = arith.constant 0 : i32
    %c0_i32_1 = arith.constant 0 : i32
    return %c0_i32, %c0_i32_0 : i32, i32
  }
  func.func @transform_6(%arg0: i32) -> (i32, i32) {
    %c0_i32 = arith.constant 0 : i32
    %c0_i32_0 = arith.constant 0 : i32
    %c0_i32_1 = arith.constant 0 : i32
    return %c0_i32, %c0_i32_0 : i32, i32
  }
  func.func @transform_7(%arg0: i32) -> (i32, i32) {
    %c0_i32 = arith.constant 0 : i32
    %c0_i32_0 = arith.constant 0 : i32
    %c0_i32_1 = arith.constant 0 : i32
    return %c0_i32, %c0_i32_0 : i32, i32
  }
  func.func @transform_8(%arg0: i32) -> (i32, i32) {
    %c0_i32 = arith.constant 0 : i32
    %c0_i32_0 = arith.constant 0 : i32
    %c0_i32_1 = arith.constant 0 : i32
    return %c0_i32, %c0_i32_0 : i32, i32
  }
  func.func @transform_9(%arg0: i32) -> (i32, i32) {
    %c0_i32 = arith.constant 0 : i32
    %c0_i32_0 = arith.constant 0 : i32
    %c0_i32_1 = arith.constant 0 : i32
    return %c0_i32, %c0_i32_0 : i32, i32
  }
  func.func @transform_10(%arg0: i32) -> (i32, i32) {
    %c0_i32 = arith.constant 0 : i32
    %c0_i32_0 = arith.constant 0 : i32
    %c0_i32_1 = arith.constant 0 : i32
    return %c0_i32, %c0_i32_0 : i32, i32
  }
  func.func @transform_11(%arg0: i32) -> (i32, i32) {
    %c0_i32 = arith.constant 0 : i32
    %c0_i32_0 = arith.constant 0 : i32
    return %c0_i32, %arg0 : i32, i32
  }
}

</mosaic_0001>

<llo_original>
// kernel: adapter_forward.1
$region0: #{adapter_forward.1}
  #allocation0 [shape = 'u32[]', space=smem, size = 0x4, offset = 0x4, fixed_abs, tag = 'smem constant byte address 0x4 - core index']
  #allocation1 [shape = 'u32[144,128]{1,0:T(1,128)}', space=vmem, size = 0x12000, scoped, tag = 'internal scratch']
  %s0 = inlined_call_operand.vmem [shape: bf16[512,768], index: 0, kind: input, shape index: {}]
  %s1 = inlined_call_operand.vmem [shape: f32[512,64], index: 1, kind: input, shape index: {}]
  %s2 = inlined_call_operand.vmem [shape: bf16[768,64], index: 2, kind: input, shape index: {}]
  %s3 = inlined_call_operand.vmem [shape: f32[1,64], index: 3, kind: input, shape index: {}]
  %s4 = inlined_call_operand.vmem [shape: f32[1,64], index: 4, kind: input, shape index: {}]
  %s5 = inlined_call_operand.vmem [shape: bf16[64,256], index: 5, kind: input, shape index: {}]
  %s6 = inlined_call_operand.vmem [shape: f32[1,256], index: 6, kind: input, shape index: {}]
  %s7 = inlined_call_operand.vmem [shape: bf16[256,256], index: 7, kind: input, shape index: {}]
  %s8 = inlined_call_operand.vmem [shape: f32[1,256], index: 8, kind: input, shape index: {}]
  %s9 = inlined_call_operand.vmem [shape: bf16[16,256], index: 9, kind: input, shape index: {}]
  %s10 = inlined_call_operand.vmem [shape: f32[16,1], index: 10, kind: input, shape index: {}]
  %s11 = inlined_call_operand.vmem [shape: f32[16,512], index: 11, kind: output, shape index: {}]
  %s12 = sld [smem:[#allocation0]]
  $region96: #{adapter_forward.1} parent=0
    _
  %s14 = ssub.s32 1, %s12
  %s15 = scalar_select 0, %s14, %s12
  $region1: #{adapter_forward.1} parent=0
    #allocation2 [shape = 'u8[32768]{0}', space=vmem, size = 0x8000, scoped, tag = 'output window, operand 0']
    loop: start=0, step=1, limit=4
    $region2: #{adapter_forward.1} parent=1 // loop_pre_header
      _
    $region3: #{adapter_forward.1} parent=1 // loop_header
      %s17 = sphi 0, %s21
      %p18 = scmp.ge.s32.totalorder %s17, 4
      %s27 = sphi 0, %s29
      %s30 = sphi 0, %s27
      %s31 = sphi 0, %s30
      %s47 = sphi 0, %s31
      %s53 = sphi 0, %s55
      %s56 = sphi 0, %s53
      %s57 = sphi 0, %s56
      %s73 = sphi 0, %s57
      %s77 = sphi 0, %s77
      %s79 = sphi 0, %s77
      %s80 = sphi 0, %s79
      %s94 = sphi 0, %s80
      %s98 = sphi 0, %s98
      %s100 = sphi 0, %s98
      %s101 = sphi 0, %s100
      %s115 = sphi 0, %s101
      %s119 = sphi 0, %s119
      %s121 = sphi 0, %s119
      %s122 = sphi 0, %s121
      %s136 = sphi 0, %s122
      %s140 = sphi 0, %s140
      %s142 = sphi 0, %s140
      %s143 = sphi 0, %s142
      %s157 = sphi 0, %s143
      %s161 = sphi 0, %s161
      %s163 = sphi 0, %s161
      %s164 = sphi 0, %s163
      %s178 = sphi 0, %s164
      %s182 = sphi 0, %s182
      %s184 = sphi 0, %s182
      %s185 = sphi 0, %s184
      %s199 = sphi 0, %s185
      %s203 = sphi 0, %s203
      %s205 = sphi 0, %s203
      %s206 = sphi 0, %s205
      %s220 = sphi 0, %s206
      %s224 = sphi 0, %s224
      %s226 = sphi 0, %s224
      %s227 = sphi 0, %s226
      %s241 = sphi 0, %s227
      %s245 = sphi 0, %s245
      %s247 = sphi 0, %s245
      %s248 = sphi 0, %s247
      %s262 = sphi 0, %s248
      %s268 = sphi 0, %s270
      %s271 = sphi 0, %s268
      %s272 = sphi 0, %s271
      %s288 = sphi 0, %s272
    $region4: #{adapter_forward.1} parent=1 // loop_header_branch
      %20 = sbr.rel (%p18) target = $region8
    $region5: #{adapter_forward.1} parent=1 // loop_body
      %s22 = ssub.s32 %s17, 1
      %s23 = ssub.s32 %s17, 2
      %s24 = sadd.s32 %s17, 1
      %s25 = ssub.s32 %s17, %s24
      %p26 = scmp.eq.s32.totalorder %s25, 0
      %s28 = sadd.s32 %s27, 1
      %s29 = scalar_select %p26, %s27, %s28
      %p32 = pneg %p26
      %p33 = scmp.eq.s32.totalorder %s17, 1
      %p34 = por %p32, %p33
      %p35 = scmp.ne.s32.totalorder %s27, %s30
      %p36 = scmp.eq.s32.totalorder %s17, 0
      %p37 = por %p35, %p36
      %p38 = scmp.ne.s32.totalorder %s27, %s30
      %p39 = scmp.eq.s32.totalorder %s22, 1
      %p40 = por %p38, %p39
      %p41 = scmp.ne.s32.totalorder %s30, %s31
      %p42 = scmp.eq.s32.totalorder %s22, 0
      %p43 = por %p41, %p42
      %p44 = scmp.ne.s32.totalorder %s30, %s31
      %p45 = scmp.eq.s32.totalorder %s23, 1
      %p46 = por %p44, %p45
      %p48 = scmp.ne.s32.totalorder %s31, %s47
      %p49 = scmp.eq.s32.totalorder %s23, 0
      %p50 = por %p48, %p49
      %s51 = ssub.s32 %s17, %s24
      %p52 = scmp.eq.s32.totalorder %s51, 0
      %s54 = sadd.s32 %s53, 1
      %s55 = scalar_select %p52, %s53, %s54
      %p58 = pneg %p52
      %p59 = scmp.eq.s32.totalorder %s17, 1
      %p60 = por %p58, %p59
      %p61 = scmp.ne.s32.totalorder %s53, %s56
      %p62 = scmp.eq.s32.totalorder %s17, 0
      %p63 = por %p61, %p62
      %p64 = scmp.ne.s32.totalorder %s53, %s56
      %p65 = scmp.eq.s32.totalorder %s22, 1
      %p66 = por %p64, %p65
      %p67 = scmp.ne.s32.totalorder %s56, %s57
      %p68 = scmp.eq.s32.totalorder %s22, 0
      %p69 = por %p67, %p68
      %p70 = scmp.ne.s32.totalorder %s56, %s57
      %p71 = scmp.eq.s32.totalorder %s23, 1
      %p72 = por %p70, %p71
      %p74 = scmp.ne.s32.totalorder %s57, %s73
      %p75 = scmp.eq.s32.totalorder %s23, 0
      %p76 = por %p74, %p75
      %s78 = sadd.s32 %s77, 1
      %p81 = scmp.eq.s32.totalorder %s17, 1
      %p82 = scmp.ne.s32.totalorder %s77, %s79
      %p83 = scmp.eq.s32.totalorder %s17, 0
      %p84 = por %p82, %p83
      %p85 = scmp.ne.s32.totalorder %s77, %s79
      %p86 = scmp.eq.s32.totalorder %s22, 1
      %p87 = por %p85, %p86
      %p88 = scmp.ne.s32.totalorder %s79, %s80
      %p89 = scmp.eq.s32.totalorder %s22, 0
      %p90 = por %p88, %p89
      %p91 = scmp.ne.s32.totalorder %s79, %s80
      %p92 = scmp.eq.s32.totalorder %s23, 1
      %p93 = por %p91, %p92
      %p95 = scmp.ne.s32.totalorder %s80, %s94
      %p96 = scmp.eq.s32.totalorder %s23, 0
      %p97 = por %p95, %p96
      %s99 = sadd.s32 %s98, 1
      %p102 = scmp.eq.s32.totalorder %s17, 1
      %p103 = scmp.ne.s32.totalorder %s98, %s100
      %p104 = scmp.eq.s32.totalorder %s17, 0
      %p105 = por %p103, %p104
      %p106 = scmp.ne.s32.totalorder %s98, %s100
      %p107 = scmp.eq.s32.totalorder %s22, 1
      %p108 = por %p106, %p107
      %p109 = scmp.ne.s32.totalorder %s100, %s101
      %p110 = scmp.eq.s32.totalorder %s22, 0
      %p111 = por %p109, %p110
      %p112 = scmp.ne.s32.totalorder %s100, %s101
      %p113 = scmp.eq.s32.totalorder %s23, 1
      %p114 = por %p112, %p113
      %p116 = scmp.ne.s32.totalorder %s101, %s115
      %p117 = scmp.eq.s32.totalorder %s23, 0
      %p118 = por %p116, %p117
      %s120 = sadd.s32 %s119, 1
      %p123 = scmp.eq.s32.totalorder %s17, 1
      %p124 = scmp.ne.s32.totalorder %s119, %s121
      %p125 = scmp.eq.s32.totalorder %s17, 0
      %p126 = por %p124, %p125
      %p127 = scmp.ne.s32.totalorder %s119, %s121
      %p128 = scmp.eq.s32.totalorder %s22, 1
      %p129 = por %p127, %p128
      %p130 = scmp.ne.s32.totalorder %s121, %s122
      %p131 = scmp.eq.s32.totalorder %s22, 0
      %p132 = por %p130, %p131
      %p133 = scmp.ne.s32.totalorder %s121, %s122
      %p134 = scmp.eq.s32.totalorder %s23, 1
      %p135 = por %p133, %p134
      %p137 = scmp.ne.s32.totalorder %s122, %s136
      %p138 = scmp.eq.s32.totalorder %s23, 0
      %p139 = por %p137, %p138
      %s141 = sadd.s32 %s140, 1
      %p144 = scmp.eq.s32.totalorder %s17, 1
      %p145 = scmp.ne.s32.totalorder %s140, %s142
      %p146 = scmp.eq.s32.totalorder %s17, 0
      %p147 = por %p145, %p146
      %p148 = scmp.ne.s32.totalorder %s140, %s142
      %p149 = scmp.eq.s32.totalorder %s22, 1
      %p150 = por %p148, %p149
      %p151 = scmp.ne.s32.totalorder %s142, %s143
      %p152 = scmp.eq.s32.totalorder %s22, 0
      %p153 = por %p151, %p152
      %p154 = scmp.ne.s32.totalorder %s142, %s143
      %p155 = scmp.eq.s32.totalorder %s23, 1
      %p156 = por %p154, %p155
      %p158 = scmp.ne.s32.totalorder %s143, %s157
      %p159 = scmp.eq.s32.totalorder %s23, 0
      %p160 = por %p158, %p159
      %s162 = sadd.s32 %s161, 1
      %p165 = scmp.eq.s32.totalorder %s17, 1
      %p166 = scmp.ne.s32.totalorder %s161, %s163
      %p167 = scmp.eq.s32.totalorder %s17, 0
      %p168 = por %p166, %p167
      %p169 = scmp.ne.s32.totalorder %s161, %s163
      %p170 = scmp.eq.s32.totalorder %s22, 1
      %p171 = por %p169, %p170
      %p172 = scmp.ne.s32.totalorder %s163, %s164
      %p173 = scmp.eq.s32.totalorder %s22, 0
      %p174 = por %p172, %p173
      %p175 = scmp.ne.s32.totalorder %s163, %s164
      %p176 = scmp.eq.s32.totalorder %s23, 1
      %p177 = por %p175, %p176
      %p179 = scmp.ne.s32.totalorder %s164, %s178
      %p180 = scmp.eq.s32.totalorder %s23, 0
      %p181 = por %p179, %p180
      %s183 = sadd.s32 %s182, 1
      %p186 = scmp.eq.s32.totalorder %s17, 1
      %p187 = scmp.ne.s32.totalorder %s182, %s184
      %p188 = scmp.eq.s32.totalorder %s17, 0
      %p189 = por %p187, %p188
      %p190 = scmp.ne.s32.totalorder %s182, %s184
      %p191 = scmp.eq.s32.totalorder %s22, 1
      %p192 = por %p190, %p191
      %p193 = scmp.ne.s32.totalorder %s184, %s185
      %p194 = scmp.eq.s32.totalorder %s22, 0
      %p195 = por %p193, %p194
      %p196 = scmp.ne.s32.totalorder %s184, %s185
      %p197 = scmp.eq.s32.totalorder %s23, 1
      %p198 = por %p196, %p197
      %p200 = scmp.ne.s32.totalorder %s185, %s199
      %p201 = scmp.eq.s32.totalorder %s23, 0
      %p202 = por %p200, %p201
      %s204 = sadd.s32 %s203, 1
      %p207 = scmp.eq.s32.totalorder %s17, 1
      %p208 = scmp.ne.s32.totalorder %s203, %s205
      %p209 = scmp.eq.s32.totalorder %s17, 0
      %p210 = por %p208, %p209
      %p211 = scmp.ne.s32.totalorder %s203, %s205
      %p212 = scmp.eq.s32.totalorder %s22, 1
      %p213 = por %p211, %p212
      %p214 = scmp.ne.s32.totalorder %s205, %s206
      %p215 = scmp.eq.s32.totalorder %s22, 0
      %p216 = por %p214, %p215
      %p217 = scmp.ne.s32.totalorder %s205, %s206
      %p218 = scmp.eq.s32.totalorder %s23, 1
      %p219 = por %p217, %p218
      %p221 = scmp.ne.s32.totalorder %s206, %s220
      %p222 = scmp.eq.s32.totalorder %s23, 0
      %p223 = por %p221, %p222
      %s225 = sadd.s32 %s224, 1
      %p228 = scmp.eq.s32.totalorder %s17, 1
      %p229 = scmp.ne.s32.totalorder %s224, %s226
      %p230 = scmp.eq.s32.totalorder %s17, 0
      %p231 = por %p229, %p230
      %p232 = scmp.ne.s32.totalorder %s224, %s226
      %p233 = scmp.eq.s32.totalorder %s22, 1
      %p234 = por %p232, %p233
      %p235 = scmp.ne.s32.totalorder %s226, %s227
      %p236 = scmp.eq.s32.totalorder %s22, 0
      %p237 = por %p235, %p236
      %p238 = scmp.ne.s32.totalorder %s226, %s227
      %p239 = scmp.eq.s32.totalorder %s23, 1
      %p240 = por %p238, %p239
      %p242 = scmp.ne.s32.totalorder %s227, %s241
      %p243 = scmp.eq.s32.totalorder %s23, 0
      %p244 = por %p242, %p243
      %s246 = sadd.s32 %s245, 1
      %p249 = scmp.eq.s32.totalorder %s17, 1
      %p250 = scmp.ne.s32.totalorder %s245, %s247
      %p251 = scmp.eq.s32.totalorder %s17, 0
      %p252 = por %p250, %p251
      %p253 = scmp.ne.s32.totalorder %s245, %s247
      %p254 = scmp.eq.s32.totalorder %s22, 1
      %p255 = por %p253, %p254
      %p256 = scmp.ne.s32.totalorder %s247, %s248
      %p257 = scmp.eq.s32.totalorder %s22, 0
      %p258 = por %p256, %p257
      %p259 = scmp.ne.s32.totalorder %s247, %s248
      %p260 = scmp.eq.s32.totalorder %s23, 1
      %p261 = por %p259, %p260
      %p263 = scmp.ne.s32.totalorder %s248, %s262
      %p264 = scmp.eq.s32.totalorder %s23, 0
      %p265 = por %p263, %p264
      %s266 = ssub.s32 %s17, %s24
      %p267 = scmp.eq.s32.totalorder %s266, 0
      %s269 = sadd.s32 %s268, 1
      %s270 = scalar_select %p267, %s268, %s269
      %p273 = pneg %p267
      %p274 = scmp.eq.s32.totalorder %s17, 1
      %p275 = por %p273, %p274
      %p276 = scmp.ne.s32.totalorder %s268, %s271
      %p277 = scmp.eq.s32.totalorder %s17, 0
      %p278 = por %p276, %p277
      %p279 = scmp.ne.s32.totalorder %s268, %s271
      %p280 = scmp.eq.s32.totalorder %s22, 1
      %p281 = por %p279, %p280
      %p282 = scmp.ne.s32.totalorder %s271, %s272
      %p283 = scmp.eq.s32.totalorder %s22, 0
      %p284 = por %p282, %p283
      %p285 = scmp.ne.s32.totalorder %s271, %s272
      %p286 = scmp.eq.s32.totalorder %s23, 1
      %p287 = por %p285, %p286
      %p289 = scmp.ne.s32.totalorder %s272, %s288
      %p290 = scmp.eq.s32.totalorder %s23, 0
      %p291 = por %p289, %p290
      %p292 = scmp.le.s32.totalorder 1, %s17
      %p293 = scmp.lt.s32.totalorder %s17, 3
      %p294 = pnand %p292, %p293
      %p295 = pneg %p294
      // Predicated region
      $region9: #{adapter_forward.1} parent=5 // pred_check
        _
      $region10: #{adapter_forward.1} parent=5 // pred_check_branch
        %297 = sbr.rel (%p294) target = $region12
      $region11: #{adapter_forward.1} parent=5 // pred_region
        %s298 = ssub.s32 %s17, 1
        // Predicated region
        $region13: #{adapter_forward.1} parent=11 // pred_check
          %p299 = pneg %p90
        $region14: #{adapter_forward.1} parent=11 // pred_check_branch
          %301 = sbr.rel (%p299) target = $region16
        $region15: #{adapter_forward.1} parent=11 // pred_region
          _
        $region16: #{adapter_forward.1} parent=11 // pred_fallthru
          _
        // Predicated region
        $region17: #{adapter_forward.1} parent=11 // pred_check
          %p302 = pneg %p111
        $region18: #{adapter_forward.1} parent=11 // pred_check_branch
          %304 = sbr.rel (%p302) target = $region20
        $region19: #{adapter_forward.1} parent=11 // pred_region
          _
        $region20: #{adapter_forward.1} parent=11 // pred_fallthru
          _
        // Predicated region
        $region21: #{adapter_forward.1} parent=11 // pred_check
          %p305 = pneg %p132
        $region22: #{adapter_forward.1} parent=11 // pred_check_branch
          %307 = sbr.rel (%p305) target = $region24
        $region23: #{adapter_forward.1} parent=11 // pred_region
          _
        $region24: #{adapter_forward.1} parent=11 // pred_fallthru
          _
        // Predicated region
        $region25: #{adapter_forward.1} parent=11 // pred_check
          %p308 = pneg %p153
        $region26: #{adapter_forward.1} parent=11 // pred_check_branch
          %310 = sbr.rel (%p308) target = $region28
        $region27: #{adapter_forward.1} parent=11 // pred_region
          _
        $region28: #{adapter_forward.1} parent=11 // pred_fallthru
          _
        // Predicated region
        $region29: #{adapter_forward.1} parent=11 // pred_check
          %p311 = pneg %p174
        $region30: #{adapter_forward.1} parent=11 // pred_check_branch
          %313 = sbr.rel (%p311) target = $region32
        $region31: #{adapter_forward.1} parent=11 // pred_region
          _
        $region32: #{adapter_forward.1} parent=11 // pred_fallthru
          _
        // Predicated region
        $region33: #{adapter_forward.1} parent=11 // pred_check
          %p314 = pneg %p195
        $region34: #{adapter_forward.1} parent=11 // pred_check_branch
          %316 = sbr.rel (%p314) target = $region36
        $region35: #{adapter_forward.1} parent=11 // pred_region
          _
        $region36: #{adapter_forward.1} parent=11 // pred_fallthru
          _
        // Predicated region
        $region37: #{adapter_forward.1} parent=11 // pred_check
          %p317 = pneg %p216
        $region38: #{adapter_forward.1} parent=11 // pred_check_branch
          %319 = sbr.rel (%p317) target = $region40
        $region39: #{adapter_forward.1} parent=11 // pred_region
          _
        $region40: #{adapter_forward.1} parent=11 // pred_fallthru
          _
        // Predicated region
        $region41: #{adapter_forward.1} parent=11 // pred_check
          %p320 = pneg %p237
        $region42: #{adapter_forward.1} parent=11 // pred_check_branch
          %322 = sbr.rel (%p320) target = $region44
        $region43: #{adapter_forward.1} parent=11 // pred_region
          _
        $region44: #{adapter_forward.1} parent=11 // pred_fallthru
          _
        // Predicated region
        $region45: #{adapter_forward.1} parent=11 // pred_check
          %p323 = pneg %p258
        $region46: #{adapter_forward.1} parent=11 // pred_check_branch
          %325 = sbr.rel (%p323) target = $region48
        $region47: #{adapter_forward.1} parent=11 // pred_region
          _
        $region48: #{adapter_forward.1} parent=11 // pred_fallthru
          _
      $region12: #{adapter_forward.1} parent=5 // pred_fallthru
        _
      %p326 = scmp.lt.s32.totalorder %s17, 2
      // Predicated region
      $region49: #{adapter_forward.1} parent=5 // pred_check
        %p327 = pneg %p326
      $region50: #{adapter_forward.1} parent=5 // pred_check_branch
        %329 = sbr.rel (%p327) target = $region52
      $region51: #{adapter_forward.1} parent=5 // pred_region
        // Predicated region
        $region53: #{adapter_forward.1} parent=51 // pred_check
          %p330 = pneg %p37
        $region54: #{adapter_forward.1} parent=51 // pred_check_branch
          %332 = sbr.rel (%p330) target = $region56
        $region55: #{adapter_forward.1} parent=51 // pred_region
          %s333 = smul.u32 32, %s17
          %p334 = scmp.lt.s32.totalorder %s333, 63
          %s335 = scalar_select %p334, %s333, 63
          %s336 = smul.addr %s335, 6
          %s337 = smul.addr %s336, 4
          %s338 = scalar_lea.vmem %s0, %s337
          %s339 = smul.u32 32, %s17
        $region56: #{adapter_forward.1} parent=51 // pred_fallthru
          _
        // Predicated region
        $region57: #{adapter_forward.1} parent=51 // pred_check
          %p340 = pneg %p63
        $region58: #{adapter_forward.1} parent=51 // pred_check_branch
          %342 = sbr.rel (%p340) target = $region60
        $region59: #{adapter_forward.1} parent=51 // pred_region
          %s343 = smul.u32 32, %s17
          %p344 = scmp.lt.s32.totalorder %s343, 63
          %s345 = scalar_select %p344, %s343, 63
          %s346 = smul.addr %s345, 8
          %s347 = scalar_lea.vmem %s1, %s346
          %s348 = smul.u32 32, %s17
        $region60: #{adapter_forward.1} parent=51 // pred_fallthru
          _
      $region52: #{adapter_forward.1} parent=5 // pred_fallthru
        _
      %p349 = scmp.le.s32.totalorder 1, %s17
      %p350 = scmp.lt.s32.totalorder %s17, 3
      %p351 = pnand %p349, %p350
      %p352 = pneg %p351
      // Predicated region
      $region61: #{adapter_forward.1} parent=5 // pred_check
        _
      $region62: #{adapter_forward.1} parent=5 // pred_check_branch
        %354 = sbr.rel (%p351) target = $region64
      $region63: #{adapter_forward.1} parent=5 // pred_region
        %s355 = ssub.s32 %s17, 1
        %s356 = smul.u32 32, %s22
        %p357 = scmp.lt.s32.totalorder %s356, 63
        %s358 = scalar_select %p357, %s356, 63
        %s359 = smul.addr %s358, 6
        %s360 = smul.addr %s359, 4
        %s361 = scalar_lea.vmem %s0, %s360
        %p362 = pneg %p43
        %p363 = pneg %p40
        %s364 = smul.u32 32, %s22
        %p365 = scmp.lt.s32.totalorder %s364, 63
        %s366 = scalar_select %p365, %s364, 63
        %s367 = smul.addr %s366, 8
        %s368 = scalar_lea.vmem %s1, %s367
        %p369 = pneg %p69
        %p370 = pneg %p66
        %p371 = pneg %p90
        %p372 = pneg %p87
        %p373 = pneg %p111
        %p374 = pneg %p108
        %p375 = pneg %p132
        %p376 = pneg %p129
        %p377 = pneg %p153
        %p378 = pneg %p150
        %p379 = pneg %p174
        %p380 = pneg %p171
        %p381 = pneg %p195
        %p382 = pneg %p192
        %p383 = pneg %p216
        %p384 = pneg %p213
        %p385 = pneg %p237
        %p386 = pneg %p234
        %p387 = pneg %p258
        %p388 = pneg %p255
        %p389 = pneg %p284
        %p390 = pneg %p281
        %s391 = sand.u32 %s271, 1
        %s392 = sand.u32 %s271, 1
        %s393 = smul.addr %s392, 32
        %s394 = scalar_lea.vmem [#allocation2], %s393
        %s395 = smul.u32 32, %s22
        %p396 = scmp.lt.s32.totalorder %s395, 63
        %s397 = scalar_select %p396, %s395, 63
        %s398 = smul.addr %s397, 6
        %s399 = smul.addr %s398, 4
        %s400 = scalar_lea.vmem %s0, %s399
        %s401 = smul.u32 32, %s22
        %s402 = smul.u32 32, %s22
        %p403 = scmp.lt.s32.totalorder %s402, 63
        %s404 = scalar_select %p403, %s402, 63
        %s405 = smul.addr %s404, 8
        %s406 = scalar_lea.vmem %s1, %s405
        %s407 = smul.u32 32, %s22
        %s408 = smul.u32 2, %s22
        %v410 = vld [vmem:[%s400] sm:$0xff]
        %v411 = vld [vmem:[%s400 + $0x8] sm:$0xff]
        %v412 = vld [vmem:[%s400 + $0x10] sm:$0xff]
        %v413 = vld [vmem:[%s400 + $0x18] sm:$0xff]
        %v414 = vld [vmem:[%s400 + $0x20] sm:$0xff]
        %v415 = vld [vmem:[%s400 + $0x28] sm:$0xff]
        %v416 = vld [vmem:[%s400 + $0x30] sm:$0xff]
        %v417 = vld [vmem:[%s400 + $0x38] sm:$0xff]
        %v418 = vld [vmem:[%s400 + $0x40] sm:$0xff]
        %v419 = vld [vmem:[%s400 + $0x48] sm:$0xff]
        %v420 = vld [vmem:[%s400 + $0x50] sm:$0xff]
        %v421 = vld [vmem:[%s400 + $0x58] sm:$0xff]
        %v422 = vld [vmem:[%s400 + $0x60] sm:$0xff]
        %v423 = vld [vmem:[%s400 + $0x68] sm:$0xff]
        %v424 = vld [vmem:[%s400 + $0x70] sm:$0xff]
        %v425 = vld [vmem:[%s400 + $0x78] sm:$0xff]
        %v426 = vld [vmem:[%s400 + $0x80] sm:$0xff]
        %v427 = vld [vmem:[%s400 + $0x88] sm:$0xff]
        %v428 = vld [vmem:[%s400 + $0x90] sm:$0xff]
        %v429 = vld [vmem:[%s400 + $0x98] sm:$0xff]
        %v430 = vld [vmem:[%s400 + $0xa0] sm:$0xff]
        %v431 = vld [vmem:[%s400 + $0xa8] sm:$0xff]
        %v432 = vld [vmem:[%s400 + $0xb0] sm:$0xff]
        %v433 = vld [vmem:[%s400 + $0xb8] sm:$0xff]
        %v434 = vld [vmem:[%s400 + $0xc0] sm:$0xff]
        %v435 = vld [vmem:[%s400 + $0xc8] sm:$0xff]
        %v436 = vld [vmem:[%s400 + $0xd0] sm:$0xff]
        %v437 = vld [vmem:[%s400 + $0xd8] sm:$0xff]
        %v438 = vld [vmem:[%s400 + $0xe0] sm:$0xff]
        %v439 = vld [vmem:[%s400 + $0xe8] sm:$0xff]
        %v440 = vld [vmem:[%s400 + $0xf0] sm:$0xff]
        %v441 = vld [vmem:[%s400 + $0xf8] sm:$0xff]
        %v442 = vld [vmem:[%s400 + $0x100] sm:$0xff]
        %v443 = vld [vmem:[%s400 + $0x108] sm:$0xff]
        %v444 = vld [vmem:[%s400 + $0x110] sm:$0xff]
        %v445 = vld [vmem:[%s400 + $0x118] sm:$0xff]
        %v446 = vld [vmem:[%s400 + $0x120] sm:$0xff]
        %v447 = vld [vmem:[%s400 + $0x128] sm:$0xff]
        %v448 = vld [vmem:[%s400 + $0x130] sm:$0xff]
        %v449 = vld [vmem:[%s400 + $0x138] sm:$0xff]
        %v450 = vld [vmem:[%s400 + $0x140] sm:$0xff]
        %v451 = vld [vmem:[%s400 + $0x148] sm:$0xff]
        %v452 = vld [vmem:[%s400 + $0x150] sm:$0xff]
        %v453 = vld [vmem:[%s400 + $0x158] sm:$0xff]
        %v454 = vld [vmem:[%s400 + $0x160] sm:$0xff]
        %v455 = vld [vmem:[%s400 + $0x168] sm:$0xff]
        %v456 = vld [vmem:[%s400 + $0x170] sm:$0xff]
        %v457 = vld [vmem:[%s400 + $0x178] sm:$0xff]
        %v458 = vld [vmem:[%s400 + $0x180] sm:$0xff]
        %v459 = vld [vmem:[%s400 + $0x188] sm:$0xff]
        %v460 = vld [vmem:[%s400 + $0x190] sm:$0xff]
        %v461 = vld [vmem:[%s400 + $0x198] sm:$0xff]
        %v462 = vld [vmem:[%s400 + $0x1a0] sm:$0xff]
        %v463 = vld [vmem:[%s400 + $0x1a8] sm:$0xff]
        %v464 = vld [vmem:[%s400 + $0x1b0] sm:$0xff]
        %v465 = vld [vmem:[%s400 + $0x1b8] sm:$0xff]
        %v466 = vld [vmem:[%s400 + $0x1c0] sm:$0xff]
        %v467 = vld [vmem:[%s400 + $0x1c8] sm:$0xff]
        %v468 = vld [vmem:[%s400 + $0x1d0] sm:$0xff]
        %v469 = vld [vmem:[%s400 + $0x1d8] sm:$0xff]
        %v470 = vld [vmem:[%s400 + $0x1e0] sm:$0xff]
        %v471 = vld [vmem:[%s400 + $0x1e8] sm:$0xff]
        %v472 = vld [vmem:[%s400 + $0x1f0] sm:$0xff]
        %v473 = vld [vmem:[%s400 + $0x1f8] sm:$0xff]
        %v474 = vld [vmem:[%s400 + $0x200] sm:$0xff]
        %v475 = vld [vmem:[%s400 + $0x208] sm:$0xff]
        %v476 = vld [vmem:[%s400 + $0x210] sm:$0xff]
        %v477 = vld [vmem:[%s400 + $0x218] sm:$0xff]
        %v478 = vld [vmem:[%s400 + $0x220] sm:$0xff]
        %v479 = vld [vmem:[%s400 + $0x228] sm:$0xff]
        %v480 = vld [vmem:[%s400 + $0x230] sm:$0xff]
        %v481 = vld [vmem:[%s400 + $0x238] sm:$0xff]
        %v482 = vld [vmem:[%s400 + $0x240] sm:$0xff]
        %v483 = vld [vmem:[%s400 + $0x248] sm:$0xff]
        %v484 = vld [vmem:[%s400 + $0x250] sm:$0xff]
        %v485 = vld [vmem:[%s400 + $0x258] sm:$0xff]
        %v486 = vld [vmem:[%s400 + $0x260] sm:$0xff]
        %v487 = vld [vmem:[%s400 + $0x268] sm:$0xff]
        %v488 = vld [vmem:[%s400 + $0x270] sm:$0xff]
        %v489 = vld [vmem:[%s400 + $0x278] sm:$0xff]
        %v490 = vld [vmem:[%s400 + $0x280] sm:$0xff]
        %v491 = vld [vmem:[%s400 + $0x288] sm:$0xff]
        %v492 = vld [vmem:[%s400 + $0x290] sm:$0xff]
        %v493 = vld [vmem:[%s400 + $0x298] sm:$0xff]
        %v494 = vld [vmem:[%s400 + $0x2a0] sm:$0xff]
        %v495 = vld [vmem:[%s400 + $0x2a8] sm:$0xff]
        %v496 = vld [vmem:[%s400 + $0x2b0] sm:$0xff]
        %v497 = vld [vmem:[%s400 + $0x2b8] sm:$0xff]
        %v498 = vld [vmem:[%s400 + $0x2c0] sm:$0xff]
        %v499 = vld [vmem:[%s400 + $0x2c8] sm:$0xff]
        %v500 = vld [vmem:[%s400 + $0x2d0] sm:$0xff]
        %v501 = vld [vmem:[%s400 + $0x2d8] sm:$0xff]
        %v502 = vld [vmem:[%s400 + $0x2e0] sm:$0xff]
        %v503 = vld [vmem:[%s400 + $0x2e8] sm:$0xff]
        %v504 = vld [vmem:[%s400 + $0x2f0] sm:$0xff]
        %v505 = vld [vmem:[%s400 + $0x2f8] sm:$0xff]
        %v506 = vld [vmem:[%s2] sm:$0xf]
        %v507 = vld [vmem:[%s2 + $0x4] sm:$0xf]
        %v508 = vld [vmem:[%s2 + $0x8] sm:$0xf]
        %v509 = vld [vmem:[%s2 + $0xc] sm:$0xf]
        %v510 = vld [vmem:[%s2 + $0x10] sm:$0xf]
        %v511 = vld [vmem:[%s2 + $0x14] sm:$0xf]
        %v512 = vld [vmem:[%s2 + $0x18] sm:$0xf]
        %v513 = vld [vmem:[%s2 + $0x1c] sm:$0xf]
        %v514 = vld [vmem:[%s2 + $0x20] sm:$0xf]
        %v515 = vld [vmem:[%s2 + $0x24] sm:$0xf]
        %v516 = vld [vmem:[%s2 + $0x28] sm:$0xf]
        %v517 = vld [vmem:[%s2 + $0x2c] sm:$0xf]
        %v518 = vld [vmem:[%s2 + $0x30] sm:$0xf]
        %v519 = vld [vmem:[%s2 + $0x34] sm:$0xf]
        %v520 = vld [vmem:[%s2 + $0x38] sm:$0xf]
        %v521 = vld [vmem:[%s2 + $0x3c] sm:$0xf]
        %v522 = vld [vmem:[%s2 + $0x40] sm:$0xf]
        %v523 = vld [vmem:[%s2 + $0x44] sm:$0xf]
        %v524 = vld [vmem:[%s2 + $0x48] sm:$0xf]
        %v525 = vld [vmem:[%s2 + $0x4c] sm:$0xf]
        %v526 = vld [vmem:[%s2 + $0x50] sm:$0xf]
        %v527 = vld [vmem:[%s2 + $0x54] sm:$0xf]
        %v528 = vld [vmem:[%s2 + $0x58] sm:$0xf]
        %v529 = vld [vmem:[%s2 + $0x5c] sm:$0xf]
        %v530 = vld [vmem:[%s2 + $0x60] sm:$0xf]
        %v531 = vld [vmem:[%s2 + $0x64] sm:$0xf]
        %v532 = vld [vmem:[%s2 + $0x68] sm:$0xf]
        %v533 = vld [vmem:[%s2 + $0x6c] sm:$0xf]
        %v534 = vld [vmem:[%s2 + $0x70] sm:$0xf]
        %v535 = vld [vmem:[%s2 + $0x74] sm:$0xf]
        %v536 = vld [vmem:[%s2 + $0x78] sm:$0xf]
        %v537 = vld [vmem:[%s2 + $0x7c] sm:$0xf]
        %v538 = vld [vmem:[%s2 + $0x80] sm:$0xf]
        %v539 = vld [vmem:[%s2 + $0x84] sm:$0xf]
        %v540 = vld [vmem:[%s2 + $0x88] sm:$0xf]
        %v541 = vld [vmem:[%s2 + $0x8c] sm:$0xf]
        %v542 = vld [vmem:[%s2 + $0x90] sm:$0xf]
        %v543 = vld [vmem:[%s2 + $0x94] sm:$0xf]
        %v544 = vld [vmem:[%s2 + $0x98] sm:$0xf]
        %v545 = vld [vmem:[%s2 + $0x9c] sm:$0xf]
        %v546 = vld [vmem:[%s2 + $0xa0] sm:$0xf]
        %v547 = vld [vmem:[%s2 + $0xa4] sm:$0xf]
        %v548 = vld [vmem:[%s2 + $0xa8] sm:$0xf]
        %v549 = vld [vmem:[%s2 + $0xac] sm:$0xf]
        %v550 = vld [vmem:[%s2 + $0xb0] sm:$0xf]
        %v551 = vld [vmem:[%s2 + $0xb4] sm:$0xf]
        %v552 = vld [vmem:[%s2 + $0xb8] sm:$0xf]
        %v553 = vld [vmem:[%s2 + $0xbc] sm:$0xf]
        %v554 = vld [vmem:[%s2 + $0xc0] sm:$0xf]
        %v555 = vld [vmem:[%s2 + $0xc4] sm:$0xf]
        %v556 = vld [vmem:[%s2 + $0xc8] sm:$0xf]
        %v557 = vld [vmem:[%s2 + $0xcc] sm:$0xf]
        %v558 = vld [vmem:[%s2 + $0xd0] sm:$0xf]
        %v559 = vld [vmem:[%s2 + $0xd4] sm:$0xf]
        %v560 = vld [vmem:[%s2 + $0xd8] sm:$0xf]
        %v561 = vld [vmem:[%s2 + $0xdc] sm:$0xf]
        %v562 = vld [vmem:[%s2 + $0xe0] sm:$0xf]
        %v563 = vld [vmem:[%s2 + $0xe4] sm:$0xf]
        %v564 = vld [vmem:[%s2 + $0xe8] sm:$0xf]
        %v565 = vld [vmem:[%s2 + $0xec] sm:$0xf]
        %v566 = vld [vmem:[%s2 + $0xf0] sm:$0xf]
        %v567 = vld [vmem:[%s2 + $0xf4] sm:$0xf]
        %v568 = vld [vmem:[%s2 + $0xf8] sm:$0xf]
        %v569 = vld [vmem:[%s2 + $0xfc] sm:$0xf]
        %v570 = vld [vmem:[%s2 + $0x100] sm:$0xf]
        %v571 = vld [vmem:[%s2 + $0x104] sm:$0xf]
        %v572 = vld [vmem:[%s2 + $0x108] sm:$0xf]
        %v573 = vld [vmem:[%s2 + $0x10c] sm:$0xf]
        %v574 = vld [vmem:[%s2 + $0x110] sm:$0xf]
        %v575 = vld [vmem:[%s2 + $0x114] sm:$0xf]
        %v576 = vld [vmem:[%s2 + $0x118] sm:$0xf]
        %v577 = vld [vmem:[%s2 + $0x11c] sm:$0xf]
        %v578 = vld [vmem:[%s2 + $0x120] sm:$0xf]
        %v579 = vld [vmem:[%s2 + $0x124] sm:$0xf]
        %v580 = vld [vmem:[%s2 + $0x128] sm:$0xf]
        %v581 = vld [vmem:[%s2 + $0x12c] sm:$0xf]
        %v582 = vld [vmem:[%s2 + $0x130] sm:$0xf]
        %v583 = vld [vmem:[%s2 + $0x134] sm:$0xf]
        %v584 = vld [vmem:[%s2 + $0x138] sm:$0xf]
        %v585 = vld [vmem:[%s2 + $0x13c] sm:$0xf]
        %v586 = vld [vmem:[%s2 + $0x140] sm:$0xf]
        %v587 = vld [vmem:[%s2 + $0x144] sm:$0xf]
        %v588 = vld [vmem:[%s2 + $0x148] sm:$0xf]
        %v589 = vld [vmem:[%s2 + $0x14c] sm:$0xf]
        %v590 = vld [vmem:[%s2 + $0x150] sm:$0xf]
        %v591 = vld [vmem:[%s2 + $0x154] sm:$0xf]
        %v592 = vld [vmem:[%s2 + $0x158] sm:$0xf]
        %v593 = vld [vmem:[%s2 + $0x15c] sm:$0xf]
        %v594 = vld [vmem:[%s2 + $0x160] sm:$0xf]
        %v595 = vld [vmem:[%s2 + $0x164] sm:$0xf]
        %v596 = vld [vmem:[%s2 + $0x168] sm:$0xf]
        %v597 = vld [vmem:[%s2 + $0x16c] sm:$0xf]
        %v598 = vld [vmem:[%s2 + $0x170] sm:$0xf]
        %v599 = vld [vmem:[%s2 + $0x174] sm:$0xf]
        %v600 = vld [vmem:[%s2 + $0x178] sm:$0xf]
        %v601 = vld [vmem:[%s2 + $0x17c] sm:$0xf]
        %v602 = vld [vmem:[%s406] sm:$0xff]
        %v603 = vld [vmem:[%s406 + $0x8] sm:$0xff]
        %v604 = vld [vmem:[%s406 + $0x10] sm:$0xff]
        %v605 = vld [vmem:[%s406 + $0x18] sm:$0xff]
        %v606 = vld [vmem:[%s406 + $0x20] sm:$0xff]
        %v607 = vld [vmem:[%s406 + $0x28] sm:$0xff]
        %v608 = vld [vmem:[%s406 + $0x30] sm:$0xff]
        %v609 = vld [vmem:[%s406 + $0x38] sm:$0xff]
        %v610 = vld [vmem:[%s406 + $0x40] sm:$0xff]
        %v611 = vld [vmem:[%s406 + $0x48] sm:$0xff]
        %v612 = vld [vmem:[%s406 + $0x50] sm:$0xff]
        %v613 = vld [vmem:[%s406 + $0x58] sm:$0xff]
        %v614 = vld [vmem:[%s406 + $0x60] sm:$0xff]
        %v615 = vld [vmem:[%s406 + $0x68] sm:$0xff]
        %v616 = vld [vmem:[%s406 + $0x70] sm:$0xff]
        %v617 = vld [vmem:[%s406 + $0x78] sm:$0xff]
        %v618 = vld [vmem:[%s406 + $0x80] sm:$0xff]
        %v619 = vld [vmem:[%s406 + $0x88] sm:$0xff]
        %v620 = vld [vmem:[%s406 + $0x90] sm:$0xff]
        %v621 = vld [vmem:[%s406 + $0x98] sm:$0xff]
        %v622 = vld [vmem:[%s406 + $0xa0] sm:$0xff]
        %v623 = vld [vmem:[%s406 + $0xa8] sm:$0xff]
        %v624 = vld [vmem:[%s406 + $0xb0] sm:$0xff]
        %v625 = vld [vmem:[%s406 + $0xb8] sm:$0xff]
        %v626 = vld [vmem:[%s406 + $0xc0] sm:$0xff]
        %v627 = vld [vmem:[%s406 + $0xc8] sm:$0xff]
        %v628 = vld [vmem:[%s406 + $0xd0] sm:$0xff]
        %v629 = vld [vmem:[%s406 + $0xd8] sm:$0xff]
        %v630 = vld [vmem:[%s406 + $0xe0] sm:$0xff]
        %v631 = vld [vmem:[%s406 + $0xe8] sm:$0xff]
        %v632 = vld [vmem:[%s406 + $0xf0] sm:$0xff]
        %v633 = vld [vmem:[%s406 + $0xf8] sm:$0xff]
        %v730 = vunpack.c.l.b16 %v410
        %v731 = vunpack.c.h.b16 %v410
        %v732 = vunpack.c.l.b16 %v411
        %v733 = vunpack.c.h.b16 %v411
        %v734 = vunpack.c.l.b16 %v412
        %v735 = vunpack.c.h.b16 %v412
        %v736 = vunpack.c.l.b16 %v413
        %v737 = vunpack.c.h.b16 %v413
        %v738 = vunpack.c.l.b16 %v414
        %v739 = vunpack.c.h.b16 %v414
        %v740 = vunpack.c.l.b16 %v415
        %v741 = vunpack.c.h.b16 %v415
        %v742 = vunpack.c.l.b16 %v416
        %v743 = vunpack.c.h.b16 %v416
        %v744 = vunpack.c.l.b16 %v417
        %v745 = vunpack.c.h.b16 %v417
        %v746 = vunpack.c.l.b16 %v418
        %v747 = vunpack.c.h.b16 %v418
        %v748 = vunpack.c.l.b16 %v419
        %v749 = vunpack.c.h.b16 %v419
        %v750 = vunpack.c.l.b16 %v420
        %v751 = vunpack.c.h.b16 %v420
        %v752 = vunpack.c.l.b16 %v421
        %v753 = vunpack.c.h.b16 %v421
        %v754 = vunpack.c.l.b16 %v422
        %v755 = vunpack.c.h.b16 %v422
        %v756 = vunpack.c.l.b16 %v423
        %v757 = vunpack.c.h.b16 %v423
        %v758 = vunpack.c.l.b16 %v424
        %v759 = vunpack.c.h.b16 %v424
        %v760 = vunpack.c.l.b16 %v425
        %v761 = vunpack.c.h.b16 %v425
        %v762 = vunpack.c.l.b16 %v426
        %v763 = vunpack.c.h.b16 %v426
        %v764 = vunpack.c.l.b16 %v427
        %v765 = vunpack.c.h.b16 %v427
        %v766 = vunpack.c.l.b16 %v428
        %v767 = vunpack.c.h.b16 %v428
        %v768 = vunpack.c.l.b16 %v429
        %v769 = vunpack.c.h.b16 %v429
        %v770 = vunpack.c.l.b16 %v430
        %v771 = vunpack.c.h.b16 %v430
        %v772 = vunpack.c.l.b16 %v431
        %v773 = vunpack.c.h.b16 %v431
        %v774 = vunpack.c.l.b16 %v432
        %v775 = vunpack.c.h.b16 %v432
        %v776 = vunpack.c.l.b16 %v433
        %v777 = vunpack.c.h.b16 %v433
        %v778 = vunpack.c.l.b16 %v434
        %v779 = vunpack.c.h.b16 %v434
        %v780 = vunpack.c.l.b16 %v435
        %v781 = vunpack.c.h.b16 %v435
        %v782 = vunpack.c.l.b16 %v436
        %v783 = vunpack.c.h.b16 %v436
        %v784 = vunpack.c.l.b16 %v437
        %v785 = vunpack.c.h.b16 %v437
        %v786 = vunpack.c.l.b16 %v438
        %v787 = vunpack.c.h.b16 %v438
        %v788 = vunpack.c.l.b16 %v439
        %v789 = vunpack.c.h.b16 %v439
        %v790 = vunpack.c.l.b16 %v440
        %v791 = vunpack.c.h.b16 %v440
        %v792 = vunpack.c.l.b16 %v441
        %v793 = vunpack.c.h.b16 %v441
        %v794 = vunpack.c.l.b16 %v442
        %v795 = vunpack.c.h.b16 %v442
        %v796 = vunpack.c.l.b16 %v443
        %v797 = vunpack.c.h.b16 %v443
        %v798 = vunpack.c.l.b16 %v444
        %v799 = vunpack.c.h.b16 %v444
        %v800 = vunpack.c.l.b16 %v445
        %v801 = vunpack.c.h.b16 %v445
        %v802 = vunpack.c.l.b16 %v446
        %v803 = vunpack.c.h.b16 %v446
        %v804 = vunpack.c.l.b16 %v447
        %v805 = vunpack.c.h.b16 %v447
        %v806 = vunpack.c.l.b16 %v448
        %v807 = vunpack.c.h.b16 %v448
        %v808 = vunpack.c.l.b16 %v449
        %v809 = vunpack.c.h.b16 %v449
        %v810 = vunpack.c.l.b16 %v450
        %v811 = vunpack.c.h.b16 %v450
        %v812 = vunpack.c.l.b16 %v451
        %v813 = vunpack.c.h.b16 %v451
        %v814 = vunpack.c.l.b16 %v452
        %v815 = vunpack.c.h.b16 %v452
        %v816 = vunpack.c.l.b16 %v453
        %v817 = vunpack.c.h.b16 %v453
        %v818 = vunpack.c.l.b16 %v454
        %v819 = vunpack.c.h.b16 %v454
        %v820 = vunpack.c.l.b16 %v455
        %v821 = vunpack.c.h.b16 %v455
        %v822 = vunpack.c.l.b16 %v456
        %v823 = vunpack.c.h.b16 %v456
        %v824 = vunpack.c.l.b16 %v457
        %v825 = vunpack.c.h.b16 %v457
        %v826 = vunpack.c.l.b16 %v458
        %v827 = vunpack.c.h.b16 %v458
        %v828 = vunpack.c.l.b16 %v459
        %v829 = vunpack.c.h.b16 %v459
        %v830 = vunpack.c.l.b16 %v460
        %v831 = vunpack.c.h.b16 %v460
        %v832 = vunpack.c.l.b16 %v461
        %v833 = vunpack.c.h.b16 %v461
        %v834 = vunpack.c.l.b16 %v462
        %v835 = vunpack.c.h.b16 %v462
        %v836 = vunpack.c.l.b16 %v463
        %v837 = vunpack.c.h.b16 %v463
        %v838 = vunpack.c.l.b16 %v464
        %v839 = vunpack.c.h.b16 %v464
        %v840 = vunpack.c.l.b16 %v465
        %v841 = vunpack.c.h.b16 %v465
        %v842 = vunpack.c.l.b16 %v466
        %v843 = vunpack.c.h.b16 %v466
        %v844 = vunpack.c.l.b16 %v467
        %v845 = vunpack.c.h.b16 %v467
        %v846 = vunpack.c.l.b16 %v468
        %v847 = vunpack.c.h.b16 %v468
        %v848 = vunpack.c.l.b16 %v469
        %v849 = vunpack.c.h.b16 %v469
        %v850 = vunpack.c.l.b16 %v470
        %v851 = vunpack.c.h.b16 %v470
        %v852 = vunpack.c.l.b16 %v471
        %v853 = vunpack.c.h.b16 %v471
        %v854 = vunpack.c.l.b16 %v472
        %v855 = vunpack.c.h.b16 %v472
        %v856 = vunpack.c.l.b16 %v473
        %v857 = vunpack.c.h.b16 %v473
        %v858 = vunpack.c.l.b16 %v474
        %v859 = vunpack.c.h.b16 %v474
        %v860 = vunpack.c.l.b16 %v475
        %v861 = vunpack.c.h.b16 %v475
        %v862 = vunpack.c.l.b16 %v476
        %v863 = vunpack.c.h.b16 %v476
        %v864 = vunpack.c.l.b16 %v477
        %v865 = vunpack.c.h.b16 %v477
        %v866 = vunpack.c.l.b16 %v478
        %v867 = vunpack.c.h.b16 %v478
        %v868 = vunpack.c.l.b16 %v479
        %v869 = vunpack.c.h.b16 %v479
        %v870 = vunpack.c.l.b16 %v480
        %v871 = vunpack.c.h.b16 %v480
        %v872 = vunpack.c.l.b16 %v481
        %v873 = vunpack.c.h.b16 %v481
        %v874 = vunpack.c.l.b16 %v482
        %v875 = vunpack.c.h.b16 %v482
        %v876 = vunpack.c.l.b16 %v483
        %v877 = vunpack.c.h.b16 %v483
        %v878 = vunpack.c.l.b16 %v484
        %v879 = vunpack.c.h.b16 %v484
        %v880 = vunpack.c.l.b16 %v485
        %v881 = vunpack.c.h.b16 %v485
        %v882 = vunpack.c.l.b16 %v486
        %v883 = vunpack.c.h.b16 %v486
        %v884 = vunpack.c.l.b16 %v487
        %v885 = vunpack.c.h.b16 %v487
        %v886 = vunpack.c.l.b16 %v488
        %v887 = vunpack.c.h.b16 %v488
        %v888 = vunpack.c.l.b16 %v489
        %v889 = vunpack.c.h.b16 %v489
        %v890 = vunpack.c.l.b16 %v490
        %v891 = vunpack.c.h.b16 %v490
        %v892 = vunpack.c.l.b16 %v491
        %v893 = vunpack.c.h.b16 %v491
        %v894 = vunpack.c.l.b16 %v492
        %v895 = vunpack.c.h.b16 %v492
        %v896 = vunpack.c.l.b16 %v493
        %v897 = vunpack.c.h.b16 %v493
        %v898 = vunpack.c.l.b16 %v494
        %v899 = vunpack.c.h.b16 %v494
        %v900 = vunpack.c.l.b16 %v495
        %v901 = vunpack.c.h.b16 %v495
        %v902 = vunpack.c.l.b16 %v496
        %v903 = vunpack.c.h.b16 %v496
        %v904 = vunpack.c.l.b16 %v497
        %v905 = vunpack.c.h.b16 %v497
        %v906 = vunpack.c.l.b16 %v498
        %v907 = vunpack.c.h.b16 %v498
        %v908 = vunpack.c.l.b16 %v499
        %v909 = vunpack.c.h.b16 %v499
        %v910 = vunpack.c.l.b16 %v500
        %v911 = vunpack.c.h.b16 %v500
        %v912 = vunpack.c.l.b16 %v501
        %v913 = vunpack.c.h.b16 %v501
        %v914 = vunpack.c.l.b16 %v502
        %v915 = vunpack.c.h.b16 %v502
        %v916 = vunpack.c.l.b16 %v503
        %v917 = vunpack.c.h.b16 %v503
        %v918 = vunpack.c.l.b16 %v504
        %v919 = vunpack.c.h.b16 %v504
        %v920 = vunpack.c.l.b16 %v505
        %v921 = vunpack.c.h.b16 %v505
        %v922 = vpack.c.b16 %v736, %v730
        %v923 = vpack.c.b16 %v737, %v731
        %v924 = vpack.c.b16 %v738, %v732
        %v925 = vpack.c.b16 %v739, %v733
        %v926 = vpack.c.b16 %v740, %v734
        %v927 = vpack.c.b16 %v741, %v735
        %v928 = vpack.c.b16 %v748, %v742
        %v929 = vpack.c.b16 %v749, %v743
        %v930 = vpack.c.b16 %v750, %v744
        %v931 = vpack.c.b16 %v751, %v745
        %v932 = vpack.c.b16 %v752, %v746
        %v933 = vpack.c.b16 %v753, %v747
        %v934 = vpack.c.b16 %v760, %v754
        %v935 = vpack.c.b16 %v761, %v755
        %v936 = vpack.c.b16 %v762, %v756
        %v937 = vpack.c.b16 %v763, %v757
        %v938 = vpack.c.b16 %v764, %v758
        %v939 = vpack.c.b16 %v765, %v759
        %v940 = vpack.c.b16 %v772, %v766
        %v941 = vpack.c.b16 %v773, %v767
        %v942 = vpack.c.b16 %v774, %v768
        %v943 = vpack.c.b16 %v775, %v769
        %v944 = vpack.c.b16 %v776, %v770
        %v945 = vpack.c.b16 %v777, %v771
        %v946 = vpack.c.b16 %v784, %v778
        %v947 = vpack.c.b16 %v785, %v779
        %v948 = vpack.c.b16 %v786, %v780
        %v949 = vpack.c.b16 %v787, %v781
        %v950 = vpack.c.b16 %v788, %v782
        %v951 = vpack.c.b16 %v789, %v783
        %v952 = vpack.c.b16 %v796, %v790
        %v953 = vpack.c.b16 %v797, %v791
        %v954 = vpack.c.b16 %v798, %v792
        %v955 = vpack.c.b16 %v799, %v793
        %v956 = vpack.c.b16 %v800, %v794
        %v957 = vpack.c.b16 %v801, %v795
        %v958 = vpack.c.b16 %v808, %v802
        %v959 = vpack.c.b16 %v809, %v803
        %v960 = vpack.c.b16 %v810, %v804
        %v961 = vpack.c.b16 %v811, %v805
        %v962 = vpack.c.b16 %v812, %v806
        %v963 = vpack.c.b16 %v813, %v807
        %v964 = vpack.c.b16 %v820, %v814
        %v965 = vpack.c.b16 %v821, %v815
        %v966 = vpack.c.b16 %v822, %v816
        %v967 = vpack.c.b16 %v823, %v817
        %v968 = vpack.c.b16 %v824, %v818
        %v969 = vpack.c.b16 %v825, %v819
        %v970 = vpack.c.b16 %v832, %v826
        %v971 = vpack.c.b16 %v833, %v827
        %v972 = vpack.c.b16 %v834, %v828
        %v973 = vpack.c.b16 %v835, %v829
        %v974 = vpack.c.b16 %v836, %v830
        %v975 = vpack.c.b16 %v837, %v831
        %v976 = vpack.c.b16 %v844, %v838
        %v977 = vpack.c.b16 %v845, %v839
        %v978 = vpack.c.b16 %v846, %v840
        %v979 = vpack.c.b16 %v847, %v841
        %v980 = vpack.c.b16 %v848, %v842
        %v981 = vpack.c.b16 %v849, %v843
        %v982 = vpack.c.b16 %v856, %v850
        %v983 = vpack.c.b16 %v857, %v851
        %v984 = vpack.c.b16 %v858, %v852
        %v985 = vpack.c.b16 %v859, %v853
        %v986 = vpack.c.b16 %v860, %v854
        %v987 = vpack.c.b16 %v861, %v855
        %v988 = vpack.c.b16 %v868, %v862
        %v989 = vpack.c.b16 %v869, %v863
        %v990 = vpack.c.b16 %v870, %v864
        %v991 = vpack.c.b16 %v871, %v865
        %v992 = vpack.c.b16 %v872, %v866
        %v993 = vpack.c.b16 %v873, %v867
        %v994 = vpack.c.b16 %v880, %v874
        %v995 = vpack.c.b16 %v881, %v875
        %v996 = vpack.c.b16 %v882, %v876
        %v997 = vpack.c.b16 %v883, %v877
        %v998 = vpack.c.b16 %v884, %v878
        %v999 = vpack.c.b16 %v885, %v879
        %v1000 = vpack.c.b16 %v892, %v886
        %v1001 = vpack.c.b16 %v893, %v887
        %v1002 = vpack.c.b16 %v894, %v888
        %v1003 = vpack.c.b16 %v895, %v889
        %v1004 = vpack.c.b16 %v896, %v890
        %v1005 = vpack.c.b16 %v897, %v891
        %v1006 = vpack.c.b16 %v904, %v898
        %v1007 = vpack.c.b16 %v905, %v899
        %v1008 = vpack.c.b16 %v906, %v900
        %v1009 = vpack.c.b16 %v907, %v901
        %v1010 = vpack.c.b16 %v908, %v902
        %v1011 = vpack.c.b16 %v909, %v903
        %v1012 = vpack.c.b16 %v916, %v910
        %v1013 = vpack.c.b16 %v917, %v911
        %v1014 = vpack.c.b16 %v918, %v912
        %v1015 = vpack.c.b16 %v919, %v913
        %v1016 = vpack.c.b16 %v920, %v914
        %v1017 = vpack.c.b16 %v921, %v915
        %v1210 = vunpack.c.l.b16 %v506
        %v1211 = vunpack.c.l.b16 %v507
        %v1212 = vunpack.c.l.b16 %v508
        %v1213 = vunpack.c.l.b16 %v509
        %v1214 = vunpack.c.l.b16 %v510
        %v1215 = vunpack.c.l.b16 %v511
        %v1216 = vunpack.c.l.b16 %v512
        %v1217 = vunpack.c.l.b16 %v513
        %v1218 = vunpack.c.l.b16 %v514
        %v1219 = vunpack.c.l.b16 %v515
        %v1220 = vunpack.c.l.b16 %v516
        %v1221 = vunpack.c.l.b16 %v517
        %v1222 = vunpack.c.l.b16 %v518
        %v1223 = vunpack.c.l.b16 %v519
        %v1224 = vunpack.c.l.b16 %v520
        %v1225 = vunpack.c.l.b16 %v521
        %v1226 = vunpack.c.l.b16 %v522
        %v1227 = vunpack.c.l.b16 %v523
        %v1228 = vunpack.c.l.b16 %v524
        %v1229 = vunpack.c.l.b16 %v525
        %v1230 = vunpack.c.l.b16 %v526
        %v1231 = vunpack.c.l.b16 %v527
        %v1232 = vunpack.c.l.b16 %v528
        %v1233 = vunpack.c.l.b16 %v529
        %v1234 = vunpack.c.l.b16 %v530
        %v1235 = vunpack.c.l.b16 %v531
        %v1236 = vunpack.c.l.b16 %v532
        %v1237 = vunpack.c.l.b16 %v533
        %v1238 = vunpack.c.l.b16 %v534
        %v1239 = vunpack.c.l.b16 %v535
        %v1240 = vunpack.c.l.b16 %v536
        %v1241 = vunpack.c.l.b16 %v537
        %v1242 = vunpack.c.l.b16 %v538
        %v1243 = vunpack.c.l.b16 %v539
        %v1244 = vunpack.c.l.b16 %v540
        %v1245 = vunpack.c.l.b16 %v541
        %v1246 = vunpack.c.l.b16 %v542
        %v1247 = vunpack.c.l.b16 %v543
        %v1248 = vunpack.c.l.b16 %v544
        %v1249 = vunpack.c.l.b16 %v545
        %v1250 = vunpack.c.l.b16 %v546
        %v1251 = vunpack.c.l.b16 %v547
        %v1252 = vunpack.c.l.b16 %v548
        %v1253 = vunpack.c.l.b16 %v549
        %v1254 = vunpack.c.l.b16 %v550
        %v1255 = vunpack.c.l.b16 %v551
        %v1256 = vunpack.c.l.b16 %v552
        %v1257 = vunpack.c.l.b16 %v553
        %v1258 = vunpack.c.l.b16 %v554
        %v1259 = vunpack.c.l.b16 %v555
        %v1260 = vunpack.c.l.b16 %v556
        %v1261 = vunpack.c.l.b16 %v557
        %v1262 = vunpack.c.l.b16 %v558
        %v1263 = vunpack.c.l.b16 %v559
        %v1264 = vunpack.c.l.b16 %v560
        %v1265 = vunpack.c.l.b16 %v561
        %v1266 = vunpack.c.l.b16 %v562
        %v1267 = vunpack.c.l.b16 %v563
        %v1268 = vunpack.c.l.b16 %v564
        %v1269 = vunpack.c.l.b16 %v565
        %v1270 = vunpack.c.l.b16 %v566
        %v1271 = vunpack.c.l.b16 %v567
        %v1272 = vunpack.c.l.b16 %v568
        %v1273 = vunpack.c.l.b16 %v569
        %v1274 = vunpack.c.l.b16 %v570
        %v1275 = vunpack.c.l.b16 %v571
        %v1276 = vunpack.c.l.b16 %v572
        %v1277 = vunpack.c.l.b16 %v573
        %v1278 = vunpack.c.l.b16 %v574
        %v1279 = vunpack.c.l.b16 %v575
        %v1280 = vunpack.c.l.b16 %v576
        %v1281 = vunpack.c.l.b16 %v577
        %v1282 = vunpack.c.l.b16 %v578
        %v1283 = vunpack.c.l.b16 %v579
        %v1284 = vunpack.c.l.b16 %v580
        %v1285 = vunpack.c.l.b16 %v581
        %v1286 = vunpack.c.l.b16 %v582
        %v1287 = vunpack.c.l.b16 %v583
        %v1288 = vunpack.c.l.b16 %v584
        %v1289 = vunpack.c.l.b16 %v585
        %v1290 = vunpack.c.l.b16 %v586
        %v1291 = vunpack.c.l.b16 %v587
        %v1292 = vunpack.c.l.b16 %v588
        %v1293 = vunpack.c.l.b16 %v589
        %v1294 = vunpack.c.l.b16 %v590
        %v1295 = vunpack.c.l.b16 %v591
        %v1296 = vunpack.c.l.b16 %v592
        %v1297 = vunpack.c.l.b16 %v593
        %v1298 = vunpack.c.l.b16 %v594
        %v1299 = vunpack.c.l.b16 %v595
        %v1300 = vunpack.c.l.b16 %v596
        %v1301 = vunpack.c.l.b16 %v597
        %v1302 = vunpack.c.l.b16 %v598
        %v1303 = vunpack.c.l.b16 %v599
        %v1304 = vunpack.c.l.b16 %v600
        %v1305 = vunpack.c.l.b16 %v601
        %v1306 = vpack.c.b16 %v1211, %v1210
        %v1307 = vpack.c.b16 %v1213, %v1212
        %v1308 = vpack.c.b16 %v1215, %v1214
        %v1309 = vpack.c.b16 %v1217, %v1216
        %v1310 = vpack.c.b16 %v1219, %v1218
        %v1311 = vpack.c.b16 %v1221, %v1220
        %v1312 = vpack.c.b16 %v1223, %v1222
        %v1313 = vpack.c.b16 %v1225, %v1224
        %v1314 = vpack.c.b16 %v1227, %v1226
        %v1315 = vpack.c.b16 %v1229, %v1228
        %v1316 = vpack.c.b16 %v1231, %v1230
        %v1317 = vpack.c.b16 %v1233, %v1232
        %v1318 = vpack.c.b16 %v1235, %v1234
        %v1319 = vpack.c.b16 %v1237, %v1236
        %v1320 = vpack.c.b16 %v1239, %v1238
        %v1321 = vpack.c.b16 %v1241, %v1240
        %v1322 = vpack.c.b16 %v1243, %v1242
        %v1323 = vpack.c.b16 %v1245, %v1244
        %v1324 = vpack.c.b16 %v1247, %v1246
        %v1325 = vpack.c.b16 %v1249, %v1248
        %v1326 = vpack.c.b16 %v1251, %v1250
        %v1327 = vpack.c.b16 %v1253, %v1252
        %v1328 = vpack.c.b16 %v1255, %v1254
        %v1329 = vpack.c.b16 %v1257, %v1256
        %v1330 = vpack.c.b16 %v1259, %v1258
        %v1331 = vpack.c.b16 %v1261, %v1260
        %v1332 = vpack.c.b16 %v1263, %v1262
        %v1333 = vpack.c.b16 %v1265, %v1264
        %v1334 = vpack.c.b16 %v1267, %v1266
        %v1335 = vpack.c.b16 %v1269, %v1268
        %v1336 = vpack.c.b16 %v1271, %v1270
        %v1337 = vpack.c.b16 %v1273, %v1272
        %v1338 = vpack.c.b16 %v1275, %v1274
        %v1339 = vpack.c.b16 %v1277, %v1276
        %v1340 = vpack.c.b16 %v1279, %v1278
        %v1341 = vpack.c.b16 %v1281, %v1280
        %v1342 = vpack.c.b16 %v1283, %v1282
        %v1343 = vpack.c.b16 %v1285, %v1284
        %v1344 = vpack.c.b16 %v1287, %v1286
        %v1345 = vpack.c.b16 %v1289, %v1288
        %v1346 = vpack.c.b16 %v1291, %v1290
        %v1347 = vpack.c.b16 %v1293, %v1292
        %v1348 = vpack.c.b16 %v1295, %v1294
        %v1349 = vpack.c.b16 %v1297, %v1296
        %v1350 = vpack.c.b16 %v1299, %v1298
        %v1351 = vpack.c.b16 %v1301, %v1300
        %v1352 = vpack.c.b16 %v1303, %v1302
        %v1353 = vpack.c.b16 %v1305, %v1304
        %1402 = vmatprep.subr.bf16.mxu0 0
        %1403 = vmatpush1.bf16.msra.mxu0 %v1306
        %1404 = vmatprep.subr.bf16.mxu0 0
        %1405 = vmatpush1.bf16.msra.mxu0 %v1307
        %1406 = vmatprep.subr.bf16.mxu0 0
        %1407 = vmatpush1.bf16.msra.mxu0 %v1308
        %1408 = vmatprep.subr.bf16.mxu0 0
        %1409 = vmatpush1.bf16.msra.mxu0 %v1309
        %1410 = vmatprep.subr.bf16.mxu0 0
        %1411 = vmatpush1.bf16.msra.mxu0 %v1310
        %1412 = vmatprep.subr.bf16.mxu0 0
        %1413 = vmatpush1.bf16.msra.mxu0 %v1311
        %1414 = vmatprep.subr.bf16.mxu0 0
        %1415 = vmatpush1.bf16.msra.mxu0 %v1312
        %1416 = vmatprep.subr.bf16.mxu0 0
        %1417 = vmatpush1.bf16.msra.mxu0 %v1313
        %1418 = vmatprep.subr.bf16.mxu0 0
        %1419 = vmatpush1.bf16.msra.mxu0 %v1314
        %1420 = vmatprep.subr.bf16.mxu0 0
        %1421 = vmatpush1.bf16.msra.mxu0 %v1315
        %1422 = vmatprep.subr.bf16.mxu0 0
        %1423 = vmatpush1.bf16.msra.mxu0 %v1316
        %1424 = vmatprep.subr.bf16.mxu0 0
        %1425 = vmatpush1.bf16.msra.mxu0 %v1317
        %1426 = vmatprep.subr.bf16.mxu0 0
        %1427 = vmatpush1.bf16.msra.mxu0 %v1318
        %1428 = vmatprep.subr.bf16.mxu0 0
        %1429 = vmatpush1.bf16.msra.mxu0 %v1319
        %1430 = vmatprep.subr.bf16.mxu0 0
        %1431 = vmatpush1.bf16.msra.mxu0 %v1320
        %1432 = vmatprep.subr.bf16.mxu0 0
        %1433 = vmatpush1.bf16.msra.mxu0 %v1321
        %1434 = vmatprep.mubr.bf16.mxu0 %v923
        %1435 = vmatmul.mubr.bf16.gmra.mrb[0].mxu0 %v922
        %v1436 = vpop.f32.mrb[0].mxu0
        %v1437 = vadd.f32 %v602, %v1436
        %v1438 = vpop.f32.mrb[0].mxu0
        %v1439 = vpop.f32.mrb[0].mxu0
        %v1440 = vadd.f32 %v603, %v1439
        %v1441 = vpop.f32.mrb[0].mxu0
        %1442 = vmatprep.mubr.bf16.mxu0 %v929
        %1443 = vmatmul.mubr.bf16.gmra.mrb[0].mxu0 %v928
        %v1444 = vpop.f32.mrb[0].mxu0
        %v1445 = vadd.f32 %v604, %v1444
        %v1446 = vpop.f32.mrb[0].mxu0
        %v1447 = vpop.f32.mrb[0].mxu0
        %v1448 = vadd.f32 %v605, %v1447
        %v1449 = vpop.f32.mrb[0].mxu0
        %1450 = vmatprep.mubr.bf16.mxu0 %v935
        %1451 = vmatmul.mubr.bf16.gmra.mrb[0].mxu0 %v934
        %v1452 = vpop.f32.mrb[0].mxu0
        %v1453 = vadd.f32 %v606, %v1452
        %v1454 = vpop.f32.mrb[0].mxu0
        %v1455 = vpop.f32.mrb[0].mxu0
        %v1456 = vadd.f32 %v607, %v1455
        %v1457 = vpop.f32.mrb[0].mxu0
        %1458 = vmatprep.mubr.bf16.mxu0 %v941
        %1459 = vmatmul.mubr.bf16.gmra.mrb[0].mxu0 %v940
        %v1460 = vpop.f32.mrb[0].mxu0
        %v1461 = vadd.f32 %v608, %v1460
        %v1462 = vpop.f32.mrb[0].mxu0
        %v1463 = vpop.f32.mrb[0].mxu0
        %v1464 = vadd.f32 %v609, %v1463
        %v1465 = vpop.f32.mrb[0].mxu0
        %1466 = vmatprep.mubr.bf16.mxu0 %v947
        %1467 = vmatmul.mubr.bf16.gmra.mrb[0].mxu0 %v946
        %v1468 = vpop.f32.mrb[0].mxu0
        %v1469 = vadd.f32 %v610, %v1468
        %v1470 = vpop.f32.mrb[0].mxu0
        %v1471 = vpop.f32.mrb[0].mxu0
        %v1472 = vadd.f32 %v611, %v1471
        %v1473 = vpop.f32.mrb[0].mxu0
        %1474 = vmatprep.mubr.bf16.mxu0 %v953
        %1475 = vmatmul.mubr.bf16.gmra.mrb[0].mxu0 %v952
        %v1476 = vpop.f32.mrb[0].mxu0
        %v1477 = vadd.f32 %v612, %v1476
        %v1478 = vpop.f32.mrb[0].mxu0
        %v1479 = vpop.f32.mrb[0].mxu0
        %v1480 = vadd.f32 %v613, %v1479
        %v1481 = vpop.f32.mrb[0].mxu0
        %1482 = vmatprep.mubr.bf16.mxu0 %v959
        %1483 = vmatmul.mubr.bf16.gmra.mrb[0].mxu0 %v958
        %v1484 = vpop.f32.mrb[0].mxu0
        %v1485 = vadd.f32 %v614, %v1484
        %v1486 = vpop.f32.mrb[0].mxu0
        %v1487 = vpop.f32.mrb[0].mxu0
        %v1488 = vadd.f32 %v615, %v1487
        %v1489 = vpop.f32.mrb[0].mxu0
        %1490 = vmatprep.mubr.bf16.mxu0 %v965
        %1491 = vmatmul.mubr.bf16.gmra.mrb[0].mxu0 %v964
        %v1492 = vpop.f32.mrb[0].mxu0
        %v1493 = vadd.f32 %v616, %v1492
        %v1494 = vpop.f32.mrb[0].mxu0
        %v1495 = vpop.f32.mrb[0].mxu0
        %v1496 = vadd.f32 %v617, %v1495
        %v1497 = vpop.f32.mrb[0].mxu0
        %1498 = vmatprep.mubr.bf16.mxu0 %v971
        %1499 = vmatmul.mubr.bf16.gmra.mrb[0].mxu0 %v970
        %v1500 = vpop.f32.mrb[0].mxu0
        %v1501 = vadd.f32 %v618, %v1500
        %v1502 = vpop.f32.mrb[0].mxu0
        %v1503 = vpop.f32.mrb[0].mxu0
        %v1504 = vadd.f32 %v619, %v1503
        %v1505 = vpop.f32.mrb[0].mxu0
        %1506 = vmatprep.mubr.bf16.mxu0 %v977
        %1507 = vmatmul.mubr.bf16.gmra.mrb[0].mxu0 %v976
        %v1508 = vpop.f32.mrb[0].mxu0
        %v1509 = vadd.f32 %v620, %v1508
        %v1510 = vpop.f32.mrb[0].mxu0
        %v1511 = vpop.f32.mrb[0].mxu0
        %v1512 = vadd.f32 %v621, %v1511
        %v1513 = vpop.f32.mrb[0].mxu0
        %1514 = vmatprep.mubr.bf16.mxu0 %v983
        %1515 = vmatmul.mubr.bf16.gmra.mrb[0].mxu0 %v982
        %v1516 = vpop.f32.mrb[0].mxu0
        %v1517 = vadd.f32 %v622, %v1516
        %v1518 = vpop.f32.mrb[0].mxu0
        %v1519 = vpop.f32.mrb[0].mxu0
        %v1520 = vadd.f32 %v623, %v1519
        %v1521 = vpop.f32.mrb[0].mxu0
        %1522 = vmatprep.mubr.bf16.mxu0 %v989
        %1523 = vmatmul.mubr.bf16.gmra.mrb[0].mxu0 %v988
        %v1524 = vpop.f32.mrb[0].mxu0
        %v1525 = vadd.f32 %v624, %v1524
        %v1526 = vpop.f32.mrb[0].mxu0
        %v1527 = vpop.f32.mrb[0].mxu0
        %v1528 = vadd.f32 %v625, %v1527
        %v1529 = vpop.f32.mrb[0].mxu0
        %1530 = vmatprep.mubr.bf16.mxu0 %v995
        %1531 = vmatmul.mubr.bf16.gmra.mrb[0].mxu0 %v994
        %v1532 = vpop.f32.mrb[0].mxu0
        %v1533 = vadd.f32 %v626, %v1532
        %v1534 = vpop.f32.mrb[0].mxu0
        %v1535 = vpop.f32.mrb[0].mxu0
        %v1536 = vadd.f32 %v627, %v1535
        %v1537 = vpop.f32.mrb[0].mxu0
        %1538 = vmatprep.mubr.bf16.mxu0 %v1001
        %1539 = vmatmul.mubr.bf16.gmra.mrb[0].mxu0 %v1000
        %v1540 = vpop.f32.mrb[0].mxu0
        %v1541 = vadd.f32 %v628, %v1540
        %v1542 = vpop.f32.mrb[0].mxu0
        %v1543 = vpop.f32.mrb[0].mxu0
        %v1544 = vadd.f32 %v629, %v1543
        %v1545 = vpop.f32.mrb[0].mxu0
        %1546 = vmatprep.mubr.bf16.mxu0 %v1007
        %1547 = vmatmul.mubr.bf16.gmra.mrb[0].mxu0 %v1006
        %v1548 = vpop.f32.mrb[0].mxu0
        %v1549 = vadd.f32 %v630, %v1548
        %v1550 = vpop.f32.mrb[0].mxu0
        %v1551 = vpop.f32.mrb[0].mxu0
        %v1552 = vadd.f32 %v631, %v1551
        %v1553 = vpop.f32.mrb[0].mxu0
        %1554 = vmatprep.mubr.bf16.mxu0 %v1013
        %1555 = vmatmul.mubr.bf16.gmra.mrb[0].mxu0 %v1012
        %v1556 = vpop.f32.mrb[0].mxu0
        %v1557 = vadd.f32 %v632, %v1556
        %v1558 = vpop.f32.mrb[0].mxu0
        %v1559 = vpop.f32.mrb[0].mxu0
        %v1560 = vadd.f32 %v633, %v1559
        %v1561 = vpop.f32.mrb[0].mxu0
        %1562 = vdwg.mxu0
        %1563 = vmatprep.subr.bf16.mxu0 0
        %1564 = vmatpush1.bf16.msra.mxu0 %v1322
        %1565 = vmatprep.subr.bf16.mxu0 0
        %1566 = vmatpush1.bf16.msra.mxu0 %v1323
        %1567 = vmatprep.subr.bf16.mxu0 0
        %1568 = vmatpush1.bf16.msra.mxu0 %v1324
        %1569 = vmatprep.subr.bf16.mxu0 0
        %1570 = vmatpush1.bf16.msra.mxu0 %v1325
        %1571 = vmatprep.subr.bf16.mxu0 0
        %1572 = vmatpush1.bf16.msra.mxu0 %v1326
        %1573 = vmatprep.subr.bf16.mxu0 0
        %1574 = vmatpush1.bf16.msra.mxu0 %v1327
        %1575 = vmatprep.subr.bf16.mxu0 0
        %1576 = vmatpush1.bf16.msra.mxu0 %v1328
        %1577 = vmatprep.subr.bf16.mxu0 0
        %1578 = vmatpush1.bf16.msra.mxu0 %v1329
        %1579 = vmatprep.subr.bf16.mxu0 0
        %1580 = vmatpush1.bf16.msra.mxu0 %v1330
        %1581 = vmatprep.subr.bf16.mxu0 0
        %1582 = vmatpush1.bf16.msra.mxu0 %v1331
        %1583 = vmatprep.subr.bf16.mxu0 0
        %1584 = vmatpush1.bf16.msra.mxu0 %v1332
        %1585 = vmatprep.subr.bf16.mxu0 0
        %1586 = vmatpush1.bf16.msra.mxu0 %v1333
        %1587 = vmatprep.subr.bf16.mxu0 0
        %1588 = vmatpush1.bf16.msra.mxu0 %v1334
        %1589 = vmatprep.subr.bf16.mxu0 0
        %1590 = vmatpush1.bf16.msra.mxu0 %v1335
        %1591 = vmatprep.subr.bf16.mxu0 0
        %1592 = vmatpush1.bf16.msra.mxu0 %v1336
        %1593 = vmatprep.subr.bf16.mxu0 0
        %1594 = vmatpush1.bf16.msra.mxu0 %v1337
        %1595 = vmatprep.mubr.bf16.mxu0 %v925
        %1596 = vmatmul.mubr.bf16.gmra.mrb[0].mxu0 %v924
        %v1597 = vpop.f32.mrb[0].mxu0
        %v1598 = vadd.f32 %v1437, %v1597
        %v1599 = vpop.f32.mrb[0].mxu0
        %v1600 = vpop.f32.mrb[0].mxu0
        %v1601 = vadd.f32 %v1440, %v1600
        %v1602 = vpop.f32.mrb[0].mxu0
        %1603 = vmatprep.mubr.bf16.mxu0 %v931
        %1604 = vmatmul.mubr.bf16.gmra.mrb[0].mxu0 %v930
        %v1605 = vpop.f32.mrb[0].mxu0
        %v1606 = vadd.f32 %v1445, %v1605
        %v1607 = vpop.f32.mrb[0].mxu0
        %v1608 = vpop.f32.mrb[0].mxu0
        %v1609 = vadd.f32 %v1448, %v1608
        %v1610 = vpop.f32.mrb[0].mxu0
        %1611 = vmatprep.mubr.bf16.mxu0 %v937
        %1612 = vmatmul.mubr.bf16.gmra.mrb[0].mxu0 %v936
        %v1613 = vpop.f32.mrb[0].mxu0
        %v1614 = vadd.f32 %v1453, %v1613
        %v1615 = vpop.f32.mrb[0].mxu0
        %v1616 = vpop.f32.mrb[0].mxu0
        %v1617 = vadd.f32 %v1456, %v1616
        %v1618 = vpop.f32.mrb[0].mxu0
        %1619 = vmatprep.mubr.bf16.mxu0 %v943
        %1620 = vmatmul.mubr.bf16.gmra.mrb[0].mxu0 %v942
        %v1621 = vpop.f32.mrb[0].mxu0
        %v1622 = vadd.f32 %v1461, %v1621
        %v1623 = vpop.f32.mrb[0].mxu0
        %v1624 = vpop.f32.mrb[0].mxu0
        %v1625 = vadd.f32 %v1464, %v1624
        %v1626 = vpop.f32.mrb[0].mxu0
        %1627 = vmatprep.mubr.bf16.mxu0 %v949
        %1628 = vmatmul.mubr.bf16.gmra.mrb[0].mxu0 %v948
        %v1629 = vpop.f32.mrb[0].mxu0
        %v1630 = vadd.f32 %v1469, %v1629
        %v1631 = vpop.f32.mrb[0].mxu0
        %v1632 = vpop.f32.mrb[0].mxu0
        %v1633 = vadd.f32 %v1472, %v1632
        %v1634 = vpop.f32.mrb[0].mxu0
        %1635 = vmatprep.mubr.bf16.mxu0 %v955
        %1636 = vmatmul.mubr.bf16.gmra.mrb[0].mxu0 %v954
        %v1637 = vpop.f32.mrb[0].mxu0
        %v1638 = vadd.f32 %v1477, %v1637
        %v1639 = vpop.f32.mrb[0].mxu0
        %v1640 = vpop.f32.mrb[0].mxu0
        %v1641 = vadd.f32 %v1480, %v1640
        %v1642 = vpop.f32.mrb[0].mxu0
        %1643 = vmatprep.mubr.bf16.mxu0 %v961
        %1644 = vmatmul.mubr.bf16.gmra.mrb[0].mxu0 %v960
        %v1645 = vpop.f32.mrb[0].mxu0
        %v1646 = vadd.f32 %v1485, %v1645
        %v1647 = vpop.f32.mrb[0].mxu0
        %v1648 = vpop.f32.mrb[0].mxu0
        %v1649 = vadd.f32 %v1488, %v1648
        %v1650 = vpop.f32.mrb[0].mxu0
        %1651 = vmatprep.mubr.bf16.mxu0 %v967
        %1652 = vmatmul.mubr.bf16.gmra.mrb[0].mxu0 %v966
        %v1653 = vpop.f32.mrb[0].mxu0
        %v1654 = vadd.f32 %v1493, %v1653
        %v1655 = vpop.f32.mrb[0].mxu0
        %v1656 = vpop.f32.mrb[0].mxu0
        %v1657 = vadd.f32 %v1496, %v1656
        %v1658 = vpop.f32.mrb[0].mxu0
        %1659 = vmatprep.mubr.bf16.mxu0 %v973
        %1660 = vmatmul.mubr.bf16.gmra.mrb[0].mxu0 %v972
        %v1661 = vpop.f32.mrb[0].mxu0
        %v1662 = vadd.f32 %v1501, %v1661
        %v1663 = vpop.f32.mrb[0].mxu0
        %v1664 = vpop.f32.mrb[0].mxu0
        %v1665 = vadd.f32 %v1504, %v1664
        %v1666 = vpop.f32.mrb[0].mxu0
        %1667 = vmatprep.mubr.bf16.mxu0 %v979
        %1668 = vmatmul.mubr.bf16.gmra.mrb[0].mxu0 %v978
        %v1669 = vpop.f32.mrb[0].mxu0
        %v1670 = vadd.f32 %v1509, %v1669
        %v1671 = vpop.f32.mrb[0].mxu0
        %v1672 = vpop.f32.mrb[0].mxu0
        %v1673 = vadd.f32 %v1512, %v1672
        %v1674 = vpop.f32.mrb[0].mxu0
        %1675 = vmatprep.mubr.bf16.mxu0 %v985
        %1676 = vmatmul.mubr.bf16.gmra.mrb[0].mxu0 %v984
        %v1677 = vpop.f32.mrb[0].mxu0
        %v1678 = vadd.f32 %v1517, %v1677
        %v1679 = vpop.f32.mrb[0].mxu0
        %v1680 = vpop.f32.mrb[0].mxu0
        %v1681 = vadd.f32 %v1520, %v1680
        %v1682 = vpop.f32.mrb[0].mxu0
        %1683 = vmatprep.mubr.bf16.mxu0 %v991
        %1684 = vmatmul.mubr.bf16.gmra.mrb[0].mxu0 %v990
        %v1685 = vpop.f32.mrb[0].mxu0
        %v1686 = vadd.f32 %v1525, %v1685
        %v1687 = vpop.f32.mrb[0].mxu0
        %v1688 = vpop.f32.mrb[0].mxu0
        %v1689 = vadd.f32 %v1528, %v1688
        %v1690 = vpop.f32.mrb[0].mxu0
        %1691 = vmatprep.mubr.bf16.mxu0 %v997
        %1692 = vmatmul.mubr.bf16.gmra.mrb[0].mxu0 %v996
        %v1693 = vpop.f32.mrb[0].mxu0
        %v1694 = vadd.f32 %v1533, %v1693
        %v1695 = vpop.f32.mrb[0].mxu0
        %v1696 = vpop.f32.mrb[0].mxu0
        %v1697 = vadd.f32 %v1536, %v1696
        %v1698 = vpop.f32.mrb[0].mxu0
        %1699 = vmatprep.mubr.bf16.mxu0 %v1003
        %1700 = vmatmul.mubr.bf16.gmra.mrb[0].mxu0 %v1002
        %v1701 = vpop.f32.mrb[0].mxu0
        %v1702 = vadd.f32 %v1541, %v1701
        %v1703 = vpop.f32.mrb[0].mxu0
        %v1704 = vpop.f32.mrb[0].mxu0
        %v1705 = vadd.f32 %v1544, %v1704
        %v1706 = vpop.f32.mrb[0].mxu0
        %1707 = vmatprep.mubr.bf16.mxu0 %v1009
        %1708 = vmatmul.mubr.bf16.gmra.mrb[0].mxu0 %v1008
        %v1709 = vpop.f32.mrb[0].mxu0
        %v1710 = vadd.f32 %v1549, %v1709
        %v1711 = vpop.f32.mrb[0].mxu0
        %v1712 = vpop.f32.mrb[0].mxu0
        %v1713 = vadd.f32 %v1552, %v1712
        %v1714 = vpop.f32.mrb[0].mxu0
        %1715 = vmatprep.mubr.bf16.mxu0 %v1015
        %1716 = vmatmul.mubr.bf16.gmra.mrb[0].mxu0 %v1014
        %v1717 = vpop.f32.mrb[0].mxu0
        %v1718 = vadd.f32 %v1557, %v1717
        %v1719 = vpop.f32.mrb[0].mxu0
        %v1720 = vpop.f32.mrb[0].mxu0
        %v1721 = vadd.f32 %v1560, %v1720
        %v1722 = vpop.f32.mrb[0].mxu0
        %1723 = vdwg.mxu0
        %1724 = vmatprep.subr.bf16.mxu0 0
        %1725 = vmatpush1.bf16.msra.mxu0 %v1338
        %1726 = vmatprep.subr.bf16.mxu0 0
        %1727 = vmatpush1.bf16.msra.mxu0 %v1339
        %1728 = vmatprep.subr.bf16.mxu0 0
        %1729 = vmatpush1.bf16.msra.mxu0 %v1340
        %1730 = vmatprep.subr.bf16.mxu0 0
        %1731 = vmatpush1.bf16.msra.mxu0 %v1341
        %1732 = vmatprep.subr.bf16.mxu0 0
        %1733 = vmatpush1.bf16.msra.mxu0 %v1342
        %1734 = vmatprep.subr.bf16.mxu0 0
        %1735 = vmatpush1.bf16.msra.mxu0 %v1343
        %1736 = vmatprep.subr.bf16.mxu0 0
        %1737 = vmatpush1.bf16.msra.mxu0 %v1344
        %1738 = vmatprep.subr.bf16.mxu0 0
        %1739 = vmatpush1.bf16.msra.mxu0 %v1345
        %1740 = vmatprep.subr.bf16.mxu0 0
        %1741 = vmatpush1.bf16.msra.mxu0 %v1346
        %1742 = vmatprep.subr.bf16.mxu0 0
        %1743 = vmatpush1.bf16.msra.mxu0 %v1347
        %1744 = vmatprep.subr.bf16.mxu0 0
        %1745 = vmatpush1.bf16.msra.mxu0 %v1348
        %1746 = vmatprep.subr.bf16.mxu0 0
        %1747 = vmatpush1.bf16.msra.mxu0 %v1349
        %1748 = vmatprep.subr.bf16.mxu0 0
        %1749 = vmatpush1.bf16.msra.mxu0 %v1350
        %1750 = vmatprep.subr.bf16.mxu0 0
        %1751 = vmatpush1.bf16.msra.mxu0 %v1351
        %1752 = vmatprep.subr.bf16.mxu0 0
        %1753 = vmatpush1.bf16.msra.mxu0 %v1352
        %1754 = vmatprep.subr.bf16.mxu0 0
        %1755 = vmatpush1.bf16.msra.mxu0 %v1353
        %1756 = vmatprep.mubr.bf16.mxu0 %v927
        %1757 = vmatmul.mubr.bf16.gmra.mrb[0].mxu0 %v926
        %v1758 = vpop.f32.mrb[0].mxu0
        %v1759 = vadd.f32 %v1598, %v1758
        %v1760 = vpop.f32.mrb[0].mxu0
        %v1761 = vpop.f32.mrb[0].mxu0
        %v1762 = vadd.f32 %v1601, %v1761
        %v1763 = vpop.f32.mrb[0].mxu0
        %1764 = vmatprep.mubr.bf16.mxu0 %v933
        %1765 = vmatmul.mubr.bf16.gmra.mrb[0].mxu0 %v932
        %v1766 = vpop.f32.mrb[0].mxu0
        %v1767 = vadd.f32 %v1606, %v1766
        %v1768 = vpop.f32.mrb[0].mxu0
        %v1769 = vpop.f32.mrb[0].mxu0
        %v1770 = vadd.f32 %v1609, %v1769
        %v1771 = vpop.f32.mrb[0].mxu0
        %1772 = vmatprep.mubr.bf16.mxu0 %v939
        %1773 = vmatmul.mubr.bf16.gmra.mrb[0].mxu0 %v938
        %v1774 = vpop.f32.mrb[0].mxu0
        %v1775 = vadd.f32 %v1614, %v1774
        %v1776 = vpop.f32.mrb[0].mxu0
        %v1777 = vpop.f32.mrb[0].mxu0
        %v1778 = vadd.f32 %v1617, %v1777
        %v1779 = vpop.f32.mrb[0].mxu0
        %1780 = vmatprep.mubr.bf16.mxu0 %v945
        %1781 = vmatmul.mubr.bf16.gmra.mrb[0].mxu0 %v944
        %v1782 = vpop.f32.mrb[0].mxu0
        %v1783 = vadd.f32 %v1622, %v1782
        %v1784 = vpop.f32.mrb[0].mxu0
        %v1785 = vpop.f32.mrb[0].mxu0
        %v1786 = vadd.f32 %v1625, %v1785
        %v1787 = vpop.f32.mrb[0].mxu0
        %1788 = vmatprep.mubr.bf16.mxu0 %v951
        %1789 = vmatmul.mubr.bf16.gmra.mrb[0].mxu0 %v950
        %v1790 = vpop.f32.mrb[0].mxu0
        %v1791 = vadd.f32 %v1630, %v1790
        %v1792 = vpop.f32.mrb[0].mxu0
        %v1793 = vpop.f32.mrb[0].mxu0
        %v1794 = vadd.f32 %v1633, %v1793
        %v1795 = vpop.f32.mrb[0].mxu0
        %1796 = vmatprep.mubr.bf16.mxu0 %v957
        %1797 = vmatmul.mubr.bf16.gmra.mrb[0].mxu0 %v956
        %v1798 = vpop.f32.mrb[0].mxu0
        %v1799 = vadd.f32 %v1638, %v1798
        %v1800 = vpop.f32.mrb[0].mxu0
        %v1801 = vpop.f32.mrb[0].mxu0
        %v1802 = vadd.f32 %v1641, %v1801
        %v1803 = vpop.f32.mrb[0].mxu0
        %1804 = vmatprep.mubr.bf16.mxu0 %v963
        %1805 = vmatmul.mubr.bf16.gmra.mrb[0].mxu0 %v962
        %v1806 = vpop.f32.mrb[0].mxu0
        %v1807 = vadd.f32 %v1646, %v1806
        %v1808 = vpop.f32.mrb[0].mxu0
        %v1809 = vpop.f32.mrb[0].mxu0
        %v1810 = vadd.f32 %v1649, %v1809
        %v1811 = vpop.f32.mrb[0].mxu0
        %1812 = vmatprep.mubr.bf16.mxu0 %v969
        %1813 = vmatmul.mubr.bf16.gmra.mrb[0].mxu0 %v968
        %v1814 = vpop.f32.mrb[0].mxu0
        %v1815 = vadd.f32 %v1654, %v1814
        %v1816 = vpop.f32.mrb[0].mxu0
        %v1817 = vpop.f32.mrb[0].mxu0
        %v1818 = vadd.f32 %v1657, %v1817
        %v1819 = vpop.f32.mrb[0].mxu0
        %1820 = vmatprep.mubr.bf16.mxu0 %v975
        %1821 = vmatmul.mubr.bf16.gmra.mrb[0].mxu0 %v974
        %v1822 = vpop.f32.mrb[0].mxu0
        %v1823 = vadd.f32 %v1662, %v1822
        %v1824 = vpop.f32.mrb[0].mxu0
        %v1825 = vpop.f32.mrb[0].mxu0
        %v1826 = vadd.f32 %v1665, %v1825
        %v1827 = vpop.f32.mrb[0].mxu0
        %1828 = vmatprep.mubr.bf16.mxu0 %v981
        %1829 = vmatmul.mubr.bf16.gmra.mrb[0].mxu0 %v980
        %v1830 = vpop.f32.mrb[0].mxu0
        %v1831 = vadd.f32 %v1670, %v1830
        %v1832 = vpop.f32.mrb[0].mxu0
        %v1833 = vpop.f32.mrb[0].mxu0
        %v1834 = vadd.f32 %v1673, %v1833
        %v1835 = vpop.f32.mrb[0].mxu0
        %1836 = vmatprep.mubr.bf16.mxu0 %v987
        %1837 = vmatmul.mubr.bf16.gmra.mrb[0].mxu0 %v986
        %v1838 = vpop.f32.mrb[0].mxu0
        %v1839 = vadd.f32 %v1678, %v1838
        %v1840 = vpop.f32.mrb[0].mxu0
        %v1841 = vpop.f32.mrb[0].mxu0
        %v1842 = vadd.f32 %v1681, %v1841
        %v1843 = vpop.f32.mrb[0].mxu0
        %1844 = vmatprep.mubr.bf16.mxu0 %v993
        %1845 = vmatmul.mubr.bf16.gmra.mrb[0].mxu0 %v992
        %v1846 = vpop.f32.mrb[0].mxu0
        %v1847 = vadd.f32 %v1686, %v1846
        %v1848 = vpop.f32.mrb[0].mxu0
        %v1849 = vpop.f32.mrb[0].mxu0
        %v1850 = vadd.f32 %v1689, %v1849
        %v1851 = vpop.f32.mrb[0].mxu0
        %1852 = vmatprep.mubr.bf16.mxu0 %v999
        %1853 = vmatmul.mubr.bf16.gmra.mrb[0].mxu0 %v998
        %v1854 = vpop.f32.mrb[0].mxu0
        %v1855 = vadd.f32 %v1694, %v1854
        %v1856 = vpop.f32.mrb[0].mxu0
        %v1857 = vpop.f32.mrb[0].mxu0
        %v1858 = vadd.f32 %v1697, %v1857
        %v1859 = vpop.f32.mrb[0].mxu0
        %1860 = vmatprep.mubr.bf16.mxu0 %v1005
        %1861 = vmatmul.mubr.bf16.gmra.mrb[0].mxu0 %v1004
        %v1862 = vpop.f32.mrb[0].mxu0
        %v1863 = vadd.f32 %v1702, %v1862
        %v1864 = vpop.f32.mrb[0].mxu0
        %v1865 = vpop.f32.mrb[0].mxu0
        %v1866 = vadd.f32 %v1705, %v1865
        %v1867 = vpop.f32.mrb[0].mxu0
        %1868 = vmatprep.mubr.bf16.mxu0 %v1011
        %1869 = vmatmul.mubr.bf16.gmra.mrb[0].mxu0 %v1010
        %v1870 = vpop.f32.mrb[0].mxu0
        %v1871 = vadd.f32 %v1710, %v1870
        %v1872 = vpop.f32.mrb[0].mxu0
        %v1873 = vpop.f32.mrb[0].mxu0
        %v1874 = vadd.f32 %v1713, %v1873
        %v1875 = vpop.f32.mrb[0].mxu0
        %1876 = vmatprep.mubr.bf16.mxu0 %v1017
        %1877 = vmatmul.mubr.bf16.gmra.mrb[0].mxu0 %v1016
        %v1878 = vpop.f32.mrb[0].mxu0
        %v1879 = vadd.f32 %v1718, %v1878
        %v1880 = vpop.f32.mrb[0].mxu0
        %v1881 = vpop.f32.mrb[0].mxu0
        %v1882 = vadd.f32 %v1721, %v1881
        %v1883 = vpop.f32.mrb[0].mxu0
        %1884 = vdwg.mxu0
        %vm1885 = vcmask 523264
        %v1886 = vsel %vm1885, %v1759, 0.0
        %1887 = vadd.xlane.f32.xlu0 %v1886
        %v1888 = vpop.xlane.xlu0 %1887
        %v1889 = vsel %vm1885, %v1762, 0.0
        %1890 = vadd.xlane.f32.xlu0 %v1889
        %v1891 = vpop.xlane.xlu0 %1890
        %v1892 = vsel %vm1885, %v1767, 0.0
        %1893 = vadd.xlane.f32.xlu0 %v1892
        %v1894 = vpop.xlane.xlu0 %1893
        %v1895 = vsel %vm1885, %v1770, 0.0
        %1896 = vadd.xlane.f32.xlu0 %v1895
        %v1897 = vpop.xlane.xlu0 %1896
        %v1898 = vsel %vm1885, %v1775, 0.0
        %1899 = vadd.xlane.f32.xlu0 %v1898
        %v1900 = vpop.xlane.xlu0 %1899
        %v1901 = vsel %vm1885, %v1778, 0.0
        %1902 = vadd.xlane.f32.xlu0 %v1901
        %v1903 = vpop.xlane.xlu0 %1902
        %v1904 = vsel %vm1885, %v1783, 0.0
        %1905 = vadd.xlane.f32.xlu0 %v1904
        %v1906 = vpop.xlane.xlu0 %1905
        %v1907 = vsel %vm1885, %v1786, 0.0
        %1908 = vadd.xlane.f32.xlu0 %v1907
        %v1909 = vpop.xlane.xlu0 %1908
        %v1910 = vsel %vm1885, %v1791, 0.0
        %1911 = vadd.xlane.f32.xlu0 %v1910
        %v1912 = vpop.xlane.xlu0 %1911
        %v1913 = vsel %vm1885, %v1794, 0.0
        %1914 = vadd.xlane.f32.xlu0 %v1913
        %v1915 = vpop.xlane.xlu0 %1914
        %v1916 = vsel %vm1885, %v1799, 0.0
        %1917 = vadd.xlane.f32.xlu0 %v1916
        %v1918 = vpop.xlane.xlu0 %1917
        %v1919 = vsel %vm1885, %v1802, 0.0
        %1920 = vadd.xlane.f32.xlu0 %v1919
        %v1921 = vpop.xlane.xlu0 %1920
        %v1922 = vsel %vm1885, %v1807, 0.0
        %1923 = vadd.xlane.f32.xlu0 %v1922
        %v1924 = vpop.xlane.xlu0 %1923
        %v1925 = vsel %vm1885, %v1810, 0.0
        %1926 = vadd.xlane.f32.xlu0 %v1925
        %v1927 = vpop.xlane.xlu0 %1926
        %v1928 = vsel %vm1885, %v1815, 0.0
        %1929 = vadd.xlane.f32.xlu0 %v1928
        %v1930 = vpop.xlane.xlu0 %1929
        %v1931 = vsel %vm1885, %v1818, 0.0
        %1932 = vadd.xlane.f32.xlu0 %v1931
        %v1933 = vpop.xlane.xlu0 %1932
        %v1934 = vsel %vm1885, %v1823, 0.0
        %1935 = vadd.xlane.f32.xlu0 %v1934
        %v1936 = vpop.xlane.xlu0 %1935
        %v1937 = vsel %vm1885, %v1826, 0.0
        %1938 = vadd.xlane.f32.xlu0 %v1937
        %v1939 = vpop.xlane.xlu0 %1938
        %v1940 = vsel %vm1885, %v1831, 0.0
        %1941 = vadd.xlane.f32.xlu0 %v1940
        %v1942 = vpop.xlane.xlu0 %1941
        %v1943 = vsel %vm1885, %v1834, 0.0
        %1944 = vadd.xlane.f32.xlu0 %v1943
        %v1945 = vpop.xlane.xlu0 %1944
        %v1946 = vsel %vm1885, %v1839, 0.0
        %1947 = vadd.xlane.f32.xlu0 %v1946
        %v1948 = vpop.xlane.xlu0 %1947
        %v1949 = vsel %vm1885, %v1842, 0.0
        %1950 = vadd.xlane.f32.xlu0 %v1949
        %v1951 = vpop.xlane.xlu0 %1950
        %v1952 = vsel %vm1885, %v1847, 0.0
        %1953 = vadd.xlane.f32.xlu0 %v1952
        %v1954 = vpop.xlane.xlu0 %1953
        %v1955 = vsel %vm1885, %v1850, 0.0
        %1956 = vadd.xlane.f32.xlu0 %v1955
        %v1957 = vpop.xlane.xlu0 %1956
        %v1958 = vsel %vm1885, %v1855, 0.0
        %1959 = vadd.xlane.f32.xlu0 %v1958
        %v1960 = vpop.xlane.xlu0 %1959
        %v1961 = vsel %vm1885, %v1858, 0.0
        %1962 = vadd.xlane.f32.xlu0 %v1961
        %v1963 = vpop.xlane.xlu0 %1962
        %v1964 = vsel %vm1885, %v1863, 0.0
        %1965 = vadd.xlane.f32.xlu0 %v1964
        %v1966 = vpop.xlane.xlu0 %1965
        %v1967 = vsel %vm1885, %v1866, 0.0
        %1968 = vadd.xlane.f32.xlu0 %v1967
        %v1969 = vpop.xlane.xlu0 %1968
        %v1970 = vsel %vm1885, %v1871, 0.0
        %1971 = vadd.xlane.f32.xlu0 %v1970
        %v1972 = vpop.xlane.xlu0 %1971
        %v1973 = vsel %vm1885, %v1874, 0.0
        %1974 = vadd.xlane.f32.xlu0 %v1973
        %v1975 = vpop.xlane.xlu0 %1974
        %v1976 = vsel %vm1885, %v1879, 0.0
        %1977 = vadd.xlane.f32.xlu0 %v1976
        %v1978 = vpop.xlane.xlu0 %1977
        %v1979 = vsel %vm1885, %v1882, 0.0
        %1980 = vadd.xlane.f32.xlu0 %v1979
        %v1981 = vpop.xlane.xlu0 %1980
        %v1982 = vrcp.pop 64.0
        %v1983 = vmul.f32 %v1888, %v1982
        %v1984 = vmul.f32 %v1891, %v1982
        %v1985 = vmul.f32 %v1894, %v1982
        %v1986 = vmul.f32 %v1897, %v1982
        %v1987 = vmul.f32 %v1900, %v1982
        %v1988 = vmul.f32 %v1903, %v1982
        %v1989 = vmul.f32 %v1906, %v1982
        %v1990 = vmul.f32 %v1909, %v1982
        %v1991 = vmul.f32 %v1912, %v1982
        %v1992 = vmul.f32 %v1915, %v1982
        %v1993 = vmul.f32 %v1918, %v1982
        %v1994 = vmul.f32 %v1921, %v1982
        %v1995 = vmul.f32 %v1924, %v1982
        %v1996 = vmul.f32 %v1927, %v1982
        %v1997 = vmul.f32 %v1930, %v1982
        %v1998 = vmul.f32 %v1933, %v1982
        %v1999 = vmul.f32 %v1936, %v1982
        %v2000 = vmul.f32 %v1939, %v1982
        %v2001 = vmul.f32 %v1942, %v1982
        %v2002 = vmul.f32 %v1945, %v1982
        %v2003 = vmul.f32 %v1948, %v1982
        %v2004 = vmul.f32 %v1951, %v1982
        %v2005 = vmul.f32 %v1954, %v1982
        %v2006 = vmul.f32 %v1957, %v1982
        %v2007 = vmul.f32 %v1960, %v1982
        %v2008 = vmul.f32 %v1963, %v1982
        %v2009 = vmul.f32 %v1966, %v1982
        %v2010 = vmul.f32 %v1969, %v1982
        %v2011 = vmul.f32 %v1972, %v1982
        %v2012 = vmul.f32 %v1975, %v1982
        %v2013 = vmul.f32 %v1978, %v1982
        %v2014 = vmul.f32 %v1981, %v1982
        %v2015 = vsub.f32 %v1759, %v1983
        %v2016 = vsub.f32 %v1762, %v1984
        %v2017 = vsub.f32 %v1767, %v1985
        %v2018 = vsub.f32 %v1770, %v1986
        %v2019 = vsub.f32 %v1775, %v1987
        %v2020 = vsub.f32 %v1778, %v1988
        %v2021 = vsub.f32 %v1783, %v1989
        %v2022 = vsub.f32 %v1786, %v1990
        %v2023 = vsub.f32 %v1791, %v1991
        %v2024 = vsub.f32 %v1794, %v1992
        %v2025 = vsub.f32 %v1799, %v1993
        %v2026 = vsub.f32 %v1802, %v1994
        %v2027 = vsub.f32 %v1807, %v1995
        %v2028 = vsub.f32 %v1810, %v1996
        %v2029 = vsub.f32 %v1815, %v1997
        %v2030 = vsub.f32 %v1818, %v1998
        %v2031 = vsub.f32 %v1823, %v1999
        %v2032 = vsub.f32 %v1826, %v2000
        %v2033 = vsub.f32 %v1831, %v2001
        %v2034 = vsub.f32 %v1834, %v2002
        %v2035 = vsub.f32 %v1839, %v2003
        %v2036 = vsub.f32 %v1842, %v2004
        %v2037 = vsub.f32 %v1847, %v2005
        %v2038 = vsub.f32 %v1850, %v2006
        %v2039 = vsub.f32 %v1855, %v2007
        %v2040 = vsub.f32 %v1858, %v2008
        %v2041 = vsub.f32 %v1863, %v2009
        %v2042 = vsub.f32 %v1866, %v2010
        %v2043 = vsub.f32 %v1871, %v2011
        %v2044 = vsub.f32 %v1874, %v2012
        %v2045 = vsub.f32 %v1879, %v2013
        %v2046 = vsub.f32 %v1882, %v2014
        %v2047 = vmul.f32 %v2015, %v2015
        %v2048 = vmul.f32 %v2016, %v2016
        %v2049 = vmul.f32 %v2017, %v2017
        %v2050 = vmul.f32 %v2018, %v2018
        %v2051 = vmul.f32 %v2019, %v2019
        %v2052 = vmul.f32 %v2020, %v2020
        %v2053 = vmul.f32 %v2021, %v2021
        %v2054 = vmul.f32 %v2022, %v2022
        %v2055 = vmul.f32 %v2023, %v2023
        %v2056 = vmul.f32 %v2024, %v2024
        %v2057 = vmul.f32 %v2025, %v2025
        %v2058 = vmul.f32 %v2026, %v2026
        %v2059 = vmul.f32 %v2027, %v2027
        %v2060 = vmul.f32 %v2028, %v2028
        %v2061 = vmul.f32 %v2029, %v2029
        %v2062 = vmul.f32 %v2030, %v2030
        %v2063 = vmul.f32 %v2031, %v2031
        %v2064 = vmul.f32 %v2032, %v2032
        %v2065 = vmul.f32 %v2033, %v2033
        %v2066 = vmul.f32 %v2034, %v2034
        %v2067 = vmul.f32 %v2035, %v2035
        %v2068 = vmul.f32 %v2036, %v2036
        %v2069 = vmul.f32 %v2037, %v2037
        %v2070 = vmul.f32 %v2038, %v2038
        %v2071 = vmul.f32 %v2039, %v2039
        %v2072 = vmul.f32 %v2040, %v2040
        %v2073 = vmul.f32 %v2041, %v2041
        %v2074 = vmul.f32 %v2042, %v2042
        %v2075 = vmul.f32 %v2043, %v2043
        %v2076 = vmul.f32 %v2044, %v2044
        %v2077 = vmul.f32 %v2045, %v2045
        %v2078 = vmul.f32 %v2046, %v2046
        %v2079 = vsel %vm1885, %v2047, 0.0
        %2080 = vadd.xlane.f32.xlu0 %v2079
        %v2081 = vpop.xlane.xlu0 %2080
        %v2082 = vsel %vm1885, %v2048, 0.0
        %2083 = vadd.xlane.f32.xlu0 %v2082
        %v2084 = vpop.xlane.xlu0 %2083
        %v2085 = vsel %vm1885, %v2049, 0.0
        %2086 = vadd.xlane.f32.xlu0 %v2085
        %v2087 = vpop.xlane.xlu0 %2086
        %v2088 = vsel %vm1885, %v2050, 0.0
        %2089 = vadd.xlane.f32.xlu0 %v2088
        %v2090 = vpop.xlane.xlu0 %2089
        %v2091 = vsel %vm1885, %v2051, 0.0
        %2092 = vadd.xlane.f32.xlu0 %v2091
        %v2093 = vpop.xlane.xlu0 %2092
        %v2094 = vsel %vm1885, %v2052, 0.0
        %2095 = vadd.xlane.f32.xlu0 %v2094
        %v2096 = vpop.xlane.xlu0 %2095
        %v2097 = vsel %vm1885, %v2053, 0.0
        %2098 = vadd.xlane.f32.xlu0 %v2097
        %v2099 = vpop.xlane.xlu0 %2098
        %v2100 = vsel %vm1885, %v2054, 0.0
        %2101 = vadd.xlane.f32.xlu0 %v2100
        %v2102 = vpop.xlane.xlu0 %2101
        %v2103 = vsel %vm1885, %v2055, 0.0
        %2104 = vadd.xlane.f32.xlu0 %v2103
        %v2105 = vpop.xlane.xlu0 %2104
        %v2106 = vsel %vm1885, %v2056, 0.0
        %2107 = vadd.xlane.f32.xlu0 %v2106
        %v2108 = vpop.xlane.xlu0 %2107
        %v2109 = vsel %vm1885, %v2057, 0.0
        %2110 = vadd.xlane.f32.xlu0 %v2109
        %v2111 = vpop.xlane.xlu0 %2110
        %v2112 = vsel %vm1885, %v2058, 0.0
        %2113 = vadd.xlane.f32.xlu0 %v2112
        %v2114 = vpop.xlane.xlu0 %2113
        %v2115 = vsel %vm1885, %v2059, 0.0
        %2116 = vadd.xlane.f32.xlu0 %v2115
        %v2117 = vpop.xlane.xlu0 %2116
        %v2118 = vsel %vm1885, %v2060, 0.0
        %2119 = vadd.xlane.f32.xlu0 %v2118
        %v2120 = vpop.xlane.xlu0 %2119
        %v2121 = vsel %vm1885, %v2061, 0.0
        %2122 = vadd.xlane.f32.xlu0 %v2121
        %v2123 = vpop.xlane.xlu0 %2122
        %v2124 = vsel %vm1885, %v2062, 0.0
        %2125 = vadd.xlane.f32.xlu0 %v2124
        %v2126 = vpop.xlane.xlu0 %2125
        %v2127 = vsel %vm1885, %v2063, 0.0
        %2128 = vadd.xlane.f32.xlu0 %v2127
        %v2129 = vpop.xlane.xlu0 %2128
        %v2130 = vsel %vm1885, %v2064, 0.0
        %2131 = vadd.xlane.f32.xlu0 %v2130
        %v2132 = vpop.xlane.xlu0 %2131
        %v2133 = vsel %vm1885, %v2065, 0.0
        %2134 = vadd.xlane.f32.xlu0 %v2133
        %v2135 = vpop.xlane.xlu0 %2134
        %v2136 = vsel %vm1885, %v2066, 0.0
        %2137 = vadd.xlane.f32.xlu0 %v2136
        %v2138 = vpop.xlane.xlu0 %2137
        %v2139 = vsel %vm1885, %v2067, 0.0
        %2140 = vadd.xlane.f32.xlu0 %v2139
        %v2141 = vpop.xlane.xlu0 %2140
        %v2142 = vsel %vm1885, %v2068, 0.0
        %2143 = vadd.xlane.f32.xlu0 %v2142
        %v2144 = vpop.xlane.xlu0 %2143
        %v2145 = vsel %vm1885, %v2069, 0.0
        %2146 = vadd.xlane.f32.xlu0 %v2145
        %v2147 = vpop.xlane.xlu0 %2146
        %v2148 = vsel %vm1885, %v2070, 0.0
        %2149 = vadd.xlane.f32.xlu0 %v2148
        %v2150 = vpop.xlane.xlu0 %2149
        %v2151 = vsel %vm1885, %v2071, 0.0
        %2152 = vadd.xlane.f32.xlu0 %v2151
        %v2153 = vpop.xlane.xlu0 %2152
        %v2154 = vsel %vm1885, %v2072, 0.0
        %2155 = vadd.xlane.f32.xlu0 %v2154
        %v2156 = vpop.xlane.xlu0 %2155
        %v2157 = vsel %vm1885, %v2073, 0.0
        %2158 = vadd.xlane.f32.xlu0 %v2157
        %v2159 = vpop.xlane.xlu0 %2158
        %v2160 = vsel %vm1885, %v2074, 0.0
        %2161 = vadd.xlane.f32.xlu0 %v2160
        %v2162 = vpop.xlane.xlu0 %2161
        %v2163 = vsel %vm1885, %v2075, 0.0
        %2164 = vadd.xlane.f32.xlu0 %v2163
        %v2165 = vpop.xlane.xlu0 %2164
        %v2166 = vsel %vm1885, %v2076, 0.0
        %2167 = vadd.xlane.f32.xlu0 %v2166
        %v2168 = vpop.xlane.xlu0 %2167
        %v2169 = vsel %vm1885, %v2077, 0.0
        %2170 = vadd.xlane.f32.xlu0 %v2169
        %v2171 = vpop.xlane.xlu0 %2170
        %v2172 = vsel %vm1885, %v2078, 0.0
        %2173 = vadd.xlane.f32.xlu0 %v2172
        %v2174 = vpop.xlane.xlu0 %2173
        %v2175 = vmul.f32 %v2081, %v1982
        %v2176 = vmul.f32 %v2084, %v1982
        %v2177 = vmul.f32 %v2087, %v1982
        %v2178 = vmul.f32 %v2090, %v1982
        %v2179 = vmul.f32 %v2093, %v1982
        %v2180 = vmul.f32 %v2096, %v1982
        %v2181 = vmul.f32 %v2099, %v1982
        %v2182 = vmul.f32 %v2102, %v1982
        %v2183 = vmul.f32 %v2105, %v1982
        %v2184 = vmul.f32 %v2108, %v1982
        %v2185 = vmul.f32 %v2111, %v1982
        %v2186 = vmul.f32 %v2114, %v1982
        %v2187 = vmul.f32 %v2117, %v1982
        %v2188 = vmul.f32 %v2120, %v1982
        %v2189 = vmul.f32 %v2123, %v1982
        %v2190 = vmul.f32 %v2126, %v1982
        %v2191 = vmul.f32 %v2129, %v1982
        %v2192 = vmul.f32 %v2132, %v1982
        %v2193 = vmul.f32 %v2135, %v1982
        %v2194 = vmul.f32 %v2138, %v1982
        %v2195 = vmul.f32 %v2141, %v1982
        %v2196 = vmul.f32 %v2144, %v1982
        %v2197 = vmul.f32 %v2147, %v1982
        %v2198 = vmul.f32 %v2150, %v1982
        %v2199 = vmul.f32 %v2153, %v1982
        %v2200 = vmul.f32 %v2156, %v1982
        %v2201 = vmul.f32 %v2159, %v1982
        %v2202 = vmul.f32 %v2162, %v1982
        %v2203 = vmul.f32 %v2165, %v1982
        %v2204 = vmul.f32 %v2168, %v1982
        %v2205 = vmul.f32 %v2171, %v1982
        %v2206 = vmul.f32 %v2174, %v1982
        %v2207 = vadd.f32 %v2175, 1e-05
        %v2208 = vadd.f32 %v2176, 1e-05
        %v2209 = vadd.f32 %v2177, 1e-05
        %v2210 = vadd.f32 %v2178, 1e-05
        %v2211 = vadd.f32 %v2179, 1e-05
        %v2212 = vadd.f32 %v2180, 1e-05
        %v2213 = vadd.f32 %v2181, 1e-05
        %v2214 = vadd.f32 %v2182, 1e-05
        %v2215 = vadd.f32 %v2183, 1e-05
        %v2216 = vadd.f32 %v2184, 1e-05
        %v2217 = vadd.f32 %v2185, 1e-05
        %v2218 = vadd.f32 %v2186, 1e-05
        %v2219 = vadd.f32 %v2187, 1e-05
        %v2220 = vadd.f32 %v2188, 1e-05
        %v2221 = vadd.f32 %v2189, 1e-05
        %v2222 = vadd.f32 %v2190, 1e-05
        %v2223 = vadd.f32 %v2191, 1e-05
        %v2224 = vadd.f32 %v2192, 1e-05
        %v2225 = vadd.f32 %v2193, 1e-05
        %v2226 = vadd.f32 %v2194, 1e-05
        %v2227 = vadd.f32 %v2195, 1e-05
        %v2228 = vadd.f32 %v2196, 1e-05
        %v2229 = vadd.f32 %v2197, 1e-05
        %v2230 = vadd.f32 %v2198, 1e-05
        %v2231 = vadd.f32 %v2199, 1e-05
        %v2232 = vadd.f32 %v2200, 1e-05
        %v2233 = vadd.f32 %v2201, 1e-05
        %v2234 = vadd.f32 %v2202, 1e-05
        %v2235 = vadd.f32 %v2203, 1e-05
        %v2236 = vadd.f32 %v2204, 1e-05
        %v2237 = vadd.f32 %v2205, 1e-05
        %v2238 = vadd.f32 %v2206, 1e-05
        %v2239 = vrsqrt.pop %v2207
        %v2240 = vrsqrt.pop %v2208
        %v2241 = vrsqrt.pop %v2209
        %v2242 = vrsqrt.pop %v2210
        %v2243 = vrsqrt.pop %v2211
        %v2244 = vrsqrt.pop %v2212
        %v2245 = vrsqrt.pop %v2213
        %v2246 = vrsqrt.pop %v2214
        %v2247 = vrsqrt.pop %v2215
        %v2248 = vrsqrt.pop %v2216
        %v2249 = vrsqrt.pop %v2217
        %v2250 = vrsqrt.pop %v2218
        %v2251 = vrsqrt.pop %v2219
        %v2252 = vrsqrt.pop %v2220
        %v2253 = vrsqrt.pop %v2221
        %v2254 = vrsqrt.pop %v2222
        %v2255 = vrsqrt.pop %v2223
        %v2256 = vrsqrt.pop %v2224
        %v2257 = vrsqrt.pop %v2225
        %v2258 = vrsqrt.pop %v2226
        %v2259 = vrsqrt.pop %v2227
        %v2260 = vrsqrt.pop %v2228
        %v2261 = vrsqrt.pop %v2229
        %v2262 = vrsqrt.pop %v2230
        %v2263 = vrsqrt.pop %v2231
        %v2264 = vrsqrt.pop %v2232
        %v2265 = vrsqrt.pop %v2233
        %v2266 = vrsqrt.pop %v2234
        %v2267 = vrsqrt.pop %v2235
        %v2268 = vrsqrt.pop %v2236
        %v2269 = vrsqrt.pop %v2237
        %v2270 = vrsqrt.pop %v2238
        %v2271 = vmul.f32 %v2015, %v2239
        %v2272 = vmul.f32 %v2016, %v2240
        %v2273 = vmul.f32 %v2017, %v2241
        %v2274 = vmul.f32 %v2018, %v2242
        %v2275 = vmul.f32 %v2019, %v2243
        %v2276 = vmul.f32 %v2020, %v2244
        %v2277 = vmul.f32 %v2021, %v2245
        %v2278 = vmul.f32 %v2022, %v2246
        %v2279 = vmul.f32 %v2023, %v2247
        %v2280 = vmul.f32 %v2024, %v2248
        %v2281 = vmul.f32 %v2025, %v2249
        %v2282 = vmul.f32 %v2026, %v2250
        %v2283 = vmul.f32 %v2027, %v2251
        %v2284 = vmul.f32 %v2028, %v2252
        %v2285 = vmul.f32 %v2029, %v2253
        %v2286 = vmul.f32 %v2030, %v2254
        %v2287 = vmul.f32 %v2031, %v2255
        %v2288 = vmul.f32 %v2032, %v2256
        %v2289 = vmul.f32 %v2033, %v2257
        %v2290 = vmul.f32 %v2034, %v2258
        %v2291 = vmul.f32 %v2035, %v2259
        %v2292 = vmul.f32 %v2036, %v2260
        %v2293 = vmul.f32 %v2037, %v2261
        %v2294 = vmul.f32 %v2038, %v2262
        %v2295 = vmul.f32 %v2039, %v2263
        %v2296 = vmul.f32 %v2040, %v2264
        %v2297 = vmul.f32 %v2041, %v2265
        %v2298 = vmul.f32 %v2042, %v2266
        %v2299 = vmul.f32 %v2043, %v2267
        %v2300 = vmul.f32 %v2044, %v2268
        %v2301 = vmul.f32 %v2045, %v2269
        %v2302 = vmul.f32 %v2046, %v2270
        %v2303 = vld [vmem:[%s3] sm:$0x1]
        %v2305 = vlaneseq
        %v2306 = vshrl.u32 %v2305, 7
        %v2307 = vsub.s32 0, %v2306
        %v2308 = vrot.slane %v2303, %v2307
        %v2310 = vmul.f32 %v2271, %v2308
        %v2311 = vmul.f32 %v2272, %v2308
        %v2312 = vmul.f32 %v2273, %v2308
        %v2313 = vmul.f32 %v2274, %v2308
        %v2314 = vmul.f32 %v2275, %v2308
        %v2315 = vmul.f32 %v2276, %v2308
        %v2316 = vmul.f32 %v2277, %v2308
        %v2317 = vmul.f32 %v2278, %v2308
        %v2318 = vmul.f32 %v2279, %v2308
        %v2319 = vmul.f32 %v2280, %v2308
        %v2320 = vmul.f32 %v2281, %v2308
        %v2321 = vmul.f32 %v2282, %v2308
        %v2322 = vmul.f32 %v2283, %v2308
        %v2323 = vmul.f32 %v2284, %v2308
        %v2324 = vmul.f32 %v2285, %v2308
        %v2325 = vmul.f32 %v2286, %v2308
        %v2326 = vmul.f32 %v2287, %v2308
        %v2327 = vmul.f32 %v2288, %v2308
        %v2328 = vmul.f32 %v2289, %v2308
        %v2329 = vmul.f32 %v2290, %v2308
        %v2330 = vmul.f32 %v2291, %v2308
        %v2331 = vmul.f32 %v2292, %v2308
        %v2332 = vmul.f32 %v2293, %v2308
        %v2333 = vmul.f32 %v2294, %v2308
        %v2334 = vmul.f32 %v2295, %v2308
        %v2335 = vmul.f32 %v2296, %v2308
        %v2336 = vmul.f32 %v2297, %v2308
        %v2337 = vmul.f32 %v2298, %v2308
        %v2338 = vmul.f32 %v2299, %v2308
        %v2339 = vmul.f32 %v2300, %v2308
        %v2340 = vmul.f32 %v2301, %v2308
        %v2341 = vmul.f32 %v2302, %v2308
        %v2342 = vld [vmem:[%s4] sm:$0x1]
        %v2344 = vlaneseq
        %v2345 = vshrl.u32 %v2344, 7
        %v2346 = vsub.s32 0, %v2345
        %v2347 = vrot.slane %v2342, %v2346
        %v2349 = vadd.f32 %v2310, %v2347
        %v2350 = vadd.f32 %v2311, %v2347
        %v2351 = vadd.f32 %v2312, %v2347
        %v2352 = vadd.f32 %v2313, %v2347
        %v2353 = vadd.f32 %v2314, %v2347
        %v2354 = vadd.f32 %v2315, %v2347
        %v2355 = vadd.f32 %v2316, %v2347
        %v2356 = vadd.f32 %v2317, %v2347
        %v2357 = vadd.f32 %v2318, %v2347
        %v2358 = vadd.f32 %v2319, %v2347
        %v2359 = vadd.f32 %v2320, %v2347
        %v2360 = vadd.f32 %v2321, %v2347
        %v2361 = vadd.f32 %v2322, %v2347
        %v2362 = vadd.f32 %v2323, %v2347
        %v2363 = vadd.f32 %v2324, %v2347
        %v2364 = vadd.f32 %v2325, %v2347
        %v2365 = vadd.f32 %v2326, %v2347
        %v2366 = vadd.f32 %v2327, %v2347
        %v2367 = vadd.f32 %v2328, %v2347
        %v2368 = vadd.f32 %v2329, %v2347
        %v2369 = vadd.f32 %v2330, %v2347
        %v2370 = vadd.f32 %v2331, %v2347
        %v2371 = vadd.f32 %v2332, %v2347
        %v2372 = vadd.f32 %v2333, %v2347
        %v2373 = vadd.f32 %v2334, %v2347
        %v2374 = vadd.f32 %v2335, %v2347
        %v2375 = vadd.f32 %v2336, %v2347
        %v2376 = vadd.f32 %v2337, %v2347
        %v2377 = vadd.f32 %v2338, %v2347
        %v2378 = vadd.f32 %v2339, %v2347
        %v2379 = vadd.f32 %v2340, %v2347
        %v2380 = vadd.f32 %v2341, %v2347
        %v2381 = vpack.c.bf16 %v2350, %v2349
        %v2382 = vpack.c.bf16 %v2352, %v2351
        %v2383 = vpack.c.bf16 %v2354, %v2353
        %v2384 = vpack.c.bf16 %v2356, %v2355
        %v2385 = vpack.c.bf16 %v2358, %v2357
        %v2386 = vpack.c.bf16 %v2360, %v2359
        %v2387 = vpack.c.bf16 %v2362, %v2361
        %v2388 = vpack.c.bf16 %v2364, %v2363
        %v2389 = vpack.c.bf16 %v2366, %v2365
        %v2390 = vpack.c.bf16 %v2368, %v2367
        %v2391 = vpack.c.bf16 %v2370, %v2369
        %v2392 = vpack.c.bf16 %v2372, %v2371
        %v2393 = vpack.c.bf16 %v2374, %v2373
        %v2394 = vpack.c.bf16 %v2376, %v2375
        %v2395 = vpack.c.bf16 %v2378, %v2377
        %v2396 = vpack.c.bf16 %v2380, %v2379
        %v2397 = vld [vmem:[%s5] sm:$0xff]
        %v2398 = vld [vmem:[%s5 + $0x8] sm:$0xff]
        %v2399 = vld [vmem:[%s5 + $0x10] sm:$0xff]
        %v2400 = vld [vmem:[%s5 + $0x18] sm:$0xff]
        %v2401 = vld [vmem:[%s5 + $0x20] sm:$0xff]
        %v2402 = vld [vmem:[%s5 + $0x28] sm:$0xff]
        %v2403 = vld [vmem:[%s5 + $0x30] sm:$0xff]
        %v2404 = vld [vmem:[%s5 + $0x38] sm:$0xff]
        %v2405 = vld [vmem:[%s6] sm:$0x3]
        %v2407 = vlaneseq
        %v2408 = vshrl.u32 %v2407, 7
        %v2409 = vsub.s32 0, %v2408
        %v2410 = vrot.slane %v2405, %v2409
        %v2411 = vlaneseq
        %v2412 = vshrl.u32 %v2411, 7
        %v2413 = vsub.s32 1, %v2412
        %v2414 = vrot.slane %v2405, %v2413
        %v2425 = vunpack.c.l.b16 %v2397
        %v2426 = vunpack.c.h.b16 %v2397
        %v2427 = vunpack.c.l.b16 %v2398
        %v2428 = vunpack.c.h.b16 %v2398
        %v2429 = vunpack.c.l.b16 %v2399
        %v2430 = vunpack.c.h.b16 %v2399
        %v2431 = vunpack.c.l.b16 %v2400
        %v2432 = vunpack.c.h.b16 %v2400
        %v2433 = vunpack.c.l.b16 %v2401
        %v2434 = vunpack.c.h.b16 %v2401
        %v2435 = vunpack.c.l.b16 %v2402
        %v2436 = vunpack.c.h.b16 %v2402
        %v2437 = vunpack.c.l.b16 %v2403
        %v2438 = vunpack.c.h.b16 %v2403
        %v2439 = vunpack.c.l.b16 %v2404
        %v2440 = vunpack.c.h.b16 %v2404
        %v2441 = vpack.c.b16 %v2427, %v2425
        %v2442 = vpack.c.b16 %v2428, %v2426
        %v2443 = vpack.c.b16 %v2431, %v2429
        %v2444 = vpack.c.b16 %v2432, %v2430
        %v2445 = vpack.c.b16 %v2435, %v2433
        %v2446 = vpack.c.b16 %v2436, %v2434
        %v2447 = vpack.c.b16 %v2439, %v2437
        %v2448 = vpack.c.b16 %v2440, %v2438
        %v2458 = vsel %vm1885, %v2381, 0
        %v2461 = vsel %vm1885, %v2382, 0
        %v2464 = vsel %vm1885, %v2383, 0
        %v2467 = vsel %vm1885, %v2384, 0
        %v2470 = vsel %vm1885, %v2385, 0
        %v2473 = vsel %vm1885, %v2386, 0
        %v2476 = vsel %vm1885, %v2387, 0
        %v2479 = vsel %vm1885, %v2388, 0
        %v2482 = vsel %vm1885, %v2389, 0
        %v2485 = vsel %vm1885, %v2390, 0
        %v2488 = vsel %vm1885, %v2391, 0
        %v2491 = vsel %vm1885, %v2392, 0
        %v2494 = vsel %vm1885, %v2393, 0
        %v2497 = vsel %vm1885, %v2394, 0
        %v2500 = vsel %vm1885, %v2395, 0
        %v2503 = vsel %vm1885, %v2396, 0
        %2505 = vmatprep.subr.bf16.mxu0 %v2442
        %2506 = vmatpush1.bf16.msra.mxu0 %v2441
        %2507 = vmatprep.subr.bf16.mxu0 %v2444
        %2508 = vmatpush1.bf16.msra.mxu0 %v2443
        %2509 = vmatprep.subr.bf16.mxu0 %v2446
        %2510 = vmatpush1.bf16.msra.mxu0 %v2445
        %2511 = vmatprep.subr.bf16.mxu0 %v2448
        %2512 = vmatpush1.bf16.msra.mxu0 %v2447
        %2513 = vmatprep.subr.bf16.mxu0 0
        %2514 = vmatpush1.bf16.msra.mxu0 0
        %2515 = vmatprep.subr.bf16.mxu0 0
        %2516 = vmatpush1.bf16.msra.mxu0 0
        %2517 = vmatprep.subr.bf16.mxu0 0
        %2518 = vmatpush1.bf16.msra.mxu0 0
        %2519 = vmatprep.subr.bf16.mxu0 0
        %2520 = vmatpush1.bf16.msra.mxu0 0
        %2521 = vmatprep.subr.bf16.mxu0 0
        %2522 = vmatpush1.bf16.msra.mxu0 0
        %2523 = vmatprep.subr.bf16.mxu0 0
        %2524 = vmatpush1.bf16.msra.mxu0 0
        %2525 = vmatprep.subr.bf16.mxu0 0
        %2526 = vmatpush1.bf16.msra.mxu0 0
        %2527 = vmatprep.subr.bf16.mxu0 0
        %2528 = vmatpush1.bf16.msra.mxu0 0
        %2529 = vmatprep.subr.bf16.mxu0 0
        %2530 = vmatpush1.bf16.msra.mxu0 0
        %2531 = vmatprep.subr.bf16.mxu0 0
        %2532 = vmatpush1.bf16.msra.mxu0 0
        %2533 = vmatprep.subr.bf16.mxu0 0
        %2534 = vmatpush1.bf16.msra.mxu0 0
        %2535 = vmatprep.subr.bf16.mxu0 0
        %2536 = vmatpush1.bf16.msra.mxu0 0
        %2537 = vmatprep.mubr.bf16.mxu0 0
        %2538 = vmatmul.mubr.bf16.gmra.mrb[0].mxu0 %v2458
        %v2539 = vpop.f32.mrb[0].mxu0
        %v2540 = vadd.f32 %v2410, %v2539
        %v2541 = vpop.f32.mrb[0].mxu0
        %v2542 = vadd.f32 %v2414, %v2541
        %v2543 = vpop.f32.mrb[0].mxu0
        %v2544 = vadd.f32 %v2410, %v2543
        %v2545 = vpop.f32.mrb[0].mxu0
        %v2546 = vadd.f32 %v2414, %v2545
        %2547 = vmatprep.mubr.bf16.mxu0 0
        %2548 = vmatmul.mubr.bf16.gmra.mrb[0].mxu0 %v2461
        %v2549 = vpop.f32.mrb[0].mxu0
        %v2550 = vadd.f32 %v2410, %v2549
        %v2551 = vpop.f32.mrb[0].mxu0
        %v2552 = vadd.f32 %v2414, %v2551
        %v2553 = vpop.f32.mrb[0].mxu0
        %v2554 = vadd.f32 %v2410, %v2553
        %v2555 = vpop.f32.mrb[0].mxu0
        %v2556 = vadd.f32 %v2414, %v2555
        %2557 = vmatprep.mubr.bf16.mxu0 0
        %2558 = vmatmul.mubr.bf16.gmra.mrb[0].mxu0 %v2464
        %v2559 = vpop.f32.mrb[0].mxu0
        %v2560 = vadd.f32 %v2410, %v2559
        %v2561 = vpop.f32.mrb[0].mxu0
        %v2562 = vadd.f32 %v2414, %v2561
        %v2563 = vpop.f32.mrb[0].mxu0
        %v2564 = vadd.f32 %v2410, %v2563
        %v2565 = vpop.f32.mrb[0].mxu0
        %v2566 = vadd.f32 %v2414, %v2565
        %2567 = vmatprep.mubr.bf16.mxu0 0
        %2568 = vmatmul.mubr.bf16.gmra.mrb[0].mxu0 %v2467
        %v2569 = vpop.f32.mrb[0].mxu0
        %v2570 = vadd.f32 %v2410, %v2569
        %v2571 = vpop.f32.mrb[0].mxu0
        %v2572 = vadd.f32 %v2414, %v2571
        %v2573 = vpop.f32.mrb[0].mxu0
        %v2574 = vadd.f32 %v2410, %v2573
        %v2575 = vpop.f32.mrb[0].mxu0
        %v2576 = vadd.f32 %v2414, %v2575
        %2577 = vmatprep.mubr.bf16.mxu0 0
        %2578 = vmatmul.mubr.bf16.gmra.mrb[0].mxu0 %v2470
        %v2579 = vpop.f32.mrb[0].mxu0
        %v2580 = vadd.f32 %v2410, %v2579
        %v2581 = vpop.f32.mrb[0].mxu0
        %v2582 = vadd.f32 %v2414, %v2581
        %v2583 = vpop.f32.mrb[0].mxu0
        %v2584 = vadd.f32 %v2410, %v2583
        %v2585 = vpop.f32.mrb[0].mxu0
        %v2586 = vadd.f32 %v2414, %v2585
        %2587 = vmatprep.mubr.bf16.mxu0 0
        %2588 = vmatmul.mubr.bf16.gmra.mrb[0].mxu0 %v2473
        %v2589 = vpop.f32.mrb[0].mxu0
        %v2590 = vadd.f32 %v2410, %v2589
        %v2591 = vpop.f32.mrb[0].mxu0
        %v2592 = vadd.f32 %v2414, %v2591
        %v2593 = vpop.f32.mrb[0].mxu0
        %v2594 = vadd.f32 %v2410, %v2593
        %v2595 = vpop.f32.mrb[0].mxu0
        %v2596 = vadd.f32 %v2414, %v2595
        %2597 = vmatprep.mubr.bf16.mxu0 0
        %2598 = vmatmul.mubr.bf16.gmra.mrb[0].mxu0 %v2476
        %v2599 = vpop.f32.mrb[0].mxu0
        %v2600 = vadd.f32 %v2410, %v2599
        %v2601 = vpop.f32.mrb[0].mxu0
        %v2602 = vadd.f32 %v2414, %v2601
        %v2603 = vpop.f32.mrb[0].mxu0
        %v2604 = vadd.f32 %v2410, %v2603
        %v2605 = vpop.f32.mrb[0].mxu0
        %v2606 = vadd.f32 %v2414, %v2605
        %2607 = vmatprep.mubr.bf16.mxu0 0
        %2608 = vmatmul.mubr.bf16.gmra.mrb[0].mxu0 %v2479
        %v2609 = vpop.f32.mrb[0].mxu0
        %v2610 = vadd.f32 %v2410, %v2609
        %v2611 = vpop.f32.mrb[0].mxu0
        %v2612 = vadd.f32 %v2414, %v2611
        %v2613 = vpop.f32.mrb[0].mxu0
        %v2614 = vadd.f32 %v2410, %v2613
        %v2615 = vpop.f32.mrb[0].mxu0
        %v2616 = vadd.f32 %v2414, %v2615
        %2617 = vmatprep.mubr.bf16.mxu0 0
        %2618 = vmatmul.mubr.bf16.gmra.mrb[0].mxu0 %v2482
        %v2619 = vpop.f32.mrb[0].mxu0
        %v2620 = vadd.f32 %v2410, %v2619
        %v2621 = vpop.f32.mrb[0].mxu0
        %v2622 = vadd.f32 %v2414, %v2621
        %v2623 = vpop.f32.mrb[0].mxu0
        %v2624 = vadd.f32 %v2410, %v2623
        %v2625 = vpop.f32.mrb[0].mxu0
        %v2626 = vadd.f32 %v2414, %v2625
        %2627 = vmatprep.mubr.bf16.mxu0 0
        %2628 = vmatmul.mubr.bf16.gmra.mrb[0].mxu0 %v2485
        %v2629 = vpop.f32.mrb[0].mxu0
        %v2630 = vadd.f32 %v2410, %v2629
        %v2631 = vpop.f32.mrb[0].mxu0
        %v2632 = vadd.f32 %v2414, %v2631
        %v2633 = vpop.f32.mrb[0].mxu0
        %v2634 = vadd.f32 %v2410, %v2633
        %v2635 = vpop.f32.mrb[0].mxu0
        %v2636 = vadd.f32 %v2414, %v2635
        %2637 = vmatprep.mubr.bf16.mxu0 0
        %2638 = vmatmul.mubr.bf16.gmra.mrb[0].mxu0 %v2488
        %v2639 = vpop.f32.mrb[0].mxu0
        %v2640 = vadd.f32 %v2410, %v2639
        %v2641 = vpop.f32.mrb[0].mxu0
        %v2642 = vadd.f32 %v2414, %v2641
        %v2643 = vpop.f32.mrb[0].mxu0
        %v2644 = vadd.f32 %v2410, %v2643
        %v2645 = vpop.f32.mrb[0].mxu0
        %v2646 = vadd.f32 %v2414, %v2645
        %2647 = vmatprep.mubr.bf16.mxu0 0
        %2648 = vmatmul.mubr.bf16.gmra.mrb[0].mxu0 %v2491
        %v2649 = vpop.f32.mrb[0].mxu0
        %v2650 = vadd.f32 %v2410, %v2649
        %v2651 = vpop.f32.mrb[0].mxu0
        %v2652 = vadd.f32 %v2414, %v2651
        %v2653 = vpop.f32.mrb[0].mxu0
        %v2654 = vadd.f32 %v2410, %v2653
        %v2655 = vpop.f32.mrb[0].mxu0
        %v2656 = vadd.f32 %v2414, %v2655
        %2657 = vmatprep.mubr.bf16.mxu0 0
        %2658 = vmatmul.mubr.bf16.gmra.mrb[0].mxu0 %v2494
        %v2659 = vpop.f32.mrb[0].mxu0
        %v2660 = vadd.f32 %v2410, %v2659
        %v2661 = vpop.f32.mrb[0].mxu0
        %v2662 = vadd.f32 %v2414, %v2661
        %v2663 = vpop.f32.mrb[0].mxu0
        %v2664 = vadd.f32 %v2410, %v2663
        %v2665 = vpop.f32.mrb[0].mxu0
        %v2666 = vadd.f32 %v2414, %v2665
        %2667 = vmatprep.mubr.bf16.mxu0 0
        %2668 = vmatmul.mubr.bf16.gmra.mrb[0].mxu0 %v2497
        %v2669 = vpop.f32.mrb[0].mxu0
        %v2670 = vadd.f32 %v2410, %v2669
        %v2671 = vpop.f32.mrb[0].mxu0
        %v2672 = vadd.f32 %v2414, %v2671
        %v2673 = vpop.f32.mrb[0].mxu0
        %v2674 = vadd.f32 %v2410, %v2673
        %v2675 = vpop.f32.mrb[0].mxu0
        %v2676 = vadd.f32 %v2414, %v2675
        %2677 = vmatprep.mubr.bf16.mxu0 0
        %2678 = vmatmul.mubr.bf16.gmra.mrb[0].mxu0 %v2500
        %v2679 = vpop.f32.mrb[0].mxu0
        %v2680 = vadd.f32 %v2410, %v2679
        %v2681 = vpop.f32.mrb[0].mxu0
        %v2682 = vadd.f32 %v2414, %v2681
        %v2683 = vpop.f32.mrb[0].mxu0
        %v2684 = vadd.f32 %v2410, %v2683
        %v2685 = vpop.f32.mrb[0].mxu0
        %v2686 = vadd.f32 %v2414, %v2685
        %2687 = vmatprep.mubr.bf16.mxu0 0
        %2688 = vmatmul.mubr.bf16.gmra.mrb[0].mxu0 %v2503
        %v2689 = vpop.f32.mrb[0].mxu0
        %v2690 = vadd.f32 %v2410, %v2689
        %v2691 = vpop.f32.mrb[0].mxu0
        %v2692 = vadd.f32 %v2414, %v2691
        %v2693 = vpop.f32.mrb[0].mxu0
        %v2694 = vadd.f32 %v2410, %v2693
        %v2695 = vpop.f32.mrb[0].mxu0
        %v2696 = vadd.f32 %v2414, %v2695
        %2697 = vdwg.mxu0
        %v2698 = vmax.f32 %v2540, 0.0
        %v2699 = vmax.f32 %v2542, 0.0
        %v2700 = vmax.f32 %v2544, 0.0
        %v2701 = vmax.f32 %v2546, 0.0
        %v2702 = vmax.f32 %v2550, 0.0
        %v2703 = vmax.f32 %v2552, 0.0
        %v2704 = vmax.f32 %v2554, 0.0
        %v2705 = vmax.f32 %v2556, 0.0
        %v2706 = vmax.f32 %v2560, 0.0
        %v2707 = vmax.f32 %v2562, 0.0
        %v2708 = vmax.f32 %v2564, 0.0
        %v2709 = vmax.f32 %v2566, 0.0
        %v2710 = vmax.f32 %v2570, 0.0
        %v2711 = vmax.f32 %v2572, 0.0
        %v2712 = vmax.f32 %v2574, 0.0
        %v2713 = vmax.f32 %v2576, 0.0
        %v2714 = vmax.f32 %v2580, 0.0
        %v2715 = vmax.f32 %v2582, 0.0
        %v2716 = vmax.f32 %v2584, 0.0
        %v2717 = vmax.f32 %v2586, 0.0
        %v2718 = vmax.f32 %v2590, 0.0
        %v2719 = vmax.f32 %v2592, 0.0
        %v2720 = vmax.f32 %v2594, 0.0
        %v2721 = vmax.f32 %v2596, 0.0
        %v2722 = vmax.f32 %v2600, 0.0
        %v2723 = vmax.f32 %v2602, 0.0
        %v2724 = vmax.f32 %v2604, 0.0
        %v2725 = vmax.f32 %v2606, 0.0
        %v2726 = vmax.f32 %v2610, 0.0
        %v2727 = vmax.f32 %v2612, 0.0
        %v2728 = vmax.f32 %v2614, 0.0
        %v2729 = vmax.f32 %v2616, 0.0
        %v2730 = vmax.f32 %v2620, 0.0
        %v2731 = vmax.f32 %v2622, 0.0
        %v2732 = vmax.f32 %v2624, 0.0
        %v2733 = vmax.f32 %v2626, 0.0
        %v2734 = vmax.f32 %v2630, 0.0
        %v2735 = vmax.f32 %v2632, 0.0
        %v2736 = vmax.f32 %v2634, 0.0
        %v2737 = vmax.f32 %v2636, 0.0
        %v2738 = vmax.f32 %v2640, 0.0
        %v2739 = vmax.f32 %v2642, 0.0
        %v2740 = vmax.f32 %v2644, 0.0
        %v2741 = vmax.f32 %v2646, 0.0
        %v2742 = vmax.f32 %v2650, 0.0
        %v2743 = vmax.f32 %v2652, 0.0
        %v2744 = vmax.f32 %v2654, 0.0
        %v2745 = vmax.f32 %v2656, 0.0
        %v2746 = vmax.f32 %v2660, 0.0
        %v2747 = vmax.f32 %v2662, 0.0
        %v2748 = vmax.f32 %v2664, 0.0
        %v2749 = vmax.f32 %v2666, 0.0
        %v2750 = vmax.f32 %v2670, 0.0
        %v2751 = vmax.f32 %v2672, 0.0
        %v2752 = vmax.f32 %v2674, 0.0
        %v2753 = vmax.f32 %v2676, 0.0
        %v2754 = vmax.f32 %v2680, 0.0
        %v2755 = vmax.f32 %v2682, 0.0
        %v2756 = vmax.f32 %v2684, 0.0
        %v2757 = vmax.f32 %v2686, 0.0
        %v2758 = vmax.f32 %v2690, 0.0
        %v2759 = vmax.f32 %v2692, 0.0
        %v2760 = vmax.f32 %v2694, 0.0
        %v2761 = vmax.f32 %v2696, 0.0
        %v2762 = vpack.c.bf16 %v2700, %v2698
        %v2763 = vpack.c.bf16 %v2701, %v2699
        %v2764 = vpack.c.bf16 %v2704, %v2702
        %v2765 = vpack.c.bf16 %v2705, %v2703
        %v2766 = vpack.c.bf16 %v2708, %v2706
        %v2767 = vpack.c.bf16 %v2709, %v2707
        %v2768 = vpack.c.bf16 %v2712, %v2710
        %v2769 = vpack.c.bf16 %v2713, %v2711
        %v2770 = vpack.c.bf16 %v2716, %v2714
        %v2771 = vpack.c.bf16 %v2717, %v2715
        %v2772 = vpack.c.bf16 %v2720, %v2718
        %v2773 = vpack.c.bf16 %v2721, %v2719
        %v2774 = vpack.c.bf16 %v2724, %v2722
        %v2775 = vpack.c.bf16 %v2725, %v2723
        %v2776 = vpack.c.bf16 %v2728, %v2726
        %v2777 = vpack.c.bf16 %v2729, %v2727
        %v2778 = vpack.c.bf16 %v2732, %v2730
        %v2779 = vpack.c.bf16 %v2733, %v2731
        %v2780 = vpack.c.bf16 %v2736, %v2734
        %v2781 = vpack.c.bf16 %v2737, %v2735
        %v2782 = vpack.c.bf16 %v2740, %v2738
        %v2783 = vpack.c.bf16 %v2741, %v2739
        %v2784 = vpack.c.bf16 %v2744, %v2742
        %v2785 = vpack.c.bf16 %v2745, %v2743
        %v2786 = vpack.c.bf16 %v2748, %v2746
        %v2787 = vpack.c.bf16 %v2749, %v2747
        %v2788 = vpack.c.bf16 %v2752, %v2750
        %v2789 = vpack.c.bf16 %v2753, %v2751
        %v2790 = vpack.c.bf16 %v2756, %v2754
        %v2791 = vpack.c.bf16 %v2757, %v2755
        %v2792 = vpack.c.bf16 %v2760, %v2758
        %v2793 = vpack.c.bf16 %v2761, %v2759
        %v2794 = vld [vmem:[%s7] sm:$0xff]
        %v2795 = vld [vmem:[%s7 + $0x8] sm:$0xff]
        %v2796 = vld [vmem:[%s7 + $0x10] sm:$0xff]
        %v2797 = vld [vmem:[%s7 + $0x18] sm:$0xff]
        %v2798 = vld [vmem:[%s7 + $0x20] sm:$0xff]
        %v2799 = vld [vmem:[%s7 + $0x28] sm:$0xff]
        %v2800 = vld [vmem:[%s7 + $0x30] sm:$0xff]
        %v2801 = vld [vmem:[%s7 + $0x38] sm:$0xff]
        %v2802 = vld [vmem:[%s7 + $0x40] sm:$0xff]
        %v2803 = vld [vmem:[%s7 + $0x48] sm:$0xff]
        %v2804 = vld [vmem:[%s7 + $0x50] sm:$0xff]
        %v2805 = vld [vmem:[%s7 + $0x58] sm:$0xff]
        %v2806 = vld [vmem:[%s7 + $0x60] sm:$0xff]
        %v2807 = vld [vmem:[%s7 + $0x68] sm:$0xff]
        %v2808 = vld [vmem:[%s7 + $0x70] sm:$0xff]
        %v2809 = vld [vmem:[%s7 + $0x78] sm:$0xff]
        %v2810 = vld [vmem:[%s7 + $0x80] sm:$0xff]
        %v2811 = vld [vmem:[%s7 + $0x88] sm:$0xff]
        %v2812 = vld [vmem:[%s7 + $0x90] sm:$0xff]
        %v2813 = vld [vmem:[%s7 + $0x98] sm:$0xff]
        %v2814 = vld [vmem:[%s7 + $0xa0] sm:$0xff]
        %v2815 = vld [vmem:[%s7 + $0xa8] sm:$0xff]
        %v2816 = vld [vmem:[%s7 + $0xb0] sm:$0xff]
        %v2817 = vld [vmem:[%s7 + $0xb8] sm:$0xff]
        %v2818 = vld [vmem:[%s7 + $0xc0] sm:$0xff]
        %v2819 = vld [vmem:[%s7 + $0xc8] sm:$0xff]
        %v2820 = vld [vmem:[%s7 + $0xd0] sm:$0xff]
        %v2821 = vld [vmem:[%s7 + $0xd8] sm:$0xff]
        %v2822 = vld [vmem:[%s7 + $0xe0] sm:$0xff]
        %v2823 = vld [vmem:[%s7 + $0xe8] sm:$0xff]
        %v2824 = vld [vmem:[%s7 + $0xf0] sm:$0xff]
        %v2825 = vld [vmem:[%s7 + $0xf8] sm:$0xff]
        %v2826 = vld [vmem:[%s8] sm:$0x3]
        %v2828 = vlaneseq
        %v2829 = vshrl.u32 %v2828, 7
        %v2830 = vsub.s32 0, %v2829
        %v2831 = vrot.slane %v2826, %v2830
        %v2832 = vlaneseq
        %v2833 = vshrl.u32 %v2832, 7
        %v2834 = vsub.s32 1, %v2833
        %v2835 = vrot.slane %v2826, %v2834
        %v2870 = vunpack.c.l.b16 %v2794
        %v2871 = vunpack.c.h.b16 %v2794
        %v2872 = vunpack.c.l.b16 %v2795
        %v2873 = vunpack.c.h.b16 %v2795
        %v2874 = vunpack.c.l.b16 %v2796
        %v2875 = vunpack.c.h.b16 %v2796
        %v2876 = vunpack.c.l.b16 %v2797
        %v2877 = vunpack.c.h.b16 %v2797
        %v2878 = vunpack.c.l.b16 %v2798
        %v2879 = vunpack.c.h.b16 %v2798
        %v2880 = vunpack.c.l.b16 %v2799
        %v2881 = vunpack.c.h.b16 %v2799
        %v2882 = vunpack.c.l.b16 %v2800
        %v2883 = vunpack.c.h.b16 %v2800
        %v2884 = vunpack.c.l.b16 %v2801
        %v2885 = vunpack.c.h.b16 %v2801
        %v2886 = vunpack.c.l.b16 %v2802
        %v2887 = vunpack.c.h.b16 %v2802
        %v2888 = vunpack.c.l.b16 %v2803
        %v2889 = vunpack.c.h.b16 %v2803
        %v2890 = vunpack.c.l.b16 %v2804
        %v2891 = vunpack.c.h.b16 %v2804
        %v2892 = vunpack.c.l.b16 %v2805
        %v2893 = vunpack.c.h.b16 %v2805
        %v2894 = vunpack.c.l.b16 %v2806
        %v2895 = vunpack.c.h.b16 %v2806
        %v2896 = vunpack.c.l.b16 %v2807
        %v2897 = vunpack.c.h.b16 %v2807
        %v2898 = vunpack.c.l.b16 %v2808
        %v2899 = vunpack.c.h.b16 %v2808
        %v2900 = vunpack.c.l.b16 %v2809
        %v2901 = vunpack.c.h.b16 %v2809
        %v2902 = vunpack.c.l.b16 %v2810
        %v2903 = vunpack.c.h.b16 %v2810
        %v2904 = vunpack.c.l.b16 %v2811
        %v2905 = vunpack.c.h.b16 %v2811
        %v2906 = vunpack.c.l.b16 %v2812
        %v2907 = vunpack.c.h.b16 %v2812
        %v2908 = vunpack.c.l.b16 %v2813
        %v2909 = vunpack.c.h.b16 %v2813
        %v2910 = vunpack.c.l.b16 %v2814
        %v2911 = vunpack.c.h.b16 %v2814
        %v2912 = vunpack.c.l.b16 %v2815
        %v2913 = vunpack.c.h.b16 %v2815
        %v2914 = vunpack.c.l.b16 %v2816
        %v2915 = vunpack.c.h.b16 %v2816
        %v2916 = vunpack.c.l.b16 %v2817
        %v2917 = vunpack.c.h.b16 %v2817
        %v2918 = vunpack.c.l.b16 %v2818
        %v2919 = vunpack.c.h.b16 %v2818
        %v2920 = vunpack.c.l.b16 %v2819
        %v2921 = vunpack.c.h.b16 %v2819
        %v2922 = vunpack.c.l.b16 %v2820
        %v2923 = vunpack.c.h.b16 %v2820
        %v2924 = vunpack.c.l.b16 %v2821
        %v2925 = vunpack.c.h.b16 %v2821
        %v2926 = vunpack.c.l.b16 %v2822
        %v2927 = vunpack.c.h.b16 %v2822
        %v2928 = vunpack.c.l.b16 %v2823
        %v2929 = vunpack.c.h.b16 %v2823
        %v2930 = vunpack.c.l.b16 %v2824
        %v2931 = vunpack.c.h.b16 %v2824
        %v2932 = vunpack.c.l.b16 %v2825
        %v2933 = vunpack.c.h.b16 %v2825
        %v2934 = vpack.c.b16 %v2872, %v2870
        %v2935 = vpack.c.b16 %v2873, %v2871
        %v2936 = vpack.c.b16 %v2876, %v2874
        %v2937 = vpack.c.b16 %v2877, %v2875
        %v2938 = vpack.c.b16 %v2880, %v2878
        %v2939 = vpack.c.b16 %v2881, %v2879
        %v2940 = vpack.c.b16 %v2884, %v2882
        %v2941 = vpack.c.b16 %v2885, %v2883
        %v2942 = vpack.c.b16 %v2888, %v2886
        %v2943 = vpack.c.b16 %v2889, %v2887
        %v2944 = vpack.c.b16 %v2892, %v2890
        %v2945 = vpack.c.b16 %v2893, %v2891
        %v2946 = vpack.c.b16 %v2896, %v2894
        %v2947 = vpack.c.b16 %v2897, %v2895
        %v2948 = vpack.c.b16 %v2900, %v2898
        %v2949 = vpack.c.b16 %v2901, %v2899
        %v2950 = vpack.c.b16 %v2904, %v2902
        %v2951 = vpack.c.b16 %v2905, %v2903
        %v2952 = vpack.c.b16 %v2908, %v2906
        %v2953 = vpack.c.b16 %v2909, %v2907
        %v2954 = vpack.c.b16 %v2912, %v2910
        %v2955 = vpack.c.b16 %v2913, %v2911
        %v2956 = vpack.c.b16 %v2916, %v2914
        %v2957 = vpack.c.b16 %v2917, %v2915
        %v2958 = vpack.c.b16 %v2920, %v2918
        %v2959 = vpack.c.b16 %v2921, %v2919
        %v2960 = vpack.c.b16 %v2924, %v2922
        %v2961 = vpack.c.b16 %v2925, %v2923
        %v2962 = vpack.c.b16 %v2928, %v2926
        %v2963 = vpack.c.b16 %v2929, %v2927
        %v2964 = vpack.c.b16 %v2932, %v2930
        %v2965 = vpack.c.b16 %v2933, %v2931
        %2998 = vmatprep.subr.bf16.mxu0 %v2935
        %2999 = vmatpush1.bf16.msra.mxu0 %v2934
        %3000 = vmatprep.subr.bf16.mxu0 %v2937
        %3001 = vmatpush1.bf16.msra.mxu0 %v2936
        %3002 = vmatprep.subr.bf16.mxu0 %v2939
        %3003 = vmatpush1.bf16.msra.mxu0 %v2938
        %3004 = vmatprep.subr.bf16.mxu0 %v2941
        %3005 = vmatpush1.bf16.msra.mxu0 %v2940
        %3006 = vmatprep.subr.bf16.mxu0 %v2943
        %3007 = vmatpush1.bf16.msra.mxu0 %v2942
        %3008 = vmatprep.subr.bf16.mxu0 %v2945
        %3009 = vmatpush1.bf16.msra.mxu0 %v2944
        %3010 = vmatprep.subr.bf16.mxu0 %v2947
        %3011 = vmatpush1.bf16.msra.mxu0 %v2946
        %3012 = vmatprep.subr.bf16.mxu0 %v2949
        %3013 = vmatpush1.bf16.msra.mxu0 %v2948
        %3014 = vmatprep.subr.bf16.mxu0 %v2951
        %3015 = vmatpush1.bf16.msra.mxu0 %v2950
        %3016 = vmatprep.subr.bf16.mxu0 %v2953
        %3017 = vmatpush1.bf16.msra.mxu0 %v2952
        %3018 = vmatprep.subr.bf16.mxu0 %v2955
        %3019 = vmatpush1.bf16.msra.mxu0 %v2954
        %3020 = vmatprep.subr.bf16.mxu0 %v2957
        %3021 = vmatpush1.bf16.msra.mxu0 %v2956
        %3022 = vmatprep.subr.bf16.mxu0 %v2959
        %3023 = vmatpush1.bf16.msra.mxu0 %v2958
        %3024 = vmatprep.subr.bf16.mxu0 %v2961
        %3025 = vmatpush1.bf16.msra.mxu0 %v2960
        %3026 = vmatprep.subr.bf16.mxu0 %v2963
        %3027 = vmatpush1.bf16.msra.mxu0 %v2962
        %3028 = vmatprep.subr.bf16.mxu0 %v2965
        %3029 = vmatpush1.bf16.msra.mxu0 %v2964
        %3030 = vmatprep.mubr.bf16.mxu0 %v2763
        %3031 = vmatmul.mubr.bf16.gmra.mrb[0].mxu0 %v2762
        %v3032 = vpop.f32.mrb[0].mxu0
        %v3033 = vadd.f32 %v2831, %v3032
        %v3034 = vpop.f32.mrb[0].mxu0
        %v3035 = vadd.f32 %v2835, %v3034
        %v3036 = vpop.f32.mrb[0].mxu0
        %v3037 = vadd.f32 %v2831, %v3036
        %v3038 = vpop.f32.mrb[0].mxu0
        %v3039 = vadd.f32 %v2835, %v3038
        %3040 = vmatprep.mubr.bf16.mxu0 %v2765
        %3041 = vmatmul.mubr.bf16.gmra.mrb[0].mxu0 %v2764
        %v3042 = vpop.f32.mrb[0].mxu0
        %v3043 = vadd.f32 %v2831, %v3042
        %v3044 = vpop.f32.mrb[0].mxu0
        %v3045 = vadd.f32 %v2835, %v3044
        %v3046 = vpop.f32.mrb[0].mxu0
        %v3047 = vadd.f32 %v2831, %v3046
        %v3048 = vpop.f32.mrb[0].mxu0
        %v3049 = vadd.f32 %v2835, %v3048
        %3050 = vmatprep.mubr.bf16.mxu0 %v2767
        %3051 = vmatmul.mubr.bf16.gmra.mrb[0].mxu0 %v2766
        %v3052 = vpop.f32.mrb[0].mxu0
        %v3053 = vadd.f32 %v2831, %v3052
        %v3054 = vpop.f32.mrb[0].mxu0
        %v3055 = vadd.f32 %v2835, %v3054
        %v3056 = vpop.f32.mrb[0].mxu0
        %v3057 = vadd.f32 %v2831, %v3056
        %v3058 = vpop.f32.mrb[0].mxu0
        %v3059 = vadd.f32 %v2835, %v3058
        %3060 = vmatprep.mubr.bf16.mxu0 %v2769
        %3061 = vmatmul.mubr.bf16.gmra.mrb[0].mxu0 %v2768
        %v3062 = vpop.f32.mrb[0].mxu0
        %v3063 = vadd.f32 %v2831, %v3062
        %v3064 = vpop.f32.mrb[0].mxu0
        %v3065 = vadd.f32 %v2835, %v3064
        %v3066 = vpop.f32.mrb[0].mxu0
        %v3067 = vadd.f32 %v2831, %v3066
        %v3068 = vpop.f32.mrb[0].mxu0
        %v3069 = vadd.f32 %v2835, %v3068
        %3070 = vmatprep.mubr.bf16.mxu0 %v2771
        %3071 = vmatmul.mubr.bf16.gmra.mrb[0].mxu0 %v2770
        %v3072 = vpop.f32.mrb[0].mxu0
        %v3073 = vadd.f32 %v2831, %v3072
        %v3074 = vpop.f32.mrb[0].mxu0
        %v3075 = vadd.f32 %v2835, %v3074
        %v3076 = vpop.f32.mrb[0].mxu0
        %v3077 = vadd.f32 %v2831, %v3076
        %v3078 = vpop.f32.mrb[0].mxu0
        %v3079 = vadd.f32 %v2835, %v3078
        %3080 = vmatprep.mubr.bf16.mxu0 %v2773
        %3081 = vmatmul.mubr.bf16.gmra.mrb[0].mxu0 %v2772
        %v3082 = vpop.f32.mrb[0].mxu0
        %v3083 = vadd.f32 %v2831, %v3082
        %v3084 = vpop.f32.mrb[0].mxu0
        %v3085 = vadd.f32 %v2835, %v3084
        %v3086 = vpop.f32.mrb[0].mxu0
        %v3087 = vadd.f32 %v2831, %v3086
        %v3088 = vpop.f32.mrb[0].mxu0
        %v3089 = vadd.f32 %v2835, %v3088
        %3090 = vmatprep.mubr.bf16.mxu0 %v2775
        %3091 = vmatmul.mubr.bf16.gmra.mrb[0].mxu0 %v2774
        %v3092 = vpop.f32.mrb[0].mxu0
        %v3093 = vadd.f32 %v2831, %v3092
        %v3094 = vpop.f32.mrb[0].mxu0
        %v3095 = vadd.f32 %v2835, %v3094
        %v3096 = vpop.f32.mrb[0].mxu0
        %v3097 = vadd.f32 %v2831, %v3096
        %v3098 = vpop.f32.mrb[0].mxu0
        %v3099 = vadd.f32 %v2835, %v3098
        %3100 = vmatprep.mubr.bf16.mxu0 %v2777
        %3101 = vmatmul.mubr.bf16.gmra.mrb[0].mxu0 %v2776
        %v3102 = vpop.f32.mrb[0].mxu0
        %v3103 = vadd.f32 %v2831, %v3102
        %v3104 = vpop.f32.mrb[0].mxu0
        %v3105 = vadd.f32 %v2835, %v3104
        %v3106 = vpop.f32.mrb[0].mxu0
        %v3107 = vadd.f32 %v2831, %v3106
        %v3108 = vpop.f32.mrb[0].mxu0
        %v3109 = vadd.f32 %v2835, %v3108
        %3110 = vmatprep.mubr.bf16.mxu0 %v2779
        %3111 = vmatmul.mubr.bf16.gmra.mrb[0].mxu0 %v2778
        %v3112 = vpop.f32.mrb[0].mxu0
        %v3113 = vadd.f32 %v2831, %v3112
        %v3114 = vpop.f32.mrb[0].mxu0
        %v3115 = vadd.f32 %v2835, %v3114
        %v3116 = vpop.f32.mrb[0].mxu0
        %v3117 = vadd.f32 %v2831, %v3116
        %v3118 = vpop.f32.mrb[0].mxu0
        %v3119 = vadd.f32 %v2835, %v3118
        %3120 = vmatprep.mubr.bf16.mxu0 %v2781
        %3121 = vmatmul.mubr.bf16.gmra.mrb[0].mxu0 %v2780
        %v3122 = vpop.f32.mrb[0].mxu0
        %v3123 = vadd.f32 %v2831, %v3122
        %v3124 = vpop.f32.mrb[0].mxu0
        %v3125 = vadd.f32 %v2835, %v3124
        %v3126 = vpop.f32.mrb[0].mxu0
        %v3127 = vadd.f32 %v2831, %v3126
        %v3128 = vpop.f32.mrb[0].mxu0
        %v3129 = vadd.f32 %v2835, %v3128
        %3130 = vmatprep.mubr.bf16.mxu0 %v2783
        %3131 = vmatmul.mubr.bf16.gmra.mrb[0].mxu0 %v2782
        %v3132 = vpop.f32.mrb[0].mxu0
        %v3133 = vadd.f32 %v2831, %v3132
        %v3134 = vpop.f32.mrb[0].mxu0
        %v3135 = vadd.f32 %v2835, %v3134
        %v3136 = vpop.f32.mrb[0].mxu0
        %v3137 = vadd.f32 %v2831, %v3136
        %v3138 = vpop.f32.mrb[0].mxu0
        %v3139 = vadd.f32 %v2835, %v3138
        %3140 = vmatprep.mubr.bf16.mxu0 %v2785
        %3141 = vmatmul.mubr.bf16.gmra.mrb[0].mxu0 %v2784
        %v3142 = vpop.f32.mrb[0].mxu0
        %v3143 = vadd.f32 %v2831, %v3142
        %v3144 = vpop.f32.mrb[0].mxu0
        %v3145 = vadd.f32 %v2835, %v3144
        %v3146 = vpop.f32.mrb[0].mxu0
        %v3147 = vadd.f32 %v2831, %v3146
        %v3148 = vpop.f32.mrb[0].mxu0
        %v3149 = vadd.f32 %v2835, %v3148
        %3150 = vmatprep.mubr.bf16.mxu0 %v2787
        %3151 = vmatmul.mubr.bf16.gmra.mrb[0].mxu0 %v2786
        %v3152 = vpop.f32.mrb[0].mxu0
        %v3153 = vadd.f32 %v2831, %v3152
        %v3154 = vpop.f32.mrb[0].mxu0
        %v3155 = vadd.f32 %v2835, %v3154
        %v3156 = vpop.f32.mrb[0].mxu0
        %v3157 = vadd.f32 %v2831, %v3156
        %v3158 = vpop.f32.mrb[0].mxu0
        %v3159 = vadd.f32 %v2835, %v3158
        %3160 = vmatprep.mubr.bf16.mxu0 %v2789
        %3161 = vmatmul.mubr.bf16.gmra.mrb[0].mxu0 %v2788
        %v3162 = vpop.f32.mrb[0].mxu0
        %v3163 = vadd.f32 %v2831, %v3162
        %v3164 = vpop.f32.mrb[0].mxu0
        %v3165 = vadd.f32 %v2835, %v3164
        %v3166 = vpop.f32.mrb[0].mxu0
        %v3167 = vadd.f32 %v2831, %v3166
        %v3168 = vpop.f32.mrb[0].mxu0
        %v3169 = vadd.f32 %v2835, %v3168
        %3170 = vmatprep.mubr.bf16.mxu0 %v2791
        %3171 = vmatmul.mubr.bf16.gmra.mrb[0].mxu0 %v2790
        %v3172 = vpop.f32.mrb[0].mxu0
        %v3173 = vadd.f32 %v2831, %v3172
        %v3174 = vpop.f32.mrb[0].mxu0
        %v3175 = vadd.f32 %v2835, %v3174
        %v3176 = vpop.f32.mrb[0].mxu0
        %v3177 = vadd.f32 %v2831, %v3176
        %v3178 = vpop.f32.mrb[0].mxu0
        %v3179 = vadd.f32 %v2835, %v3178
        %3180 = vmatprep.mubr.bf16.mxu0 %v2793
        %3181 = vmatmul.mubr.bf16.gmra.mrb[0].mxu0 %v2792
        %v3182 = vpop.f32.mrb[0].mxu0
        %v3183 = vadd.f32 %v2831, %v3182
        %v3184 = vpop.f32.mrb[0].mxu0
        %v3185 = vadd.f32 %v2835, %v3184
        %v3186 = vpop.f32.mrb[0].mxu0
        %v3187 = vadd.f32 %v2831, %v3186
        %v3188 = vpop.f32.mrb[0].mxu0
        %v3189 = vadd.f32 %v2835, %v3188
        %3190 = vdwg.mxu0
        %v3191 = vmax.f32 %v3033, 0.0
        %v3192 = vmax.f32 %v3035, 0.0
        %v3193 = vmax.f32 %v3037, 0.0
        %v3194 = vmax.f32 %v3039, 0.0
        %v3195 = vmax.f32 %v3043, 0.0
        %v3196 = vmax.f32 %v3045, 0.0
        %v3197 = vmax.f32 %v3047, 0.0
        %v3198 = vmax.f32 %v3049, 0.0
        %v3199 = vmax.f32 %v3053, 0.0
        %v3200 = vmax.f32 %v3055, 0.0
        %v3201 = vmax.f32 %v3057, 0.0
        %v3202 = vmax.f32 %v3059, 0.0
        %v3203 = vmax.f32 %v3063, 0.0
        %v3204 = vmax.f32 %v3065, 0.0
        %v3205 = vmax.f32 %v3067, 0.0
        %v3206 = vmax.f32 %v3069, 0.0
        %v3207 = vmax.f32 %v3073, 0.0
        %v3208 = vmax.f32 %v3075, 0.0
        %v3209 = vmax.f32 %v3077, 0.0
        %v3210 = vmax.f32 %v3079, 0.0
        %v3211 = vmax.f32 %v3083, 0.0
        %v3212 = vmax.f32 %v3085, 0.0
        %v3213 = vmax.f32 %v3087, 0.0
        %v3214 = vmax.f32 %v3089, 0.0
        %v3215 = vmax.f32 %v3093, 0.0
        %v3216 = vmax.f32 %v3095, 0.0
        %v3217 = vmax.f32 %v3097, 0.0
        %v3218 = vmax.f32 %v3099, 0.0
        %v3219 = vmax.f32 %v3103, 0.0
        %v3220 = vmax.f32 %v3105, 0.0
        %v3221 = vmax.f32 %v3107, 0.0
        %v3222 = vmax.f32 %v3109, 0.0
        %v3223 = vmax.f32 %v3113, 0.0
        %v3224 = vmax.f32 %v3115, 0.0
        %v3225 = vmax.f32 %v3117, 0.0
        %v3226 = vmax.f32 %v3119, 0.0
        %v3227 = vmax.f32 %v3123, 0.0
        %v3228 = vmax.f32 %v3125, 0.0
        %v3229 = vmax.f32 %v3127, 0.0
        %v3230 = vmax.f32 %v3129, 0.0
        %v3231 = vmax.f32 %v3133, 0.0
        %v3232 = vmax.f32 %v3135, 0.0
        %v3233 = vmax.f32 %v3137, 0.0
        %v3234 = vmax.f32 %v3139, 0.0
        %v3235 = vmax.f32 %v3143, 0.0
        %v3236 = vmax.f32 %v3145, 0.0
        %v3237 = vmax.f32 %v3147, 0.0
        %v3238 = vmax.f32 %v3149, 0.0
        %v3239 = vmax.f32 %v3153, 0.0
        %v3240 = vmax.f32 %v3155, 0.0
        %v3241 = vmax.f32 %v3157, 0.0
        %v3242 = vmax.f32 %v3159, 0.0
        %v3243 = vmax.f32 %v3163, 0.0
        %v3244 = vmax.f32 %v3165, 0.0
        %v3245 = vmax.f32 %v3167, 0.0
        %v3246 = vmax.f32 %v3169, 0.0
        %v3247 = vmax.f32 %v3173, 0.0
        %v3248 = vmax.f32 %v3175, 0.0
        %v3249 = vmax.f32 %v3177, 0.0
        %v3250 = vmax.f32 %v3179, 0.0
        %v3251 = vmax.f32 %v3183, 0.0
        %v3252 = vmax.f32 %v3185, 0.0
        %v3253 = vmax.f32 %v3187, 0.0
        %v3254 = vmax.f32 %v3189, 0.0
        %v3255 = vld [vmem:[%s9] sm:$0xff]
        %v3256 = vld [vmem:[%s9 + $0x8] sm:$0xff]
        %v3257 = vpack.c.bf16 %v3193, %v3191
        %v3258 = vpack.c.bf16 %v3194, %v3192
        %v3259 = vpack.c.bf16 %v3197, %v3195
        %v3260 = vpack.c.bf16 %v3198, %v3196
        %v3261 = vpack.c.bf16 %v3201, %v3199
        %v3262 = vpack.c.bf16 %v3202, %v3200
        %v3263 = vpack.c.bf16 %v3205, %v3203
        %v3264 = vpack.c.bf16 %v3206, %v3204
        %v3265 = vpack.c.bf16 %v3209, %v3207
        %v3266 = vpack.c.bf16 %v3210, %v3208
        %v3267 = vpack.c.bf16 %v3213, %v3211
        %v3268 = vpack.c.bf16 %v3214, %v3212
        %v3269 = vpack.c.bf16 %v3217, %v3215
        %v3270 = vpack.c.bf16 %v3218, %v3216
        %v3271 = vpack.c.bf16 %v3221, %v3219
        %v3272 = vpack.c.bf16 %v3222, %v3220
        %v3273 = vpack.c.bf16 %v3225, %v3223
        %v3274 = vpack.c.bf16 %v3226, %v3224
        %v3275 = vpack.c.bf16 %v3229, %v3227
        %v3276 = vpack.c.bf16 %v3230, %v3228
        %v3277 = vpack.c.bf16 %v3233, %v3231
        %v3278 = vpack.c.bf16 %v3234, %v3232
        %v3279 = vpack.c.bf16 %v3237, %v3235
        %v3280 = vpack.c.bf16 %v3238, %v3236
        %v3281 = vpack.c.bf16 %v3241, %v3239
        %v3282 = vpack.c.bf16 %v3242, %v3240
        %v3283 = vpack.c.bf16 %v3245, %v3243
        %v3284 = vpack.c.bf16 %v3246, %v3244
        %v3285 = vpack.c.bf16 %v3249, %v3247
        %v3286 = vpack.c.bf16 %v3250, %v3248
        %v3287 = vpack.c.bf16 %v3253, %v3251
        %v3288 = vpack.c.bf16 %v3254, %v3252
        %v3289 = vld [vmem:[%s10] sm:$0xff]
        %v3290 = vld [vmem:[%s10 + $0x8] sm:$0xff]
        %3292 = vset.pattern.permute.xlu0 0
        %3293 = vperm.xlu0 %3292, %v3289
        %v3294 = vpop.permute.xlu0 %3293
        %3297 = vset.pattern.permute.xlu0 0
        %3298 = vperm.xlu0 %3297, %v3290
        %v3299 = vpop.permute.xlu0 %3298
        %v3303 = vunpack.c.l.b16 %v3255
        %v3304 = vunpack.c.h.b16 %v3255
        %v3305 = vunpack.c.l.b16 %v3256
        %v3306 = vunpack.c.h.b16 %v3256
        %v3307 = vpack.c.b16 %v3305, %v3303
        %v3308 = vpack.c.b16 %v3306, %v3304
        %3311 = vmatprep.subr.bf16.mxu0 %v3258
        %3312 = vmatpush1.bf16.xpose.msra.mxu0 %v3257
        %3313 = vmatprep.subr.bf16.mxu0 %v3260
        %3314 = vmatpush1.bf16.xpose.msra.mxu0 %v3259
        %3315 = vmatprep.subr.bf16.mxu0 %v3262
        %3316 = vmatpush1.bf16.xpose.msra.mxu0 %v3261
        %3317 = vmatprep.subr.bf16.mxu0 %v3264
        %3318 = vmatpush1.bf16.xpose.msra.mxu0 %v3263
        %3319 = vmatprep.subr.bf16.mxu0 %v3266
        %3320 = vmatpush1.bf16.xpose.msra.mxu0 %v3265
        %3321 = vmatprep.subr.bf16.mxu0 %v3268
        %3322 = vmatpush1.bf16.xpose.msra.mxu0 %v3267
        %3323 = vmatprep.subr.bf16.mxu0 %v3270
        %3324 = vmatpush1.bf16.xpose.msra.mxu0 %v3269
        %3325 = vmatprep.subr.bf16.mxu0 %v3272
        %3326 = vmatpush1.bf16.xpose.msra.mxu0 %v3271
        %3327 = vmatprep.subr.bf16.mxu0 %v3274
        %3328 = vmatpush1.bf16.xpose.msra.mxu0 %v3273
        %3329 = vmatprep.subr.bf16.mxu0 %v3276
        %3330 = vmatpush1.bf16.xpose.msra.mxu0 %v3275
        %3331 = vmatprep.subr.bf16.mxu0 %v3278
        %3332 = vmatpush1.bf16.xpose.msra.mxu0 %v3277
        %3333 = vmatprep.subr.bf16.mxu0 %v3280
        %3334 = vmatpush1.bf16.xpose.msra.mxu0 %v3279
        %3335 = vmatprep.subr.bf16.mxu0 %v3282
        %3336 = vmatpush1.bf16.xpose.msra.mxu0 %v3281
        %3337 = vmatprep.subr.bf16.mxu0 %v3284
        %3338 = vmatpush1.bf16.xpose.msra.mxu0 %v3283
        %3339 = vmatprep.subr.bf16.mxu0 %v3286
        %3340 = vmatpush1.bf16.xpose.msra.mxu0 %v3285
        %3341 = vmatprep.subr.bf16.mxu0 %v3288
        %3342 = vmatpush1.bf16.xpose.msra.mxu0 %v3287
        %3343 = vmatprep.mubr.bf16.mxu0 %v3308
        %3344 = vmatmul.mubr.bf16.gmra.mrb[0].mxu0 %v3307
        %v3345 = vpop.f32.mrb[0].mxu0
        %v3346 = vadd.f32 %v3294, %v3345
        %v3347 = vpop.f32.mrb[0].mxu0
        %v3348 = vadd.f32 %v3294, %v3347
        %v3349 = vpop.f32.mrb[0].mxu0
        %v3350 = vadd.f32 %v3299, %v3349
        %v3351 = vpop.f32.mrb[0].mxu0
        %v3352 = vadd.f32 %v3299, %v3351
        %3353 = vdwg.mxu0
        %3354 = vst [vmem:[%s394] sm:$0xff] %v3346
        %3355 = vst [vmem:[%s394 + $0x8] sm:$0xff] %v3348
        %3356 = vst [vmem:[%s394 + $0x10] sm:$0xff] %v3350
        %3357 = vst [vmem:[%s394 + $0x18] sm:$0xff] %v3352
        %s3358 = sand.u32 %s271, 1
        %s3359 = sand.u32 %s271, 1
        %s3360 = smul.addr %s3359, 32
        %s3361 = scalar_lea.vmem [#allocation2], %s3360
        // Predicated region
        $region65: #{adapter_forward.1} parent=63 // pred_check
          %p3362 = pneg %p281
        $region66: #{adapter_forward.1} parent=63 // pred_check_branch
          %3364 = sbr.rel (%p3362) target = $region68
        $region67: #{adapter_forward.1} parent=63 // pred_region
          %s3365 = smul.u32 2, %s22
          %s3366 = smul.addr %s3365, 8
          %s3367 = scalar_lea.vmem %s11, %s3366
          // Predicated region
          $region69: #{adapter_forward.1} parent=67 // pred_check
            _
          $region70: #{adapter_forward.1} parent=67 // pred_check_branch
            %3369 = sbr.rel (0) target = $region72
          $region71: #{adapter_forward.1} parent=67 // pred_region
            // Predicated region
            $region73: #{adapter_forward.1} parent=71 // pred_check
              _
            $region74: #{adapter_forward.1} parent=71 // pred_check_branch
              %3371 = sbr.rel (0) target = $region76
            $region75: #{adapter_forward.1} parent=71 // pred_region
              loop: start=0, step=1, limit=1
              $region77: #{adapter_forward.1} parent=75 // loop_pre_header
                _
              $region78: #{adapter_forward.1} parent=75 // loop_header
                %s3373 = sphi 0, %s3377
                %p3374 = scmp.ge.s32.totalorder %s3373, 1
                %s3378 = sphi %s3361, %s3361
                %s3379 = sphi %s3367, %s3367
              $region79: #{adapter_forward.1} parent=75 // loop_header_branch
                %3376 = sbr.rel (%p3374) target = $region83
              $region80: #{adapter_forward.1} parent=75 // loop_body
                %v3380 = vld [vmem:[%s3378] sm:$0xff]
                %3381 = vst [vmem:[%s3379] sm:$0xff] %v3380
                %v3382 = vld [vmem:[%s3378 + $0x8] sm:$0xff]
                %3383 = vst [vmem:[%s3379 + $0x8] sm:$0xff] %v3382
                %v3384 = vld [vmem:[%s3378 + $0x10] sm:$0xff]
                %3385 = vst [vmem:[%s3379 + $0x20] sm:$0xff] %v3384
                %v3386 = vld [vmem:[%s3378 + $0x18] sm:$0xff]
                %3387 = vst [vmem:[%s3379 + $0x28] sm:$0xff] %v3386
              $region81: #{adapter_forward.1} parent=75 // loop_footer
                %s3377 = sadd.s32 1, %s3373
              $region82: #{adapter_forward.1} parent=75 // loop_footer_branch
                %3372 = sbr.rel target = $region78
              $region83: #{adapter_forward.1} parent=75 // loop_exit
                _
            $region76: #{adapter_forward.1} parent=71 // pred_fallthru
              _
            // Predicated region
            $region84: #{adapter_forward.1} parent=71 // pred_check
              _
            $region85: #{adapter_forward.1} parent=71 // pred_check_branch
              %3389 = sbr.rel target = $region87
            $region86: #{adapter_forward.1} parent=71 // pred_region
              _
            $region87: #{adapter_forward.1} parent=71 // pred_fallthru
              _
          $region72: #{adapter_forward.1} parent=67 // pred_fallthru
            _
          %3390 = vnop
        $region68: #{adapter_forward.1} parent=63 // pred_fallthru
          _
      $region64: #{adapter_forward.1} parent=5 // pred_fallthru
        _
      %p3391 = scmp.le.s32.totalorder 2, %s17
      // Predicated region
      $region88: #{adapter_forward.1} parent=5 // pred_check
        %p3392 = pneg %p3391
      $region89: #{adapter_forward.1} parent=5 // pred_check_branch
        %3394 = sbr.rel (%p3392) target = $region91
      $region90: #{adapter_forward.1} parent=5 // pred_region
        %s3395 = ssub.s32 %s17, 2
        // Predicated region
        $region92: #{adapter_forward.1} parent=90 // pred_check
          %p3396 = pneg %p287
        $region93: #{adapter_forward.1} parent=90 // pred_check_branch
          %3398 = sbr.rel (%p3396) target = $region95
        $region94: #{adapter_forward.1} parent=90 // pred_region
          %s3399 = sand.u32 %s272, 1
          %s3400 = sand.u32 %s272, 1
          %s3401 = smul.addr %s3400, 32
          %s3402 = scalar_lea.vmem [#allocation2], %s3401
        $region95: #{adapter_forward.1} parent=90 // pred_fallthru
          _
      $region91: #{adapter_forward.1} parent=5 // pred_fallthru
        _
    $region6: #{adapter_forward.1} parent=1 // loop_footer
      %s21 = sadd.s32 1, %s17
    $region7: #{adapter_forward.1} parent=1 // loop_footer_branch
      %16 = sbr.rel target = $region3
    $region8: #{adapter_forward.1} parent=1 // loop_exit
      _

</llo_original>
